<compile_context>
chip_gen: v6e
topology: v6e:2x2x1
jax: 0.10.0
libtpu: 0.0.40
codegen_flags: <defaults>
</compile_context>

<pallas_src>
import functools

import jax
import jax.numpy as jnp
from jax.experimental import pallas as pl
from jax.experimental.pallas import tpu as pltpu


# ----------------------------------------------------------------------------
# Fused ResidualBlock kernel (one batch element per grid step)
# ----------------------------------------------------------------------------
def residual_block_kernel(cols1_ref, w1sc_ref, b1_ref, w2_ref, b2_ref,
                          o_ref, y1p_ref, cols2_ref, *, K, H, W):
    # cols1_ref: (1, H*W, K*K*Cin) bf16   im2col of the padded input
    # w1sc_ref : (K*K*Cin, 2*C)    bf16   [conv1*bn1_scale | 1x1-shortcut (center rows)]
    # b1_ref   : (1, C) f32               folded BN1 bias (conv1 bias folded in)
    # w2_ref   : (K*K*C, C)        bf16   conv2 weights * bn2_scale, im2col row order
    # b2_ref   : (1, C) f32               folded BN2 bias + shortcut bias
    # o_ref    : (1, H*W, C) f32          block output (pre NCHW transpose)
    # y1p_ref  : (H+2P, W+2P, C) f32      VMEM scratch: zero-padded conv1 activation
    # cols2_ref: (H*W, K*K*C)     bf16    VMEM scratch: im2col of the conv1 activation
    HW = H * W
    C = b1_ref.shape[-1]
    P = K // 2

    # --- conv1 (BN1 scale pre-folded) + 1x1 shortcut: ONE MXU matmul, 2*C out lanes ---
    t = jnp.dot(cols1_ref[0], w1sc_ref[...], preferred_element_type=jnp.float32)
    y1 = jnp.maximum(t[:, :C] + b1_ref[...], 0.0)      # bn1 bias + relu, (HW, C)
    sc = t[:, C:2 * C]                                  # shortcut branch (bias in b2)

    # --- stage conv1 activation, zero-padded, in VMEM (never touches HBM) -------------
    y1p_ref[...] = jnp.zeros_like(y1p_ref)
    y1p_ref[P:P + H, P:P + W, :] = y1.reshape(H, W, C)

    # --- conv2: in-VMEM im2col, then ONE (HW, K*K*C) x (K*K*C, C) matmul ---------------
    # (K-dim of 288 keeps the MXU dense instead of nine K=32 matmuls.)
    for tap in range(K * K):
        kh, kw = divmod(tap, K)
        win = y1p_ref[kh:kh + H, kw:kw + W, :].reshape(HW, C)
        cols2_ref[:, tap * C:(tap + 1) * C] = win.astype(cols2_ref.dtype)
    acc = jnp.dot(cols2_ref[...], w2_ref[...], preferred_element_type=jnp.float32)

    # bn2 bias (+ shortcut bias) + residual add + final relu  (dropout_rate=0 -> no-op)
    o_ref[0] = jnp.maximum(acc + b2_ref[...] + sc, 0.0)


# ----------------------------------------------------------------------------
# Wrapper: NCHW <-> NHWC plumbing, im2col for conv1, single pallas_call
# ----------------------------------------------------------------------------
def residual_block_forward(x_nchw, params):
    x = jnp.transpose(x_nchw, (0, 2, 3, 1))            # NCHW -> NHWC
    B, H, W, Cin = x.shape
    KKC, C = params["w2"].shape
    KK = KKC // C
    K = int(round(KK ** 0.5))
    P = K // 2
    HW = H * W

    # im2col for conv1 (stride 1, pad K//2). Tiny (~18 KB bf16 per image) and it lets
    # the kernel issue one lane-dense matmul instead of K*K tiny K=Cin matmuls.
    xp = jnp.pad(x, ((0, 0), (P, P), (P, P), (0, 0)))
    cols = [xp[:, kh:kh + H, kw:kw + W, :].reshape(B, HW, Cin)
            for kh in range(K) for kw in range(K)]
    cols1 = jnp.concatenate(cols, axis=-1).astype(jnp.bfloat16)   # (B, HW, K*K*Cin)

    kernel = functools.partial(residual_block_kernel, K=K, H=H, W=W)
    out = pl.pallas_call(
        kernel,
        out_shape=jax.ShapeDtypeStruct((B, HW, C), jnp.float32),
        grid=(B,),
        in_specs=[
            pl.BlockSpec((1, HW, KK * Cin), lambda b: (b, 0, 0)),   # cols1 (per image)
            pl.BlockSpec((KK * Cin, 2 * C), lambda b: (0, 0)),      # packed conv1|shortcut
            pl.BlockSpec((1, C), lambda b: (0, 0)),                 # b1 (BN1 folded)
            pl.BlockSpec((KK * C, C), lambda b: (0, 0)),            # w2 (BN2 scale folded)
            pl.BlockSpec((1, C), lambda b: (0, 0)),                 # b2 (+ shortcut bias)
        ],
        out_specs=pl.BlockSpec((1, HW, C), lambda b: (b, 0, 0)),
        scratch_shapes=[
            pltpu.VMEM((H + 2 * P, W + 2 * P, C), jnp.float32),     # padded conv1 act
            pltpu.VMEM((HW, KK * C), jnp.bfloat16),                 # conv2 im2col staging
        ],
        compiler_params=pltpu.CompilerParams(
            dimension_semantics=("parallel",)),   # v7x: the 2 TCs split the batch
    )(cols1, params["w1sc"], params["b1"], params["w2"], params["b2"])

    out = out.reshape(B, H, W, C)
    return jnp.transpose(out, (0, 3, 1, 2))             # back to NCHW like PyTorch


# ----------------------------------------------------------------------------
# Deterministic synthetic parameters + BN/bias folding + weight packing
# ----------------------------------------------------------------------------
def init_params(key, *, in_channels=4, out_channels=32, kernel_size=3,
                use_batch_norm=True, eps=1e-5):
    K, Cin, C = kernel_size, in_channels, out_channels
    keys = iter(jax.random.split(key, 24))

    def nrm(shape, s=0.1):
        return s * jax.random.normal(next(keys), shape, dtype=jnp.float32)

    def bn_fold(c, conv_bias):
        # inference-mode BN folded to scale/bias; conv bias folded into the shift
        if not use_batch_norm:
            return jnp.ones((c,), jnp.float32), conv_bias
        gamma = 1.0 + 0.1 * jax.random.normal(next(keys), (c,), jnp.float32)
        beta = 0.1 * jax.random.normal(next(keys), (c,), jnp.float32)
        mean = 0.05 * jax.random.normal(next(keys), (c,), jnp.float32)
        var = 1.0 + 0.1 * jax.random.uniform(next(keys), (c,), jnp.float32)
        scale = gamma / jnp.sqrt(var + eps)
        return scale, beta + (conv_bias - mean) * scale

    w1 = nrm((K, K, Cin, C))          # conv1, HWIO
    b1c = nrm((C,))
    s1, b1 = bn_fold(C, b1c)

    w2 = nrm((K, K, C, C))            # conv2, HWIO
    b2c = nrm((C,))
    s2, b2 = bn_fold(C, b2c)

    wsc = nrm((Cin, C))               # 1x1 shortcut conv (in_channels != out_channels)
    bsc = nrm((C,))

    # Fold BN scales into the conv weights (per-output-channel, in f32, before the bf16
    # cast): bn(conv(x; w) + b) == conv(x; w*s) + folded_bias.
    w1f = (w1 * s1).reshape(K * K * Cin, C)
    w2f = (w2 * s2).reshape(K * K * C, C)        # row order (kh, kw, cin) = im2col order

    # Pack conv1 and the 1x1 shortcut into one (K*K*Cin, 2C) matmul operand: the
    # shortcut only reads the center tap of the im2col columns, so its weights sit in
    # rows [ctr*Cin : (ctr+1)*Cin] of the second half; everything else is zero.
    ctr = (K // 2) * K + (K // 2)
    wsc_emb = jnp.zeros((K * K * Cin, C), jnp.float32)
    wsc_emb = wsc_emb.at[ctr * Cin:(ctr + 1) * Cin].set(wsc)
    w1sc = jnp.concatenate([w1f, wsc_emb], axis=1)

    return {
        "w1sc": w1sc.astype(jnp.bfloat16),
        "b1": b1.reshape(1, C),
        "w2": w2f.astype(jnp.bfloat16),
        "b2": (b2 + bsc).reshape(1, C),           # shortcut bias folded into final bias
    }


# ----------------------------------------------------------------------------
# Pure-JAX reference (same folded / bf16-rounded weights) for a correctness check
# ----------------------------------------------------------------------------
def _conv2d_nhwc(x, w):
    return jax.lax.conv_general_dilated(
        x, w, window_strides=(1, 1), padding="SAME",
        dimension_numbers=("NHWC", "HWIO", "NHWC"))


def residual_block_reference(x_nchw, params, *, in_channels=4, kernel_size=3):
    K, Cin = kernel_size, in_channels
    KKC, C = params["w2"].shape
    x = jnp.transpose(x_nchw, (0, 2, 3, 1)).astype(jnp.float32)
    w1sc = params["w1sc"].astype(jnp.float32)
    w1 = w1sc[:, :C].reshape(K, K, Cin, C)
    ctr = (K // 2) * K + (K // 2)
    wsc = w1sc[ctr * Cin:(ctr + 1) * Cin, C:].reshape(1, 1, Cin, C)
    w2 = params["w2"].astype(jnp.float32).reshape(K, K, C, C)
    y1 = jnp.maximum(_conv2d_nhwc(x, w1) + params["b1"][0], 0.0)
    y2 = _conv2d_nhwc(y1, w2) + params["b2"][0]
    out = jnp.maximum(y2 + _conv2d_nhwc(x, wsc), 0.0)
    return jnp.transpose(out, (0, 3, 1, 2))


# TODO(synk): training-mode BatchNorm (batch-statistics update) and Dropout2d are not
#             implemented; this is the inference path with dropout_rate=0.0.

if __name__ == "__main__":
    key = jax.random.PRNGKey(0)
    pkey, xkey = jax.random.split(key)
    params = init_params(pkey, in_channels=4, out_channels=32, kernel_size=3)
    x = jax.random.normal(xkey, (2, 4, 16, 16), dtype=jnp.float32)   # NCHW, like PyTorch
    fwd = jax.jit(residual_block_forward)
    out = jax.block_until_ready(fwd(x, params))
    assert out.shape == (2, 32, 16, 16), out.shape
    assert bool(jnp.all(jnp.isfinite(out)))
    ref = residual_block_reference(x, params)
    max_err = float(jnp.max(jnp.abs(out - ref)))
    assert max_err < 0.1, f"max abs error vs reference = {max_err}"
    print("KERNEL_OK")
</pallas_src>

<mosaic_0001>
module attributes {stable_mosaic.version = 11 : i64} {
  func.func @residual_block_kernel(%arg0: i32, %arg1: memref<1x256x36xbf16, #tpu.memory_space<vmem>>, %arg2: memref<36x64xbf16, #tpu.memory_space<vmem>>, %arg3: memref<1x32xf32, #tpu.memory_space<vmem>>, %arg4: memref<288x32xbf16, #tpu.memory_space<vmem>>, %arg5: memref<1x32xf32, #tpu.memory_space<vmem>>, %arg6: memref<1x256x32xf32, #tpu.memory_space<vmem>>, %arg7: memref<18x18x32xf32, #tpu.memory_space<vmem>>, %arg8: memref<256x288xbf16, #tpu.memory_space<vmem>>) attributes {dimension_semantics = [#tpu.dimension_semantics<parallel>], iteration_bounds = array<i64: 2>, scalar_prefetch = 0 : i64, scratch_operands = 2 : i64, tpu.core_type = #tpu.core_type<tc>, window_params = [{transform_indices = @transform_0, window_bounds = array<i64: 1, 256, 36>}, {pipeline_mode = #tpu.pipeline_mode<synchronous>, transform_indices = @transform_1, window_bounds = array<i64: 36, 64>}, {pipeline_mode = #tpu.pipeline_mode<synchronous>, transform_indices = @transform_2, window_bounds = array<i64: 1, 32>}, {pipeline_mode = #tpu.pipeline_mode<synchronous>, transform_indices = @transform_3, window_bounds = array<i64: 288, 32>}, {pipeline_mode = #tpu.pipeline_mode<synchronous>, transform_indices = @transform_4, window_bounds = array<i64: 1, 32>}, {transform_indices = @transform_5, window_bounds = array<i64: 1, 256, 32>}]} {
    %c0 = arith.constant 0 : index
    %c0_0 = arith.constant 0 : index
    %c0_1 = arith.constant 0 : index
    %0 = vector.load %arg1[%c0, %c0_0, %c0_1] : memref<1x256x36xbf16, #tpu.memory_space<vmem>>, vector<1x256x36xbf16>
    %1 = vector.shape_cast %0 : vector<1x256x36xbf16> to vector<256x36xbf16>
    %c0_2 = arith.constant 0 : index
    %c0_3 = arith.constant 0 : index
    %2 = vector.load %arg2[%c0_2, %c0_3] : memref<36x64xbf16, #tpu.memory_space<vmem>>, vector<36x64xbf16>
    %cst = arith.constant dense<0.000000e+00> : vector<256x64xf32>
    %3 = tpu.matmul %1, %2, %cst {dimension_numbers = #tpu.dot_dimension_numbers<[1], [0], [0], [1], [0, 0, 1, 1], [], []>} : vector<256x36xbf16>, vector<36x64xbf16>, vector<256x64xf32> -> vector<256x64xf32>
    %4 = vector.extract_strided_slice %3 {offsets = [0, 0], sizes = [256, 32], strides = [1, 1]} : vector<256x64xf32> to vector<256x32xf32>
    %c0_4 = arith.constant 0 : index
    %c0_5 = arith.constant 0 : index
    %5 = vector.load %arg3[%c0_4, %c0_5] : memref<1x32xf32, #tpu.memory_space<vmem>>, vector<1x32xf32>
    %6 = vector.broadcast %5 : vector<1x32xf32> to vector<256x32xf32>
    %7 = arith.addf %4, %6 : vector<256x32xf32>
    %cst_6 = arith.constant 0.000000e+00 : f32
    %8 = vector.broadcast %cst_6 : f32 to vector<256x32xf32>
    %9 = arith.maximumf %7, %8 : vector<256x32xf32>
    %10 = vector.extract_strided_slice %3 {offsets = [0, 32], sizes = [256, 32], strides = [1, 1]} : vector<256x64xf32> to vector<256x32xf32>
    %cst_7 = arith.constant 0.000000e+00 : f32
    %11 = vector.broadcast %cst_7 : f32 to vector<18x18x32xf32>
    %c0_8 = arith.constant 0 : index
    %c0_9 = arith.constant 0 : index
    %c0_10 = arith.constant 0 : index
    %12 = vector.load %arg7[%c0_8, %c0_9, %c0_10] : memref<18x18x32xf32, #tpu.memory_space<vmem>>, vector<18x18x32xf32>
    tpu.vector_store %arg7[%c0_8, %c0_9, %c0_10], %11 {strides = array<i32>} : memref<18x18x32xf32, #tpu.memory_space<vmem>>, vector<18x18x32xf32>,
    %13 = vector.shape_cast %9 : vector<256x32xf32> to vector<16x16x32xf32>
    %c1 = arith.constant 1 : index
    %c1_11 = arith.constant 1 : index
    %c0_12 = arith.constant 0 : index
    %14 = vector.load %arg7[%c1, %c1_11, %c0_12] : memref<18x18x32xf32, #tpu.memory_space<vmem>>, vector<16x16x32xf32>
    tpu.vector_store %arg7[%c1, %c1_11, %c0_12], %13 {strides = array<i32>} : memref<18x18x32xf32, #tpu.memory_space<vmem>>, vector<16x16x32xf32>,
    %c0_13 = arith.constant 0 : index
    %c0_14 = arith.constant 0 : index
    %c0_15 = arith.constant 0 : index
    %15 = vector.load %arg7[%c0_13, %c0_14, %c0_15] : memref<18x18x32xf32, #tpu.memory_space<vmem>>, vector<16x16x32xf32>
    %16 = vector.shape_cast %15 : vector<16x16x32xf32> to vector<256x32xf32>
    %17 = arith.truncf %16 : vector<256x32xf32> to vector<256x32xbf16>
    %c0_16 = arith.constant 0 : index
    %c0_17 = arith.constant 0 : index
    %18 = vector.load %arg8[%c0_16, %c0_17] : memref<256x288xbf16, #tpu.memory_space<vmem>>, vector<256x32xbf16>
    tpu.vector_store %arg8[%c0_16, %c0_17], %17 {strides = array<i32>} : memref<256x288xbf16, #tpu.memory_space<vmem>>, vector<256x32xbf16>,
    %c0_18 = arith.constant 0 : index
    %c1_19 = arith.constant 1 : index
    %c0_20 = arith.constant 0 : index
    %19 = vector.load %arg7[%c0_18, %c1_19, %c0_20] : memref<18x18x32xf32, #tpu.memory_space<vmem>>, vector<16x16x32xf32>
    %20 = vector.shape_cast %19 : vector<16x16x32xf32> to vector<256x32xf32>
    %21 = arith.truncf %20 : vector<256x32xf32> to vector<256x32xbf16>
    %c0_21 = arith.constant 0 : index
    %c32 = arith.constant 32 : index
    %22 = vector.load %arg8[%c0_21, %c32] : memref<256x288xbf16, #tpu.memory_space<vmem>>, vector<256x32xbf16>
    tpu.vector_store %arg8[%c0_21, %c32], %21 {strides = array<i32>} : memref<256x288xbf16, #tpu.memory_space<vmem>>, vector<256x32xbf16>,
    %c0_22 = arith.constant 0 : index
    %c2 = arith.constant 2 : index
    %c0_23 = arith.constant 0 : index
    %23 = vector.load %arg7[%c0_22, %c2, %c0_23] : memref<18x18x32xf32, #tpu.memory_space<vmem>>, vector<16x16x32xf32>
    %24 = vector.shape_cast %23 : vector<16x16x32xf32> to vector<256x32xf32>
    %25 = arith.truncf %24 : vector<256x32xf32> to vector<256x32xbf16>
    %c0_24 = arith.constant 0 : index
    %c64 = arith.constant 64 : index
    %26 = vector.load %arg8[%c0_24, %c64] : memref<256x288xbf16, #tpu.memory_space<vmem>>, vector<256x32xbf16>
    tpu.vector_store %arg8[%c0_24, %c64], %25 {strides = array<i32>} : memref<256x288xbf16, #tpu.memory_space<vmem>>, vector<256x32xbf16>,
    %c1_25 = arith.constant 1 : index
    %c0_26 = arith.constant 0 : index
    %c0_27 = arith.constant 0 : index
    %27 = vector.load %arg7[%c1_25, %c0_26, %c0_27] : memref<18x18x32xf32, #tpu.memory_space<vmem>>, vector<16x16x32xf32>
    %28 = vector.shape_cast %27 : vector<16x16x32xf32> to vector<256x32xf32>
    %29 = arith.truncf %28 : vector<256x32xf32> to vector<256x32xbf16>
    %c0_28 = arith.constant 0 : index
    %c96 = arith.constant 96 : index
    %30 = vector.load %arg8[%c0_28, %c96] : memref<256x288xbf16, #tpu.memory_space<vmem>>, vector<256x32xbf16>
    tpu.vector_store %arg8[%c0_28, %c96], %29 {strides = array<i32>} : memref<256x288xbf16, #tpu.memory_space<vmem>>, vector<256x32xbf16>,
    %c1_29 = arith.constant 1 : index
    %c1_30 = arith.constant 1 : index
    %c0_31 = arith.constant 0 : index
    %31 = vector.load %arg7[%c1_29, %c1_30, %c0_31] : memref<18x18x32xf32, #tpu.memory_space<vmem>>, vector<16x16x32xf32>
    %32 = vector.shape_cast %31 : vector<16x16x32xf32> to vector<256x32xf32>
    %33 = arith.truncf %32 : vector<256x32xf32> to vector<256x32xbf16>
    %c0_32 = arith.constant 0 : index
    %c128 = arith.constant 128 : index
    %34 = vector.load %arg8[%c0_32, %c128] : memref<256x288xbf16, #tpu.memory_space<vmem>>, vector<256x32xbf16>
    tpu.vector_store %arg8[%c0_32, %c128], %33 {strides = array<i32>} : memref<256x288xbf16, #tpu.memory_space<vmem>>, vector<256x32xbf16>,
    %c1_33 = arith.constant 1 : index
    %c2_34 = arith.constant 2 : index
    %c0_35 = arith.constant 0 : index
    %35 = vector.load %arg7[%c1_33, %c2_34, %c0_35] : memref<18x18x32xf32, #tpu.memory_space<vmem>>, vector<16x16x32xf32>
    %36 = vector.shape_cast %35 : vector<16x16x32xf32> to vector<256x32xf32>
    %37 = arith.truncf %36 : vector<256x32xf32> to vector<256x32xbf16>
    %c0_36 = arith.constant 0 : index
    %c160 = arith.constant 160 : index
    %38 = vector.load %arg8[%c0_36, %c160] : memref<256x288xbf16, #tpu.memory_space<vmem>>, vector<256x32xbf16>
    tpu.vector_store %arg8[%c0_36, %c160], %37 {strides = array<i32>} : memref<256x288xbf16, #tpu.memory_space<vmem>>, vector<256x32xbf16>,
    %c2_37 = arith.constant 2 : index
    %c0_38 = arith.constant 0 : index
    %c0_39 = arith.constant 0 : index
    %39 = vector.load %arg7[%c2_37, %c0_38, %c0_39] : memref<18x18x32xf32, #tpu.memory_space<vmem>>, vector<16x16x32xf32>
    %40 = vector.shape_cast %39 : vector<16x16x32xf32> to vector<256x32xf32>
    %41 = arith.truncf %40 : vector<256x32xf32> to vector<256x32xbf16>
    %c0_40 = arith.constant 0 : index
    %c192 = arith.constant 192 : index
    %42 = vector.load %arg8[%c0_40, %c192] : memref<256x288xbf16, #tpu.memory_space<vmem>>, vector<256x32xbf16>
    tpu.vector_store %arg8[%c0_40, %c192], %41 {strides = array<i32>} : memref<256x288xbf16, #tpu.memory_space<vmem>>, vector<256x32xbf16>,
    %c2_41 = arith.constant 2 : index
    %c1_42 = arith.constant 1 : index
    %c0_43 = arith.constant 0 : index
    %43 = vector.load %arg7[%c2_41, %c1_42, %c0_43] : memref<18x18x32xf32, #tpu.memory_space<vmem>>, vector<16x16x32xf32>
    %44 = vector.shape_cast %43 : vector<16x16x32xf32> to vector<256x32xf32>
    %45 = arith.truncf %44 : vector<256x32xf32> to vector<256x32xbf16>
    %c0_44 = arith.constant 0 : index
    %c224 = arith.constant 224 : index
    %46 = vector.load %arg8[%c0_44, %c224] : memref<256x288xbf16, #tpu.memory_space<vmem>>, vector<256x32xbf16>
    tpu.vector_store %arg8[%c0_44, %c224], %45 {strides = array<i32>} : memref<256x288xbf16, #tpu.memory_space<vmem>>, vector<256x32xbf16>,
    %c2_45 = arith.constant 2 : index
    %c2_46 = arith.constant 2 : index
    %c0_47 = arith.constant 0 : index
    %47 = vector.load %arg7[%c2_45, %c2_46, %c0_47] : memref<18x18x32xf32, #tpu.memory_space<vmem>>, vector<16x16x32xf32>
    %48 = vector.shape_cast %47 : vector<16x16x32xf32> to vector<256x32xf32>
    %49 = arith.truncf %48 : vector<256x32xf32> to vector<256x32xbf16>
    %c0_48 = arith.constant 0 : index
    %c256 = arith.constant 256 : index
    %50 = vector.load %arg8[%c0_48, %c256] : memref<256x288xbf16, #tpu.memory_space<vmem>>, vector<256x32xbf16>
    tpu.vector_store %arg8[%c0_48, %c256], %49 {strides = array<i32>} : memref<256x288xbf16, #tpu.memory_space<vmem>>, vector<256x32xbf16>,
    %c0_49 = arith.constant 0 : index
    %c0_50 = arith.constant 0 : index
    %51 = vector.load %arg8[%c0_49, %c0_50] : memref<256x288xbf16, #tpu.memory_space<vmem>>, vector<256x288xbf16>
    %c0_51 = arith.constant 0 : index
    %c0_52 = arith.constant 0 : index
    %52 = vector.load %arg4[%c0_51, %c0_52] : memref<288x32xbf16, #tpu.memory_space<vmem>>, vector<288x32xbf16>
    %cst_53 = arith.constant dense<0.000000e+00> : vector<256x32xf32>
    %53 = tpu.matmul %51, %52, %cst_53 {dimension_numbers = #tpu.dot_dimension_numbers<[1], [0], [0], [1], [0, 0, 1, 1], [], []>} : vector<256x288xbf16>, vector<288x32xbf16>, vector<256x32xf32> -> vector<256x32xf32>
    %c0_54 = arith.constant 0 : index
    %c0_55 = arith.constant 0 : index
    %54 = vector.load %arg5[%c0_54, %c0_55] : memref<1x32xf32, #tpu.memory_space<vmem>>, vector<1x32xf32>
    %55 = vector.broadcast %54 : vector<1x32xf32> to vector<256x32xf32>
    %56 = arith.addf %53, %55 : vector<256x32xf32>
    %57 = arith.addf %56, %10 : vector<256x32xf32>
    %cst_56 = arith.constant 0.000000e+00 : f32
    %58 = vector.broadcast %cst_56 : f32 to vector<256x32xf32>
    %59 = arith.maximumf %57, %58 : vector<256x32xf32>
    %c0_57 = arith.constant 0 : index
    %c0_58 = arith.constant 0 : index
    %c0_59 = arith.constant 0 : index
    %60 = vector.load %arg6[%c0_57, %c0_58, %c0_59] : memref<1x256x32xf32, #tpu.memory_space<vmem>>, vector<1x256x32xf32>
    %61 = vector.shape_cast %60 : vector<1x256x32xf32> to vector<256x32xf32>
    %62 = vector.shape_cast %59 : vector<256x32xf32> to vector<1x256x32xf32>
    tpu.vector_store %arg6[%c0_57, %c0_58, %c0_59], %62 {strides = array<i32>} : memref<1x256x32xf32, #tpu.memory_space<vmem>>, vector<1x256x32xf32>,
    return
  }
  func.func @transform_0(%arg0: i32) -> (i32, i32, i32) {
    %c0_i32 = arith.constant 0 : i32
    %c0_i32_0 = arith.constant 0 : i32
    %c0_i32_1 = arith.constant 0 : i32
    return %arg0, %c0_i32, %c0_i32_0 : i32, i32, i32
  }
  func.func @transform_1(%arg0: i32) -> (i32, i32) {
    %c0_i32 = arith.constant 0 : i32
    %c0_i32_0 = arith.constant 0 : i32
    %c0_i32_1 = arith.constant 0 : i32
    return %c0_i32, %c0_i32_0 : i32, i32
  }
  func.func @transform_2(%arg0: i32) -> (i32, i32) {
    %c0_i32 = arith.constant 0 : i32
    %c0_i32_0 = arith.constant 0 : i32
    %c0_i32_1 = arith.constant 0 : i32
    return %c0_i32, %c0_i32_0 : i32, i32
  }
  func.func @transform_3(%arg0: i32) -> (i32, i32) {
    %c0_i32 = arith.constant 0 : i32
    %c0_i32_0 = arith.constant 0 : i32
    %c0_i32_1 = arith.constant 0 : i32
    return %c0_i32, %c0_i32_0 : i32, i32
  }
  func.func @transform_4(%arg0: i32) -> (i32, i32) {
    %c0_i32 = arith.constant 0 : i32
    %c0_i32_0 = arith.constant 0 : i32
    %c0_i32_1 = arith.constant 0 : i32
    return %c0_i32, %c0_i32_0 : i32, i32
  }
  func.func @transform_5(%arg0: i32) -> (i32, i32, i32) {
    %c0_i32 = arith.constant 0 : i32
    %c0_i32_0 = arith.constant 0 : i32
    %c0_i32_1 = arith.constant 0 : i32
    return %arg0, %c0_i32, %c0_i32_0 : i32, i32, i32
  }
}

</mosaic_0001>

<llo_original>
// kernel: residual_block_forward.1
$region0: #{residual_block_forward.1}
  #allocation0 [shape = 'u32[]', space=smem, size = 0x4, offset = 0x4, fixed_abs, tag = 'smem constant byte address 0x4 - core index']
  #allocation1 [shape = 'u32[144,128]{1,0:T(1,128)}', space=vmem, size = 0x12000, scoped, tag = 'internal scratch']
  #allocation2 [shape = 'f32[18,18,32]{2,1,0:T(8,128)}', space=vmem, size = 0x36000, scoped, tag = 'scratch operand']
  #allocation3 [shape = 'bf16[256,288]{1,0:T(8,128)(2,1)}', space=vmem, size = 0x30000, scoped, tag = 'scratch operand']
  %s0 = inlined_call_operand.vmem [shape: bf16[2,256,36], index: 0, kind: input, shape index: {}]
  %s1 = inlined_call_operand.vmem [shape: bf16[36,64], index: 1, kind: input, shape index: {}]
  %s2 = inlined_call_operand.vmem [shape: f32[1,32], index: 2, kind: input, shape index: {}]
  %s3 = inlined_call_operand.vmem [shape: bf16[288,32], index: 3, kind: input, shape index: {}]
  %s4 = inlined_call_operand.vmem [shape: f32[1,32], index: 4, kind: input, shape index: {}]
  %s5 = inlined_call_operand.hbm [shape: f32[2,256,32], index: 5, kind: output, shape index: {}]
  %s6 = sld [smem:[#allocation0]]
  $region53: #{residual_block_forward.1} parent=0
    _
  %s8 = ssub.s32 1, %s6
  %s9 = scalar_select 0, %s8, %s6
  $region1: #{residual_block_forward.1} parent=0
    #allocation4 [shape = 'u8[262144]{0}', space=vmem, size = 0x40000, scoped, tag = 'output window, operand 0']
    #allocation5 [shape = 's32[2]{0}', space=sflag, size = 0x8, scoped, tag = 'scoped memory for residual_block_forward.1']
    %10 = vsyncpa [#allocation5], 0
    %s11 = scalar_lea.sflag [#allocation5], 1
    %12 = vsyncpa %s11, 0
    loop: start=0, step=1, limit=4
    $region2: #{residual_block_forward.1} parent=1 // loop_pre_header
      _
    $region3: #{residual_block_forward.1} parent=1 // loop_header
      %s14 = sphi 0, %s18
      %p15 = scmp.ge.s32.totalorder %s14, 4
      %s24 = sphi 0, %s26
      %s27 = sphi 0, %s24
      %s28 = sphi 0, %s27
      %s44 = sphi 0, %s28
      %s48 = sphi 0, %s48
      %s50 = sphi 0, %s48
      %s51 = sphi 0, %s50
      %s65 = sphi 0, %s51
      %s69 = sphi 0, %s69
      %s71 = sphi 0, %s69
      %s72 = sphi 0, %s71
      %s86 = sphi 0, %s72
      %s90 = sphi 0, %s90
      %s92 = sphi 0, %s90
      %s93 = sphi 0, %s92
      %s107 = sphi 0, %s93
      %s111 = sphi 0, %s111
      %s113 = sphi 0, %s111
      %s114 = sphi 0, %s113
      %s128 = sphi 0, %s114
      %s134 = sphi 0, %s136
      %s137 = sphi 0, %s134
      %s138 = sphi 0, %s137
      %s154 = sphi 0, %s138
    $region4: #{residual_block_forward.1} parent=1 // loop_header_branch
      %17 = sbr.rel (%p15) target = $region8
    $region5: #{residual_block_forward.1} parent=1 // loop_body
      %s19 = ssub.s32 %s14, 1
      %s20 = ssub.s32 %s14, 2
      %s21 = sadd.s32 %s14, 1
      %s22 = ssub.s32 %s14, %s21
      %p23 = scmp.eq.s32.totalorder %s22, 0
      %s25 = sadd.s32 %s24, 1
      %s26 = scalar_select %p23, %s24, %s25
      %p29 = pneg %p23
      %p30 = scmp.eq.s32.totalorder %s14, 1
      %p31 = por %p29, %p30
      %p32 = scmp.ne.s32.totalorder %s24, %s27
      %p33 = scmp.eq.s32.totalorder %s14, 0
      %p34 = por %p32, %p33
      %p35 = scmp.ne.s32.totalorder %s24, %s27
      %p36 = scmp.eq.s32.totalorder %s19, 1
      %p37 = por %p35, %p36
      %p38 = scmp.ne.s32.totalorder %s27, %s28
      %p39 = scmp.eq.s32.totalorder %s19, 0
      %p40 = por %p38, %p39
      %p41 = scmp.ne.s32.totalorder %s27, %s28
      %p42 = scmp.eq.s32.totalorder %s20, 1
      %p43 = por %p41, %p42
      %p45 = scmp.ne.s32.totalorder %s28, %s44
      %p46 = scmp.eq.s32.totalorder %s20, 0
      %p47 = por %p45, %p46
      %s49 = sadd.s32 %s48, 1
      %p52 = scmp.eq.s32.totalorder %s14, 1
      %p53 = scmp.ne.s32.totalorder %s48, %s50
      %p54 = scmp.eq.s32.totalorder %s14, 0
      %p55 = por %p53, %p54
      %p56 = scmp.ne.s32.totalorder %s48, %s50
      %p57 = scmp.eq.s32.totalorder %s19, 1
      %p58 = por %p56, %p57
      %p59 = scmp.ne.s32.totalorder %s50, %s51
      %p60 = scmp.eq.s32.totalorder %s19, 0
      %p61 = por %p59, %p60
      %p62 = scmp.ne.s32.totalorder %s50, %s51
      %p63 = scmp.eq.s32.totalorder %s20, 1
      %p64 = por %p62, %p63
      %p66 = scmp.ne.s32.totalorder %s51, %s65
      %p67 = scmp.eq.s32.totalorder %s20, 0
      %p68 = por %p66, %p67
      %s70 = sadd.s32 %s69, 1
      %p73 = scmp.eq.s32.totalorder %s14, 1
      %p74 = scmp.ne.s32.totalorder %s69, %s71
      %p75 = scmp.eq.s32.totalorder %s14, 0
      %p76 = por %p74, %p75
      %p77 = scmp.ne.s32.totalorder %s69, %s71
      %p78 = scmp.eq.s32.totalorder %s19, 1
      %p79 = por %p77, %p78
      %p80 = scmp.ne.s32.totalorder %s71, %s72
      %p81 = scmp.eq.s32.totalorder %s19, 0
      %p82 = por %p80, %p81
      %p83 = scmp.ne.s32.totalorder %s71, %s72
      %p84 = scmp.eq.s32.totalorder %s20, 1
      %p85 = por %p83, %p84
      %p87 = scmp.ne.s32.totalorder %s72, %s86
      %p88 = scmp.eq.s32.totalorder %s20, 0
      %p89 = por %p87, %p88
      %s91 = sadd.s32 %s90, 1
      %p94 = scmp.eq.s32.totalorder %s14, 1
      %p95 = scmp.ne.s32.totalorder %s90, %s92
      %p96 = scmp.eq.s32.totalorder %s14, 0
      %p97 = por %p95, %p96
      %p98 = scmp.ne.s32.totalorder %s90, %s92
      %p99 = scmp.eq.s32.totalorder %s19, 1
      %p100 = por %p98, %p99
      %p101 = scmp.ne.s32.totalorder %s92, %s93
      %p102 = scmp.eq.s32.totalorder %s19, 0
      %p103 = por %p101, %p102
      %p104 = scmp.ne.s32.totalorder %s92, %s93
      %p105 = scmp.eq.s32.totalorder %s20, 1
      %p106 = por %p104, %p105
      %p108 = scmp.ne.s32.totalorder %s93, %s107
      %p109 = scmp.eq.s32.totalorder %s20, 0
      %p110 = por %p108, %p109
      %s112 = sadd.s32 %s111, 1
      %p115 = scmp.eq.s32.totalorder %s14, 1
      %p116 = scmp.ne.s32.totalorder %s111, %s113
      %p117 = scmp.eq.s32.totalorder %s14, 0
      %p118 = por %p116, %p117
      %p119 = scmp.ne.s32.totalorder %s111, %s113
      %p120 = scmp.eq.s32.totalorder %s19, 1
      %p121 = por %p119, %p120
      %p122 = scmp.ne.s32.totalorder %s113, %s114
      %p123 = scmp.eq.s32.totalorder %s19, 0
      %p124 = por %p122, %p123
      %p125 = scmp.ne.s32.totalorder %s113, %s114
      %p126 = scmp.eq.s32.totalorder %s20, 1
      %p127 = por %p125, %p126
      %p129 = scmp.ne.s32.totalorder %s114, %s128
      %p130 = scmp.eq.s32.totalorder %s20, 0
      %p131 = por %p129, %p130
      %s132 = ssub.s32 %s14, %s21
      %p133 = scmp.eq.s32.totalorder %s132, 0
      %s135 = sadd.s32 %s134, 1
      %s136 = scalar_select %p133, %s134, %s135
      %p139 = pneg %p133
      %p140 = scmp.eq.s32.totalorder %s14, 1
      %p141 = por %p139, %p140
      %p142 = scmp.ne.s32.totalorder %s134, %s137
      %p143 = scmp.eq.s32.totalorder %s14, 0
      %p144 = por %p142, %p143
      %p145 = scmp.ne.s32.totalorder %s134, %s137
      %p146 = scmp.eq.s32.totalorder %s19, 1
      %p147 = por %p145, %p146
      %p148 = scmp.ne.s32.totalorder %s137, %s138
      %p149 = scmp.eq.s32.totalorder %s19, 0
      %p150 = por %p148, %p149
      %p151 = scmp.ne.s32.totalorder %s137, %s138
      %p152 = scmp.eq.s32.totalorder %s20, 1
      %p153 = por %p151, %p152
      %p155 = scmp.ne.s32.totalorder %s138, %s154
      %p156 = scmp.eq.s32.totalorder %s20, 0
      %p157 = por %p155, %p156
      %p158 = scmp.le.s32.totalorder 1, %s14
      %p159 = scmp.lt.s32.totalorder %s14, 3
      %p160 = pnand %p158, %p159
      %p161 = pneg %p160
      // Predicated region
      $region9: #{residual_block_forward.1} parent=5 // pred_check
        _
      $region10: #{residual_block_forward.1} parent=5 // pred_check_branch
        %163 = sbr.rel (%p160) target = $region12
      $region11: #{residual_block_forward.1} parent=5 // pred_region
        %s164 = ssub.s32 %s14, 1
        // Predicated region
        $region13: #{residual_block_forward.1} parent=11 // pred_check
          %p165 = pneg %p61
        $region14: #{residual_block_forward.1} parent=11 // pred_check_branch
          %167 = sbr.rel (%p165) target = $region16
        $region15: #{residual_block_forward.1} parent=11 // pred_region
          _
        $region16: #{residual_block_forward.1} parent=11 // pred_fallthru
          _
        // Predicated region
        $region17: #{residual_block_forward.1} parent=11 // pred_check
          %p168 = pneg %p82
        $region18: #{residual_block_forward.1} parent=11 // pred_check_branch
          %170 = sbr.rel (%p168) target = $region20
        $region19: #{residual_block_forward.1} parent=11 // pred_region
          _
        $region20: #{residual_block_forward.1} parent=11 // pred_fallthru
          _
        // Predicated region
        $region21: #{residual_block_forward.1} parent=11 // pred_check
          %p171 = pneg %p103
        $region22: #{residual_block_forward.1} parent=11 // pred_check_branch
          %173 = sbr.rel (%p171) target = $region24
        $region23: #{residual_block_forward.1} parent=11 // pred_region
          _
        $region24: #{residual_block_forward.1} parent=11 // pred_fallthru
          _
        // Predicated region
        $region25: #{residual_block_forward.1} parent=11 // pred_check
          %p174 = pneg %p124
        $region26: #{residual_block_forward.1} parent=11 // pred_check_branch
          %176 = sbr.rel (%p174) target = $region28
        $region27: #{residual_block_forward.1} parent=11 // pred_region
          _
        $region28: #{residual_block_forward.1} parent=11 // pred_fallthru
          _
      $region12: #{residual_block_forward.1} parent=5 // pred_fallthru
        _
      %p177 = scmp.lt.s32.totalorder %s14, 2
      // Predicated region
      $region29: #{residual_block_forward.1} parent=5 // pred_check
        %p178 = pneg %p177
      $region30: #{residual_block_forward.1} parent=5 // pred_check_branch
        %180 = sbr.rel (%p178) target = $region32
      $region31: #{residual_block_forward.1} parent=5 // pred_region
        // Predicated region
        $region33: #{residual_block_forward.1} parent=31 // pred_check
          %p181 = pneg %p34
        $region34: #{residual_block_forward.1} parent=31 // pred_check_branch
          %183 = sbr.rel (%p181) target = $region36
        $region35: #{residual_block_forward.1} parent=31 // pred_region
          %p184 = scmp.lt.s32.totalorder %s14, 1
          %s185 = scalar_select %p184, %s14, 1
          %s186 = smul.addr %s185, 32
          %s187 = smul.addr %s186, 4
          %s188 = scalar_lea.vmem %s0, %s187
        $region36: #{residual_block_forward.1} parent=31 // pred_fallthru
          _
      $region32: #{residual_block_forward.1} parent=5 // pred_fallthru
        _
      %p189 = scmp.le.s32.totalorder 1, %s14
      %p190 = scmp.lt.s32.totalorder %s14, 3
      %p191 = pnand %p189, %p190
      %p192 = pneg %p191
      // Predicated region
      $region37: #{residual_block_forward.1} parent=5 // pred_check
        _
      $region38: #{residual_block_forward.1} parent=5 // pred_check_branch
        %194 = sbr.rel (%p191) target = $region40
      $region39: #{residual_block_forward.1} parent=5 // pred_region
        %s195 = ssub.s32 %s14, 1
        %p196 = scmp.lt.s32.totalorder %s19, 1
        %s197 = scalar_select %p196, %s19, 1
        %s198 = smul.addr %s197, 32
        %s199 = smul.addr %s198, 4
        %s200 = scalar_lea.vmem %s0, %s199
        %p201 = pneg %p40
        %p202 = pneg %p37
        %p203 = pneg %p61
        %p204 = pneg %p58
        %p205 = pneg %p82
        %p206 = pneg %p79
        %p207 = pneg %p103
        %p208 = pneg %p100
        %p209 = pneg %p124
        %p210 = pneg %p121
        %p211 = pneg %p150
        %p212 = pneg %p147
        %s213 = sand.u32 %s137, 1
        %s214 = scalar_lea.sflag [#allocation5], %s213
        %s215 = sand.u32 %s137, 1
        %s216 = smul.addr %s215, 256
        %s217 = scalar_lea.vmem [#allocation4], %s216
        %p218 = scmp.lt.s32.totalorder %s19, 1
        %s219 = scalar_select %p218, %s19, 1
        %s220 = smul.addr %s219, 32
        %s221 = smul.addr %s220, 4
        %s222 = scalar_lea.vmem %s0, %s221
        %v224 = vld [vmem:[%s222] sm:$0xf]
        %v225 = vld [vmem:[%s222 + $0x4] sm:$0xf]
        %v226 = vld [vmem:[%s222 + $0x8] sm:$0xf]
        %v227 = vld [vmem:[%s222 + $0xc] sm:$0xf]
        %v228 = vld [vmem:[%s222 + $0x10] sm:$0xf]
        %v229 = vld [vmem:[%s222 + $0x14] sm:$0xf]
        %v230 = vld [vmem:[%s222 + $0x18] sm:$0xf]
        %v231 = vld [vmem:[%s222 + $0x1c] sm:$0xf]
        %v232 = vld [vmem:[%s222 + $0x20] sm:$0xf]
        %v233 = vld [vmem:[%s222 + $0x24] sm:$0xf]
        %v234 = vld [vmem:[%s222 + $0x28] sm:$0xf]
        %v235 = vld [vmem:[%s222 + $0x2c] sm:$0xf]
        %v236 = vld [vmem:[%s222 + $0x30] sm:$0xf]
        %v237 = vld [vmem:[%s222 + $0x34] sm:$0xf]
        %v238 = vld [vmem:[%s222 + $0x38] sm:$0xf]
        %v239 = vld [vmem:[%s222 + $0x3c] sm:$0xf]
        %v240 = vld [vmem:[%s222 + $0x40] sm:$0xf]
        %v241 = vld [vmem:[%s222 + $0x44] sm:$0xf]
        %v242 = vld [vmem:[%s222 + $0x48] sm:$0xf]
        %v243 = vld [vmem:[%s222 + $0x4c] sm:$0xf]
        %v244 = vld [vmem:[%s222 + $0x50] sm:$0xf]
        %v245 = vld [vmem:[%s222 + $0x54] sm:$0xf]
        %v246 = vld [vmem:[%s222 + $0x58] sm:$0xf]
        %v247 = vld [vmem:[%s222 + $0x5c] sm:$0xf]
        %v248 = vld [vmem:[%s222 + $0x60] sm:$0xf]
        %v249 = vld [vmem:[%s222 + $0x64] sm:$0xf]
        %v250 = vld [vmem:[%s222 + $0x68] sm:$0xf]
        %v251 = vld [vmem:[%s222 + $0x6c] sm:$0xf]
        %v252 = vld [vmem:[%s222 + $0x70] sm:$0xf]
        %v253 = vld [vmem:[%s222 + $0x74] sm:$0xf]
        %v254 = vld [vmem:[%s222 + $0x78] sm:$0xf]
        %v255 = vld [vmem:[%s222 + $0x7c] sm:$0xf]
        %v256 = vld [vmem:[%s1] sm:$0xf]
        %v257 = vld [vmem:[%s1 + $0x4] sm:$0xf]
        %v258 = vld [vmem:[%s1 + $0x8] sm:$0xf]
        %v259 = vld [vmem:[%s1 + $0xc] sm:$0xf]
        %v260 = vld [vmem:[%s1 + $0x10] sm:$0x3]
        %v293 = vunpack.c.l.b16 %v224
        %v294 = vunpack.c.l.b16 %v225
        %v295 = vunpack.c.l.b16 %v226
        %v296 = vunpack.c.l.b16 %v227
        %v297 = vunpack.c.l.b16 %v228
        %v298 = vunpack.c.l.b16 %v229
        %v299 = vunpack.c.l.b16 %v230
        %v300 = vunpack.c.l.b16 %v231
        %v301 = vunpack.c.l.b16 %v232
        %v302 = vunpack.c.l.b16 %v233
        %v303 = vunpack.c.l.b16 %v234
        %v304 = vunpack.c.l.b16 %v235
        %v305 = vunpack.c.l.b16 %v236
        %v306 = vunpack.c.l.b16 %v237
        %v307 = vunpack.c.l.b16 %v238
        %v308 = vunpack.c.l.b16 %v239
        %v309 = vunpack.c.l.b16 %v240
        %v310 = vunpack.c.l.b16 %v241
        %v311 = vunpack.c.l.b16 %v242
        %v312 = vunpack.c.l.b16 %v243
        %v313 = vunpack.c.l.b16 %v244
        %v314 = vunpack.c.l.b16 %v245
        %v315 = vunpack.c.l.b16 %v246
        %v316 = vunpack.c.l.b16 %v247
        %v317 = vunpack.c.l.b16 %v248
        %v318 = vunpack.c.l.b16 %v249
        %v319 = vunpack.c.l.b16 %v250
        %v320 = vunpack.c.l.b16 %v251
        %v321 = vunpack.c.l.b16 %v252
        %v322 = vunpack.c.l.b16 %v253
        %v323 = vunpack.c.l.b16 %v254
        %v324 = vunpack.c.l.b16 %v255
        %v325 = vpack.c.b16 %v294, %v293
        %v326 = vpack.c.b16 %v296, %v295
        %v327 = vpack.c.b16 %v298, %v297
        %v328 = vpack.c.b16 %v300, %v299
        %v329 = vpack.c.b16 %v302, %v301
        %v330 = vpack.c.b16 %v304, %v303
        %v331 = vpack.c.b16 %v306, %v305
        %v332 = vpack.c.b16 %v308, %v307
        %v333 = vpack.c.b16 %v310, %v309
        %v334 = vpack.c.b16 %v312, %v311
        %v335 = vpack.c.b16 %v314, %v313
        %v336 = vpack.c.b16 %v316, %v315
        %v337 = vpack.c.b16 %v318, %v317
        %v338 = vpack.c.b16 %v320, %v319
        %v339 = vpack.c.b16 %v322, %v321
        %v340 = vpack.c.b16 %v324, %v323
        %v346 = vunpack.c.l.b16 %v256
        %v347 = vunpack.c.l.b16 %v257
        %v348 = vunpack.c.l.b16 %v258
        %v349 = vunpack.c.l.b16 %v259
        %v350 = vunpack.c.l.b16 %v260
        %v351 = vpack.c.b16 %v347, %v346
        %v352 = vpack.c.b16 %v349, %v348
        %v353 = vpack.c.b16 %v350, %v350
        %vm356 = vcmask 293888
        %v358 = vsel %vm356, %v325, 0
        %v361 = vsel %vm356, %v326, 0
        %v364 = vsel %vm356, %v327, 0
        %v367 = vsel %vm356, %v328, 0
        %v370 = vsel %vm356, %v329, 0
        %v373 = vsel %vm356, %v330, 0
        %v376 = vsel %vm356, %v331, 0
        %v379 = vsel %vm356, %v332, 0
        %v382 = vsel %vm356, %v333, 0
        %v385 = vsel %vm356, %v334, 0
        %v388 = vsel %vm356, %v335, 0
        %v391 = vsel %vm356, %v336, 0
        %v394 = vsel %vm356, %v337, 0
        %v397 = vsel %vm356, %v338, 0
        %v400 = vsel %vm356, %v339, 0
        %v403 = vsel %vm356, %v340, 0
        %vm405 = vcmask 1041408
        %v407 = vsel %vm405, %v353, 0
        %409 = vmatprep.subr.bf16.mxu0 0
        %410 = vmatpush1.bf16.msra.mxu0 0
        %411 = vmatprep.subr.bf16.mxu0 0
        %412 = vmatpush1.bf16.msra.mxu0 0
        %413 = vmatprep.subr.bf16.mxu0 0
        %414 = vmatpush1.bf16.msra.mxu0 0
        %415 = vmatprep.subr.bf16.mxu0 0
        %416 = vmatpush1.bf16.msra.mxu0 0
        %417 = vmatprep.subr.bf16.mxu0 0
        %418 = vmatpush1.bf16.msra.mxu0 0
        %419 = vmatprep.subr.bf16.mxu0 0
        %420 = vmatpush1.bf16.msra.mxu0 %v407
        %421 = vmatprep.subr.bf16.mxu0 0
        %422 = vmatpush1.bf16.msra.mxu0 %v352
        %423 = vmatprep.subr.bf16.mxu0 0
        %424 = vmatpush1.bf16.msra.mxu0 %v351
        %425 = vmatprep.subr.bf16.mxu0 0
        %426 = vmatpush2.bf16.msra.mxu0 0
        %427 = vmatprep.subr.bf16.mxu0 0
        %428 = vmatpush2.bf16.msra.mxu0 0
        %429 = vmatprep.subr.bf16.mxu0 0
        %430 = vmatpush2.bf16.msra.mxu0 0
        %431 = vmatprep.subr.bf16.mxu0 0
        %432 = vmatpush2.bf16.msra.mxu0 0
        %433 = vmatprep.subr.bf16.mxu0 0
        %434 = vmatpush2.bf16.msra.mxu0 0
        %435 = vmatprep.subr.bf16.mxu0 0
        %436 = vmatpush2.bf16.msra.mxu0 0
        %437 = vmatprep.subr.bf16.mxu0 0
        %438 = vmatpush2.bf16.msra.mxu0 0
        %439 = vmatprep.subr.bf16.mxu0 0
        %440 = vmatpush2.bf16.msra.mxu0 0
        %441 = vmatprep.mubr.bf16.mxu0 0
        %442 = vmatmul.mubr.bf16.gmra.mxu0 %v358
        %v443 = vpop.f32.mrf.mxu0
        %v444 = vadd.f32 0.0, %v443
        %v445 = vpop.f32.mrf.mxu0
        %v446 = vpop.f32.mrf.mxu0
        %v447 = vadd.f32 0.0, %v446
        %v448 = vpop.f32.mrf.mxu0
        %449 = vmatprep.mubr.bf16.mxu0 0
        %450 = vmatmul.mubr.bf16.gmra.mxu0 %v361
        %v451 = vpop.f32.mrf.mxu0
        %v452 = vadd.f32 0.0, %v451
        %v453 = vpop.f32.mrf.mxu0
        %v454 = vpop.f32.mrf.mxu0
        %v455 = vadd.f32 0.0, %v454
        %v456 = vpop.f32.mrf.mxu0
        %457 = vmatprep.mubr.bf16.mxu0 0
        %458 = vmatmul.mubr.bf16.gmra.mxu0 %v364
        %v459 = vpop.f32.mrf.mxu0
        %v460 = vadd.f32 0.0, %v459
        %v461 = vpop.f32.mrf.mxu0
        %v462 = vpop.f32.mrf.mxu0
        %v463 = vadd.f32 0.0, %v462
        %v464 = vpop.f32.mrf.mxu0
        %465 = vmatprep.mubr.bf16.mxu0 0
        %466 = vmatmul.mubr.bf16.gmra.mxu0 %v367
        %v467 = vpop.f32.mrf.mxu0
        %v468 = vadd.f32 0.0, %v467
        %v469 = vpop.f32.mrf.mxu0
        %v470 = vpop.f32.mrf.mxu0
        %v471 = vadd.f32 0.0, %v470
        %v472 = vpop.f32.mrf.mxu0
        %473 = vmatprep.mubr.bf16.mxu0 0
        %474 = vmatmul.mubr.bf16.gmra.mxu0 %v370
        %v475 = vpop.f32.mrf.mxu0
        %v476 = vadd.f32 0.0, %v475
        %v477 = vpop.f32.mrf.mxu0
        %v478 = vpop.f32.mrf.mxu0
        %v479 = vadd.f32 0.0, %v478
        %v480 = vpop.f32.mrf.mxu0
        %481 = vmatprep.mubr.bf16.mxu0 0
        %482 = vmatmul.mubr.bf16.gmra.mxu0 %v373
        %v483 = vpop.f32.mrf.mxu0
        %v484 = vadd.f32 0.0, %v483
        %v485 = vpop.f32.mrf.mxu0
        %v486 = vpop.f32.mrf.mxu0
        %v487 = vadd.f32 0.0, %v486
        %v488 = vpop.f32.mrf.mxu0
        %489 = vmatprep.mubr.bf16.mxu0 0
        %490 = vmatmul.mubr.bf16.gmra.mxu0 %v376
        %v491 = vpop.f32.mrf.mxu0
        %v492 = vadd.f32 0.0, %v491
        %v493 = vpop.f32.mrf.mxu0
        %v494 = vpop.f32.mrf.mxu0
        %v495 = vadd.f32 0.0, %v494
        %v496 = vpop.f32.mrf.mxu0
        %497 = vmatprep.mubr.bf16.mxu0 0
        %498 = vmatmul.mubr.bf16.gmra.mxu0 %v379
        %v499 = vpop.f32.mrf.mxu0
        %v500 = vadd.f32 0.0, %v499
        %v501 = vpop.f32.mrf.mxu0
        %v502 = vpop.f32.mrf.mxu0
        %v503 = vadd.f32 0.0, %v502
        %v504 = vpop.f32.mrf.mxu0
        %505 = vmatprep.mubr.bf16.mxu0 0
        %506 = vmatmul.mubr.bf16.gmra.mxu0 %v382
        %v507 = vpop.f32.mrf.mxu0
        %v508 = vadd.f32 0.0, %v507
        %v509 = vpop.f32.mrf.mxu0
        %v510 = vpop.f32.mrf.mxu0
        %v511 = vadd.f32 0.0, %v510
        %v512 = vpop.f32.mrf.mxu0
        %513 = vmatprep.mubr.bf16.mxu0 0
        %514 = vmatmul.mubr.bf16.gmra.mxu0 %v385
        %v515 = vpop.f32.mrf.mxu0
        %v516 = vadd.f32 0.0, %v515
        %v517 = vpop.f32.mrf.mxu0
        %v518 = vpop.f32.mrf.mxu0
        %v519 = vadd.f32 0.0, %v518
        %v520 = vpop.f32.mrf.mxu0
        %521 = vmatprep.mubr.bf16.mxu0 0
        %522 = vmatmul.mubr.bf16.gmra.mxu0 %v388
        %v523 = vpop.f32.mrf.mxu0
        %v524 = vadd.f32 0.0, %v523
        %v525 = vpop.f32.mrf.mxu0
        %v526 = vpop.f32.mrf.mxu0
        %v527 = vadd.f32 0.0, %v526
        %v528 = vpop.f32.mrf.mxu0
        %529 = vmatprep.mubr.bf16.mxu0 0
        %530 = vmatmul.mubr.bf16.gmra.mxu0 %v391
        %v531 = vpop.f32.mrf.mxu0
        %v532 = vadd.f32 0.0, %v531
        %v533 = vpop.f32.mrf.mxu0
        %v534 = vpop.f32.mrf.mxu0
        %v535 = vadd.f32 0.0, %v534
        %v536 = vpop.f32.mrf.mxu0
        %537 = vmatprep.mubr.bf16.mxu0 0
        %538 = vmatmul.mubr.bf16.gmra.mxu0 %v394
        %v539 = vpop.f32.mrf.mxu0
        %v540 = vadd.f32 0.0, %v539
        %v541 = vpop.f32.mrf.mxu0
        %v542 = vpop.f32.mrf.mxu0
        %v543 = vadd.f32 0.0, %v542
        %v544 = vpop.f32.mrf.mxu0
        %545 = vmatprep.mubr.bf16.mxu0 0
        %546 = vmatmul.mubr.bf16.gmra.mxu0 %v397
        %v547 = vpop.f32.mrf.mxu0
        %v548 = vadd.f32 0.0, %v547
        %v549 = vpop.f32.mrf.mxu0
        %v550 = vpop.f32.mrf.mxu0
        %v551 = vadd.f32 0.0, %v550
        %v552 = vpop.f32.mrf.mxu0
        %553 = vmatprep.mubr.bf16.mxu0 0
        %554 = vmatmul.mubr.bf16.gmra.mxu0 %v400
        %v555 = vpop.f32.mrf.mxu0
        %v556 = vadd.f32 0.0, %v555
        %v557 = vpop.f32.mrf.mxu0
        %v558 = vpop.f32.mrf.mxu0
        %v559 = vadd.f32 0.0, %v558
        %v560 = vpop.f32.mrf.mxu0
        %561 = vmatprep.mubr.bf16.mxu0 0
        %562 = vmatmul.mubr.bf16.gmra.mxu0 %v403
        %v563 = vpop.f32.mrf.mxu0
        %v564 = vadd.f32 0.0, %v563
        %v565 = vpop.f32.mrf.mxu0
        %v566 = vpop.f32.mrf.mxu0
        %v567 = vadd.f32 0.0, %v566
        %v568 = vpop.f32.mrf.mxu0
        %569 = vdwg.mxu0
        %v570 = vld [vmem:[%s2] sm:$0x1]
        %v572 = vlaneseq
        %v573 = vshrl.u32 %v572, 7
        %v574 = vsub.s32 0, %v573
        %v575 = vrot.slane %v570, %v574
        %v577 = vadd.f32 %v444, %v575
        %v578 = vadd.f32 %v447, %v575
        %v579 = vadd.f32 %v452, %v575
        %v580 = vadd.f32 %v455, %v575
        %v581 = vadd.f32 %v460, %v575
        %v582 = vadd.f32 %v463, %v575
        %v583 = vadd.f32 %v468, %v575
        %v584 = vadd.f32 %v471, %v575
        %v585 = vadd.f32 %v476, %v575
        %v586 = vadd.f32 %v479, %v575
        %v587 = vadd.f32 %v484, %v575
        %v588 = vadd.f32 %v487, %v575
        %v589 = vadd.f32 %v492, %v575
        %v590 = vadd.f32 %v495, %v575
        %v591 = vadd.f32 %v500, %v575
        %v592 = vadd.f32 %v503, %v575
        %v593 = vadd.f32 %v508, %v575
        %v594 = vadd.f32 %v511, %v575
        %v595 = vadd.f32 %v516, %v575
        %v596 = vadd.f32 %v519, %v575
        %v597 = vadd.f32 %v524, %v575
        %v598 = vadd.f32 %v527, %v575
        %v599 = vadd.f32 %v532, %v575
        %v600 = vadd.f32 %v535, %v575
        %v601 = vadd.f32 %v540, %v575
        %v602 = vadd.f32 %v543, %v575
        %v603 = vadd.f32 %v548, %v575
        %v604 = vadd.f32 %v551, %v575
        %v605 = vadd.f32 %v556, %v575
        %v606 = vadd.f32 %v559, %v575
        %v607 = vadd.f32 %v564, %v575
        %v608 = vadd.f32 %v567, %v575
        %v609 = vmax.f32 %v577, 0.0
        %v610 = vmax.f32 %v578, 0.0
        %v611 = vmax.f32 %v579, 0.0
        %v612 = vmax.f32 %v580, 0.0
        %v613 = vmax.f32 %v581, 0.0
        %v614 = vmax.f32 %v582, 0.0
        %v615 = vmax.f32 %v583, 0.0
        %v616 = vmax.f32 %v584, 0.0
        %v617 = vmax.f32 %v585, 0.0
        %v618 = vmax.f32 %v586, 0.0
        %v619 = vmax.f32 %v587, 0.0
        %v620 = vmax.f32 %v588, 0.0
        %v621 = vmax.f32 %v589, 0.0
        %v622 = vmax.f32 %v590, 0.0
        %v623 = vmax.f32 %v591, 0.0
        %v624 = vmax.f32 %v592, 0.0
        %v625 = vmax.f32 %v593, 0.0
        %v626 = vmax.f32 %v594, 0.0
        %v627 = vmax.f32 %v595, 0.0
        %v628 = vmax.f32 %v596, 0.0
        %v629 = vmax.f32 %v597, 0.0
        %v630 = vmax.f32 %v598, 0.0
        %v631 = vmax.f32 %v599, 0.0
        %v632 = vmax.f32 %v600, 0.0
        %v633 = vmax.f32 %v601, 0.0
        %v634 = vmax.f32 %v602, 0.0
        %v635 = vmax.f32 %v603, 0.0
        %v636 = vmax.f32 %v604, 0.0
        %v637 = vmax.f32 %v605, 0.0
        %v638 = vmax.f32 %v606, 0.0
        %v639 = vmax.f32 %v607, 0.0
        %v640 = vmax.f32 %v608, 0.0
        %vm641 = vcmask 261120
        %642 = vst.msk [vmem:[#allocation2] sm:$0xff] %vm641, 0.0
        %643 = vst.msk [vmem:[#allocation2 + $0x8] sm:$0xff] %vm641, 0.0
        %vm644 = vcmask 254976
        %645 = vst.msk [vmem:[#allocation2 + $0x10] sm:$0x3] %vm644, 0.0
        %646 = vst.msk [vmem:[#allocation2 + $0x18] sm:$0xff] %vm641, 0.0
        %647 = vst.msk [vmem:[#allocation2 + $0x20] sm:$0xff] %vm641, 0.0
        %648 = vst.msk [vmem:[#allocation2 + $0x28] sm:$0x3] %vm644, 0.0
        %649 = vst.msk [vmem:[#allocation2 + $0x30] sm:$0xff] %vm641, 0.0
        %650 = vst.msk [vmem:[#allocation2 + $0x38] sm:$0xff] %vm641, 0.0
        %651 = vst.msk [vmem:[#allocation2 + $0x40] sm:$0x3] %vm644, 0.0
        %652 = vst.msk [vmem:[#allocation2 + $0x48] sm:$0xff] %vm641, 0.0
        %653 = vst.msk [vmem:[#allocation2 + $0x50] sm:$0xff] %vm641, 0.0
        %654 = vst.msk [vmem:[#allocation2 + $0x58] sm:$0x3] %vm644, 0.0
        %655 = vst.msk [vmem:[#allocation2 + $0x60] sm:$0xff] %vm641, 0.0
        %656 = vst.msk [vmem:[#allocation2 + $0x68] sm:$0xff] %vm641, 0.0
        %657 = vst.msk [vmem:[#allocation2 + $0x70] sm:$0x3] %vm644, 0.0
        %658 = vst.msk [vmem:[#allocation2 + $0x78] sm:$0xff] %vm641, 0.0
        %659 = vst.msk [vmem:[#allocation2 + $0x80] sm:$0xff] %vm641, 0.0
        %660 = vst.msk [vmem:[#allocation2 + $0x88] sm:$0x3] %vm644, 0.0
        %661 = vst.msk [vmem:[#allocation2 + $0x90] sm:$0xff] %vm641, 0.0
        %662 = vst.msk [vmem:[#allocation2 + $0x98] sm:$0xff] %vm641, 0.0
        %663 = vst.msk [vmem:[#allocation2 + $0xa0] sm:$0x3] %vm644, 0.0
        %664 = vst.msk [vmem:[#allocation2 + $0xa8] sm:$0xff] %vm641, 0.0
        %665 = vst.msk [vmem:[#allocation2 + $0xb0] sm:$0xff] %vm641, 0.0
        %666 = vst.msk [vmem:[#allocation2 + $0xb8] sm:$0x3] %vm644, 0.0
        %667 = vst.msk [vmem:[#allocation2 + $0xc0] sm:$0xff] %vm641, 0.0
        %668 = vst.msk [vmem:[#allocation2 + $0xc8] sm:$0xff] %vm641, 0.0
        %669 = vst.msk [vmem:[#allocation2 + $0xd0] sm:$0x3] %vm644, 0.0
        %670 = vst.msk [vmem:[#allocation2 + $0xd8] sm:$0xff] %vm641, 0.0
        %671 = vst.msk [vmem:[#allocation2 + $0xe0] sm:$0xff] %vm641, 0.0
        %672 = vst.msk [vmem:[#allocation2 + $0xe8] sm:$0x3] %vm644, 0.0
        %673 = vst.msk [vmem:[#allocation2 + $0xf0] sm:$0xff] %vm641, 0.0
        %674 = vst.msk [vmem:[#allocation2 + $0xf8] sm:$0xff] %vm641, 0.0
        %675 = vst.msk [vmem:[#allocation2 + $0x100] sm:$0x3] %vm644, 0.0
        %676 = vst.msk [vmem:[#allocation2 + $0x108] sm:$0xff] %vm641, 0.0
        %677 = vst.msk [vmem:[#allocation2 + $0x110] sm:$0xff] %vm641, 0.0
        %678 = vst.msk [vmem:[#allocation2 + $0x118] sm:$0x3] %vm644, 0.0
        %679 = vst.msk [vmem:[#allocation2 + $0x120] sm:$0xff] %vm641, 0.0
        %680 = vst.msk [vmem:[#allocation2 + $0x128] sm:$0xff] %vm641, 0.0
        %681 = vst.msk [vmem:[#allocation2 + $0x130] sm:$0x3] %vm644, 0.0
        %682 = vst.msk [vmem:[#allocation2 + $0x138] sm:$0xff] %vm641, 0.0
        %683 = vst.msk [vmem:[#allocation2 + $0x140] sm:$0xff] %vm641, 0.0
        %684 = vst.msk [vmem:[#allocation2 + $0x148] sm:$0x3] %vm644, 0.0
        %685 = vst.msk [vmem:[#allocation2 + $0x150] sm:$0xff] %vm641, 0.0
        %686 = vst.msk [vmem:[#allocation2 + $0x158] sm:$0xff] %vm641, 0.0
        %687 = vst.msk [vmem:[#allocation2 + $0x160] sm:$0x3] %vm644, 0.0
        %688 = vst.msk [vmem:[#allocation2 + $0x168] sm:$0xff] %vm641, 0.0
        %689 = vst.msk [vmem:[#allocation2 + $0x170] sm:$0xff] %vm641, 0.0
        %690 = vst.msk [vmem:[#allocation2 + $0x178] sm:$0x3] %vm644, 0.0
        %691 = vst.msk [vmem:[#allocation2 + $0x180] sm:$0xff] %vm641, 0.0
        %692 = vst.msk [vmem:[#allocation2 + $0x188] sm:$0xff] %vm641, 0.0
        %693 = vst.msk [vmem:[#allocation2 + $0x190] sm:$0x3] %vm644, 0.0
        %694 = vst.msk [vmem:[#allocation2 + $0x198] sm:$0xff] %vm641, 0.0
        %695 = vst.msk [vmem:[#allocation2 + $0x1a0] sm:$0xff] %vm641, 0.0
        %696 = vst.msk [vmem:[#allocation2 + $0x1a8] sm:$0x3] %vm644, 0.0
        %s697 = scalar_lea.vmem [#allocation2], 24
        %698 = vst.msk [vmem:[%s697 + $0x1] sm:$0xff] %vm641, %v609
        %699 = vst.msk [vmem:[%s697 + $0x9] sm:$0xff] %vm641, %v610
        %700 = vst.msk [vmem:[%s697 + $0x19] sm:$0xff] %vm641, %v611
        %701 = vst.msk [vmem:[%s697 + $0x21] sm:$0xff] %vm641, %v612
        %702 = vst.msk [vmem:[%s697 + $0x31] sm:$0xff] %vm641, %v613
        %703 = vst.msk [vmem:[%s697 + $0x39] sm:$0xff] %vm641, %v614
        %704 = vst.msk [vmem:[%s697 + $0x49] sm:$0xff] %vm641, %v615
        %705 = vst.msk [vmem:[%s697 + $0x51] sm:$0xff] %vm641, %v616
        %706 = vst.msk [vmem:[%s697 + $0x61] sm:$0xff] %vm641, %v617
        %707 = vst.msk [vmem:[%s697 + $0x69] sm:$0xff] %vm641, %v618
        %708 = vst.msk [vmem:[%s697 + $0x79] sm:$0xff] %vm641, %v619
        %709 = vst.msk [vmem:[%s697 + $0x81] sm:$0xff] %vm641, %v620
        %710 = vst.msk [vmem:[%s697 + $0x91] sm:$0xff] %vm641, %v621
        %711 = vst.msk [vmem:[%s697 + $0x99] sm:$0xff] %vm641, %v622
        %712 = vst.msk [vmem:[%s697 + $0xa9] sm:$0xff] %vm641, %v623
        %713 = vst.msk [vmem:[%s697 + $0xb1] sm:$0xff] %vm641, %v624
        %714 = vst.msk [vmem:[%s697 + $0xc1] sm:$0xff] %vm641, %v625
        %715 = vst.msk [vmem:[%s697 + $0xc9] sm:$0xff] %vm641, %v626
        %716 = vst.msk [vmem:[%s697 + $0xd9] sm:$0xff] %vm641, %v627
        %717 = vst.msk [vmem:[%s697 + $0xe1] sm:$0xff] %vm641, %v628
        %718 = vst.msk [vmem:[%s697 + $0xf1] sm:$0xff] %vm641, %v629
        %719 = vst.msk [vmem:[%s697 + $0xf9] sm:$0xff] %vm641, %v630
        %720 = vst.msk [vmem:[%s697 + $0x109] sm:$0xff] %vm641, %v631
        %721 = vst.msk [vmem:[%s697 + $0x111] sm:$0xff] %vm641, %v632
        %722 = vst.msk [vmem:[%s697 + $0x121] sm:$0xff] %vm641, %v633
        %723 = vst.msk [vmem:[%s697 + $0x129] sm:$0xff] %vm641, %v634
        %724 = vst.msk [vmem:[%s697 + $0x139] sm:$0xff] %vm641, %v635
        %725 = vst.msk [vmem:[%s697 + $0x141] sm:$0xff] %vm641, %v636
        %726 = vst.msk [vmem:[%s697 + $0x151] sm:$0xff] %vm641, %v637
        %727 = vst.msk [vmem:[%s697 + $0x159] sm:$0xff] %vm641, %v638
        %728 = vst.msk [vmem:[%s697 + $0x169] sm:$0xff] %vm641, %v639
        %729 = vst.msk [vmem:[%s697 + $0x171] sm:$0xff] %vm641, %v640
        %v730 = vld [vmem:[#allocation2] sm:$0xff]
        %v731 = vld [vmem:[#allocation2 + $0x8] sm:$0xff]
        %v732 = vld [vmem:[#allocation2 + $0x18] sm:$0xff]
        %v733 = vld [vmem:[#allocation2 + $0x20] sm:$0xff]
        %v734 = vld [vmem:[#allocation2 + $0x30] sm:$0xff]
        %v735 = vld [vmem:[#allocation2 + $0x38] sm:$0xff]
        %v736 = vld [vmem:[#allocation2 + $0x48] sm:$0xff]
        %v737 = vld [vmem:[#allocation2 + $0x50] sm:$0xff]
        %v738 = vld [vmem:[#allocation2 + $0x60] sm:$0xff]
        %v739 = vld [vmem:[#allocation2 + $0x68] sm:$0xff]
        %v740 = vld [vmem:[#allocation2 + $0x78] sm:$0xff]
        %v741 = vld [vmem:[#allocation2 + $0x80] sm:$0xff]
        %v742 = vld [vmem:[#allocation2 + $0x90] sm:$0xff]
        %v743 = vld [vmem:[#allocation2 + $0x98] sm:$0xff]
        %v744 = vld [vmem:[#allocation2 + $0xa8] sm:$0xff]
        %v745 = vld [vmem:[#allocation2 + $0xb0] sm:$0xff]
        %v746 = vld [vmem:[#allocation2 + $0xc0] sm:$0xff]
        %v747 = vld [vmem:[#allocation2 + $0xc8] sm:$0xff]
        %v748 = vld [vmem:[#allocation2 + $0xd8] sm:$0xff]
        %v749 = vld [vmem:[#allocation2 + $0xe0] sm:$0xff]
        %v750 = vld [vmem:[#allocation2 + $0xf0] sm:$0xff]
        %v751 = vld [vmem:[#allocation2 + $0xf8] sm:$0xff]
        %v752 = vld [vmem:[#allocation2 + $0x108] sm:$0xff]
        %v753 = vld [vmem:[#allocation2 + $0x110] sm:$0xff]
        %v754 = vld [vmem:[#allocation2 + $0x120] sm:$0xff]
        %v755 = vld [vmem:[#allocation2 + $0x128] sm:$0xff]
        %v756 = vld [vmem:[#allocation2 + $0x138] sm:$0xff]
        %v757 = vld [vmem:[#allocation2 + $0x140] sm:$0xff]
        %v758 = vld [vmem:[#allocation2 + $0x150] sm:$0xff]
        %v759 = vld [vmem:[#allocation2 + $0x158] sm:$0xff]
        %v760 = vld [vmem:[#allocation2 + $0x168] sm:$0xff]
        %v761 = vld [vmem:[#allocation2 + $0x170] sm:$0xff]
        %v762 = vpack.c.bf16 %v731, %v730
        %v763 = vpack.c.bf16 %v733, %v732
        %v764 = vpack.c.bf16 %v735, %v734
        %v765 = vpack.c.bf16 %v737, %v736
        %v766 = vpack.c.bf16 %v739, %v738
        %v767 = vpack.c.bf16 %v741, %v740
        %v768 = vpack.c.bf16 %v743, %v742
        %v769 = vpack.c.bf16 %v745, %v744
        %v770 = vpack.c.bf16 %v747, %v746
        %v771 = vpack.c.bf16 %v749, %v748
        %v772 = vpack.c.bf16 %v751, %v750
        %v773 = vpack.c.bf16 %v753, %v752
        %v774 = vpack.c.bf16 %v755, %v754
        %v775 = vpack.c.bf16 %v757, %v756
        %v776 = vpack.c.bf16 %v759, %v758
        %v777 = vpack.c.bf16 %v761, %v760
        %v794 = vunpack.c.l.b16 %v762
        %v795 = vunpack.c.h.b16 %v762
        %v796 = vunpack.c.l.b16 %v763
        %v797 = vunpack.c.h.b16 %v763
        %v798 = vunpack.c.l.b16 %v764
        %v799 = vunpack.c.h.b16 %v764
        %v800 = vunpack.c.l.b16 %v765
        %v801 = vunpack.c.h.b16 %v765
        %v802 = vunpack.c.l.b16 %v766
        %v803 = vunpack.c.h.b16 %v766
        %v804 = vunpack.c.l.b16 %v767
        %v805 = vunpack.c.h.b16 %v767
        %v806 = vunpack.c.l.b16 %v768
        %v807 = vunpack.c.h.b16 %v768
        %v808 = vunpack.c.l.b16 %v769
        %v809 = vunpack.c.h.b16 %v769
        %v810 = vunpack.c.l.b16 %v770
        %v811 = vunpack.c.h.b16 %v770
        %v812 = vunpack.c.l.b16 %v771
        %v813 = vunpack.c.h.b16 %v771
        %v814 = vunpack.c.l.b16 %v772
        %v815 = vunpack.c.h.b16 %v772
        %v816 = vunpack.c.l.b16 %v773
        %v817 = vunpack.c.h.b16 %v773
        %v818 = vunpack.c.l.b16 %v774
        %v819 = vunpack.c.h.b16 %v774
        %v820 = vunpack.c.l.b16 %v775
        %v821 = vunpack.c.h.b16 %v775
        %v822 = vunpack.c.l.b16 %v776
        %v823 = vunpack.c.h.b16 %v776
        %v824 = vunpack.c.l.b16 %v777
        %v825 = vunpack.c.h.b16 %v777
        %v826 = vpack.c.b16 %v794, %v794
        %v827 = vpack.c.b16 %v795, %v795
        %v828 = vpack.c.b16 %v796, %v796
        %v829 = vpack.c.b16 %v797, %v797
        %v830 = vpack.c.b16 %v798, %v798
        %v831 = vpack.c.b16 %v799, %v799
        %v832 = vpack.c.b16 %v800, %v800
        %v833 = vpack.c.b16 %v801, %v801
        %v834 = vpack.c.b16 %v802, %v802
        %v835 = vpack.c.b16 %v803, %v803
        %v836 = vpack.c.b16 %v804, %v804
        %v837 = vpack.c.b16 %v805, %v805
        %v838 = vpack.c.b16 %v806, %v806
        %v839 = vpack.c.b16 %v807, %v807
        %v840 = vpack.c.b16 %v808, %v808
        %v841 = vpack.c.b16 %v809, %v809
        %v842 = vpack.c.b16 %v810, %v810
        %v843 = vpack.c.b16 %v811, %v811
        %v844 = vpack.c.b16 %v812, %v812
        %v845 = vpack.c.b16 %v813, %v813
        %v846 = vpack.c.b16 %v814, %v814
        %v847 = vpack.c.b16 %v815, %v815
        %v848 = vpack.c.b16 %v816, %v816
        %v849 = vpack.c.b16 %v817, %v817
        %v850 = vpack.c.b16 %v818, %v818
        %v851 = vpack.c.b16 %v819, %v819
        %v852 = vpack.c.b16 %v820, %v820
        %v853 = vpack.c.b16 %v821, %v821
        %v854 = vpack.c.b16 %v822, %v822
        %v855 = vpack.c.b16 %v823, %v823
        %v856 = vpack.c.b16 %v824, %v824
        %v857 = vpack.c.b16 %v825, %v825
        %vm890 = vcmask 257024
        %891 = vst.msk [vmem:[#allocation3] sm:$0xf] %vm890, %v826
        %892 = vst.msk [vmem:[#allocation3 + $0xc] sm:$0xf] %vm890, %v827
        %893 = vst.msk [vmem:[#allocation3 + $0x18] sm:$0xf] %vm890, %v828
        %894 = vst.msk [vmem:[#allocation3 + $0x24] sm:$0xf] %vm890, %v829
        %895 = vst.msk [vmem:[#allocation3 + $0x30] sm:$0xf] %vm890, %v830
        %896 = vst.msk [vmem:[#allocation3 + $0x3c] sm:$0xf] %vm890, %v831
        %897 = vst.msk [vmem:[#allocation3 + $0x48] sm:$0xf] %vm890, %v832
        %898 = vst.msk [vmem:[#allocation3 + $0x54] sm:$0xf] %vm890, %v833
        %899 = vst.msk [vmem:[#allocation3 + $0x60] sm:$0xf] %vm890, %v834
        %900 = vst.msk [vmem:[#allocation3 + $0x6c] sm:$0xf] %vm890, %v835
        %901 = vst.msk [vmem:[#allocation3 + $0x78] sm:$0xf] %vm890, %v836
        %902 = vst.msk [vmem:[#allocation3 + $0x84] sm:$0xf] %vm890, %v837
        %903 = vst.msk [vmem:[#allocation3 + $0x90] sm:$0xf] %vm890, %v838
        %904 = vst.msk [vmem:[#allocation3 + $0x9c] sm:$0xf] %vm890, %v839
        %905 = vst.msk [vmem:[#allocation3 + $0xa8] sm:$0xf] %vm890, %v840
        %906 = vst.msk [vmem:[#allocation3 + $0xb4] sm:$0xf] %vm890, %v841
        %907 = vst.msk [vmem:[#allocation3 + $0xc0] sm:$0xf] %vm890, %v842
        %908 = vst.msk [vmem:[#allocation3 + $0xcc] sm:$0xf] %vm890, %v843
        %909 = vst.msk [vmem:[#allocation3 + $0xd8] sm:$0xf] %vm890, %v844
        %910 = vst.msk [vmem:[#allocation3 + $0xe4] sm:$0xf] %vm890, %v845
        %911 = vst.msk [vmem:[#allocation3 + $0xf0] sm:$0xf] %vm890, %v846
        %912 = vst.msk [vmem:[#allocation3 + $0xfc] sm:$0xf] %vm890, %v847
        %913 = vst.msk [vmem:[#allocation3 + $0x108] sm:$0xf] %vm890, %v848
        %914 = vst.msk [vmem:[#allocation3 + $0x114] sm:$0xf] %vm890, %v849
        %915 = vst.msk [vmem:[#allocation3 + $0x120] sm:$0xf] %vm890, %v850
        %916 = vst.msk [vmem:[#allocation3 + $0x12c] sm:$0xf] %vm890, %v851
        %917 = vst.msk [vmem:[#allocation3 + $0x138] sm:$0xf] %vm890, %v852
        %918 = vst.msk [vmem:[#allocation3 + $0x144] sm:$0xf] %vm890, %v853
        %919 = vst.msk [vmem:[#allocation3 + $0x150] sm:$0xf] %vm890, %v854
        %920 = vst.msk [vmem:[#allocation3 + $0x15c] sm:$0xf] %vm890, %v855
        %921 = vst.msk [vmem:[#allocation3 + $0x168] sm:$0xf] %vm890, %v856
        %922 = vst.msk [vmem:[#allocation3 + $0x174] sm:$0xf] %vm890, %v857
        %v923 = vld [vmem:[#allocation2 + $0x1] sm:$0xff]
        %v924 = vld [vmem:[#allocation2 + $0x9] sm:$0xff]
        %v925 = vld [vmem:[#allocation2 + $0x19] sm:$0xff]
        %v926 = vld [vmem:[#allocation2 + $0x21] sm:$0xff]
        %v927 = vld [vmem:[#allocation2 + $0x31] sm:$0xff]
        %v928 = vld [vmem:[#allocation2 + $0x39] sm:$0xff]
        %v929 = vld [vmem:[#allocation2 + $0x49] sm:$0xff]
        %v930 = vld [vmem:[#allocation2 + $0x51] sm:$0xff]
        %v931 = vld [vmem:[#allocation2 + $0x61] sm:$0xff]
        %v932 = vld [vmem:[#allocation2 + $0x69] sm:$0xff]
        %v933 = vld [vmem:[#allocation2 + $0x79] sm:$0xff]
        %v934 = vld [vmem:[#allocation2 + $0x81] sm:$0xff]
        %v935 = vld [vmem:[#allocation2 + $0x91] sm:$0xff]
        %v936 = vld [vmem:[#allocation2 + $0x99] sm:$0xff]
        %v937 = vld [vmem:[#allocation2 + $0xa9] sm:$0xff]
        %v938 = vld [vmem:[#allocation2 + $0xb1] sm:$0xff]
        %v939 = vld [vmem:[#allocation2 + $0xc1] sm:$0xff]
        %v940 = vld [vmem:[#allocation2 + $0xc9] sm:$0xff]
        %v941 = vld [vmem:[#allocation2 + $0xd9] sm:$0xff]
        %v942 = vld [vmem:[#allocation2 + $0xe1] sm:$0xff]
        %v943 = vld [vmem:[#allocation2 + $0xf1] sm:$0xff]
        %v944 = vld [vmem:[#allocation2 + $0xf9] sm:$0xff]
        %v945 = vld [vmem:[#allocation2 + $0x109] sm:$0xff]
        %v946 = vld [vmem:[#allocation2 + $0x111] sm:$0xff]
        %v947 = vld [vmem:[#allocation2 + $0x121] sm:$0xff]
        %v948 = vld [vmem:[#allocation2 + $0x129] sm:$0xff]
        %v949 = vld [vmem:[#allocation2 + $0x139] sm:$0xff]
        %v950 = vld [vmem:[#allocation2 + $0x141] sm:$0xff]
        %v951 = vld [vmem:[#allocation2 + $0x151] sm:$0xff]
        %v952 = vld [vmem:[#allocation2 + $0x159] sm:$0xff]
        %v953 = vld [vmem:[#allocation2 + $0x169] sm:$0xff]
        %v954 = vld [vmem:[#allocation2 + $0x171] sm:$0xff]
        %v955 = vpack.c.bf16 %v924, %v923
        %v956 = vpack.c.bf16 %v926, %v925
        %v957 = vpack.c.bf16 %v928, %v927
        %v958 = vpack.c.bf16 %v930, %v929
        %v959 = vpack.c.bf16 %v932, %v931
        %v960 = vpack.c.bf16 %v934, %v933
        %v961 = vpack.c.bf16 %v936, %v935
        %v962 = vpack.c.bf16 %v938, %v937
        %v963 = vpack.c.bf16 %v940, %v939
        %v964 = vpack.c.bf16 %v942, %v941
        %v965 = vpack.c.bf16 %v944, %v943
        %v966 = vpack.c.bf16 %v946, %v945
        %v967 = vpack.c.bf16 %v948, %v947
        %v968 = vpack.c.bf16 %v950, %v949
        %v969 = vpack.c.bf16 %v952, %v951
        %v970 = vpack.c.bf16 %v954, %v953
        %v987 = vunpack.c.l.b16 %v955
        %v988 = vunpack.c.h.b16 %v955
        %v989 = vunpack.c.l.b16 %v956
        %v990 = vunpack.c.h.b16 %v956
        %v991 = vunpack.c.l.b16 %v957
        %v992 = vunpack.c.h.b16 %v957
        %v993 = vunpack.c.l.b16 %v958
        %v994 = vunpack.c.h.b16 %v958
        %v995 = vunpack.c.l.b16 %v959
        %v996 = vunpack.c.h.b16 %v959
        %v997 = vunpack.c.l.b16 %v960
        %v998 = vunpack.c.h.b16 %v960
        %v999 = vunpack.c.l.b16 %v961
        %v1000 = vunpack.c.h.b16 %v961
        %v1001 = vunpack.c.l.b16 %v962
        %v1002 = vunpack.c.h.b16 %v962
        %v1003 = vunpack.c.l.b16 %v963
        %v1004 = vunpack.c.h.b16 %v963
        %v1005 = vunpack.c.l.b16 %v964
        %v1006 = vunpack.c.h.b16 %v964
        %v1007 = vunpack.c.l.b16 %v965
        %v1008 = vunpack.c.h.b16 %v965
        %v1009 = vunpack.c.l.b16 %v966
        %v1010 = vunpack.c.h.b16 %v966
        %v1011 = vunpack.c.l.b16 %v967
        %v1012 = vunpack.c.h.b16 %v967
        %v1013 = vunpack.c.l.b16 %v968
        %v1014 = vunpack.c.h.b16 %v968
        %v1015 = vunpack.c.l.b16 %v969
        %v1016 = vunpack.c.h.b16 %v969
        %v1017 = vunpack.c.l.b16 %v970
        %v1018 = vunpack.c.h.b16 %v970
        %v1019 = vpack.c.b16 %v987, %v987
        %v1020 = vpack.c.b16 %v988, %v988
        %v1021 = vpack.c.b16 %v989, %v989
        %v1022 = vpack.c.b16 %v990, %v990
        %v1023 = vpack.c.b16 %v991, %v991
        %v1024 = vpack.c.b16 %v992, %v992
        %v1025 = vpack.c.b16 %v993, %v993
        %v1026 = vpack.c.b16 %v994, %v994
        %v1027 = vpack.c.b16 %v995, %v995
        %v1028 = vpack.c.b16 %v996, %v996
        %v1029 = vpack.c.b16 %v997, %v997
        %v1030 = vpack.c.b16 %v998, %v998
        %v1031 = vpack.c.b16 %v999, %v999
        %v1032 = vpack.c.b16 %v1000, %v1000
        %v1033 = vpack.c.b16 %v1001, %v1001
        %v1034 = vpack.c.b16 %v1002, %v1002
        %v1035 = vpack.c.b16 %v1003, %v1003
        %v1036 = vpack.c.b16 %v1004, %v1004
        %v1037 = vpack.c.b16 %v1005, %v1005
        %v1038 = vpack.c.b16 %v1006, %v1006
        %v1039 = vpack.c.b16 %v1007, %v1007
        %v1040 = vpack.c.b16 %v1008, %v1008
        %v1041 = vpack.c.b16 %v1009, %v1009
        %v1042 = vpack.c.b16 %v1010, %v1010
        %v1043 = vpack.c.b16 %v1011, %v1011
        %v1044 = vpack.c.b16 %v1012, %v1012
        %v1045 = vpack.c.b16 %v1013, %v1013
        %v1046 = vpack.c.b16 %v1014, %v1014
        %v1047 = vpack.c.b16 %v1015, %v1015
        %v1048 = vpack.c.b16 %v1016, %v1016
        %v1049 = vpack.c.b16 %v1017, %v1017
        %v1050 = vpack.c.b16 %v1018, %v1018
        %1051 = vrot.lane.b32.xlu0 %v1019, 32
        %v1052 = vpop.permute.xlu0 %1051
        %1053 = vrot.lane.b32.xlu0 %v1020, 32
        %v1054 = vpop.permute.xlu0 %1053
        %1055 = vrot.lane.b32.xlu0 %v1021, 32
        %v1056 = vpop.permute.xlu0 %1055
        %1057 = vrot.lane.b32.xlu0 %v1022, 32
        %v1058 = vpop.permute.xlu0 %1057
        %1059 = vrot.lane.b32.xlu0 %v1023, 32
        %v1060 = vpop.permute.xlu0 %1059
        %1061 = vrot.lane.b32.xlu0 %v1024, 32
        %v1062 = vpop.permute.xlu0 %1061
        %1063 = vrot.lane.b32.xlu0 %v1025, 32
        %v1064 = vpop.permute.xlu0 %1063
        %1065 = vrot.lane.b32.xlu0 %v1026, 32
        %v1066 = vpop.permute.xlu0 %1065
        %1067 = vrot.lane.b32.xlu0 %v1027, 32
        %v1068 = vpop.permute.xlu0 %1067
        %1069 = vrot.lane.b32.xlu0 %v1028, 32
        %v1070 = vpop.permute.xlu0 %1069
        %1071 = vrot.lane.b32.xlu0 %v1029, 32
        %v1072 = vpop.permute.xlu0 %1071
        %1073 = vrot.lane.b32.xlu0 %v1030, 32
        %v1074 = vpop.permute.xlu0 %1073
        %1075 = vrot.lane.b32.xlu0 %v1031, 32
        %v1076 = vpop.permute.xlu0 %1075
        %1077 = vrot.lane.b32.xlu0 %v1032, 32
        %v1078 = vpop.permute.xlu0 %1077
        %1079 = vrot.lane.b32.xlu0 %v1033, 32
        %v1080 = vpop.permute.xlu0 %1079
        %1081 = vrot.lane.b32.xlu0 %v1034, 32
        %v1082 = vpop.permute.xlu0 %1081
        %1083 = vrot.lane.b32.xlu0 %v1035, 32
        %v1084 = vpop.permute.xlu0 %1083
        %1085 = vrot.lane.b32.xlu0 %v1036, 32
        %v1086 = vpop.permute.xlu0 %1085
        %1087 = vrot.lane.b32.xlu0 %v1037, 32
        %v1088 = vpop.permute.xlu0 %1087
        %1089 = vrot.lane.b32.xlu0 %v1038, 32
        %v1090 = vpop.permute.xlu0 %1089
        %1091 = vrot.lane.b32.xlu0 %v1039, 32
        %v1092 = vpop.permute.xlu0 %1091
        %1093 = vrot.lane.b32.xlu0 %v1040, 32
        %v1094 = vpop.permute.xlu0 %1093
        %1095 = vrot.lane.b32.xlu0 %v1041, 32
        %v1096 = vpop.permute.xlu0 %1095
        %1097 = vrot.lane.b32.xlu0 %v1042, 32
        %v1098 = vpop.permute.xlu0 %1097
        %1099 = vrot.lane.b32.xlu0 %v1043, 32
        %v1100 = vpop.permute.xlu0 %1099
        %1101 = vrot.lane.b32.xlu0 %v1044, 32
        %v1102 = vpop.permute.xlu0 %1101
        %1103 = vrot.lane.b32.xlu0 %v1045, 32
        %v1104 = vpop.permute.xlu0 %1103
        %1105 = vrot.lane.b32.xlu0 %v1046, 32
        %v1106 = vpop.permute.xlu0 %1105
        %1107 = vrot.lane.b32.xlu0 %v1047, 32
        %v1108 = vpop.permute.xlu0 %1107
        %1109 = vrot.lane.b32.xlu0 %v1048, 32
        %v1110 = vpop.permute.xlu0 %1109
        %1111 = vrot.lane.b32.xlu0 %v1049, 32
        %v1112 = vpop.permute.xlu0 %1111
        %1113 = vrot.lane.b32.xlu0 %v1050, 32
        %v1114 = vpop.permute.xlu0 %1113
        %vm1147 = vcmask 519424
        %1148 = vst.msk [vmem:[#allocation3] sm:$0xf] %vm1147, %v1052
        %1149 = vst.msk [vmem:[#allocation3 + $0xc] sm:$0xf] %vm1147, %v1054
        %1150 = vst.msk [vmem:[#allocation3 + $0x18] sm:$0xf] %vm1147, %v1056
        %1151 = vst.msk [vmem:[#allocation3 + $0x24] sm:$0xf] %vm1147, %v1058
        %1152 = vst.msk [vmem:[#allocation3 + $0x30] sm:$0xf] %vm1147, %v1060
        %1153 = vst.msk [vmem:[#allocation3 + $0x3c] sm:$0xf] %vm1147, %v1062
        %1154 = vst.msk [vmem:[#allocation3 + $0x48] sm:$0xf] %vm1147, %v1064
        %1155 = vst.msk [vmem:[#allocation3 + $0x54] sm:$0xf] %vm1147, %v1066
        %1156 = vst.msk [vmem:[#allocation3 + $0x60] sm:$0xf] %vm1147, %v1068
        %1157 = vst.msk [vmem:[#allocation3 + $0x6c] sm:$0xf] %vm1147, %v1070
        %1158 = vst.msk [vmem:[#allocation3 + $0x78] sm:$0xf] %vm1147, %v1072
        %1159 = vst.msk [vmem:[#allocation3 + $0x84] sm:$0xf] %vm1147, %v1074
        %1160 = vst.msk [vmem:[#allocation3 + $0x90] sm:$0xf] %vm1147, %v1076
        %1161 = vst.msk [vmem:[#allocation3 + $0x9c] sm:$0xf] %vm1147, %v1078
        %1162 = vst.msk [vmem:[#allocation3 + $0xa8] sm:$0xf] %vm1147, %v1080
        %1163 = vst.msk [vmem:[#allocation3 + $0xb4] sm:$0xf] %vm1147, %v1082
        %1164 = vst.msk [vmem:[#allocation3 + $0xc0] sm:$0xf] %vm1147, %v1084
        %1165 = vst.msk [vmem:[#allocation3 + $0xcc] sm:$0xf] %vm1147, %v1086
        %1166 = vst.msk [vmem:[#allocation3 + $0xd8] sm:$0xf] %vm1147, %v1088
        %1167 = vst.msk [vmem:[#allocation3 + $0xe4] sm:$0xf] %vm1147, %v1090
        %1168 = vst.msk [vmem:[#allocation3 + $0xf0] sm:$0xf] %vm1147, %v1092
        %1169 = vst.msk [vmem:[#allocation3 + $0xfc] sm:$0xf] %vm1147, %v1094
        %1170 = vst.msk [vmem:[#allocation3 + $0x108] sm:$0xf] %vm1147, %v1096
        %1171 = vst.msk [vmem:[#allocation3 + $0x114] sm:$0xf] %vm1147, %v1098
        %1172 = vst.msk [vmem:[#allocation3 + $0x120] sm:$0xf] %vm1147, %v1100
        %1173 = vst.msk [vmem:[#allocation3 + $0x12c] sm:$0xf] %vm1147, %v1102
        %1174 = vst.msk [vmem:[#allocation3 + $0x138] sm:$0xf] %vm1147, %v1104
        %1175 = vst.msk [vmem:[#allocation3 + $0x144] sm:$0xf] %vm1147, %v1106
        %1176 = vst.msk [vmem:[#allocation3 + $0x150] sm:$0xf] %vm1147, %v1108
        %1177 = vst.msk [vmem:[#allocation3 + $0x15c] sm:$0xf] %vm1147, %v1110
        %1178 = vst.msk [vmem:[#allocation3 + $0x168] sm:$0xf] %vm1147, %v1112
        %1179 = vst.msk [vmem:[#allocation3 + $0x174] sm:$0xf] %vm1147, %v1114
        %v1180 = vld [vmem:[#allocation2 + $0x2] sm:$0xff]
        %v1181 = vld [vmem:[#allocation2 + $0xa] sm:$0xff]
        %v1182 = vld [vmem:[#allocation2 + $0x1a] sm:$0xff]
        %v1183 = vld [vmem:[#allocation2 + $0x22] sm:$0xff]
        %v1184 = vld [vmem:[#allocation2 + $0x32] sm:$0xff]
        %v1185 = vld [vmem:[#allocation2 + $0x3a] sm:$0xff]
        %v1186 = vld [vmem:[#allocation2 + $0x4a] sm:$0xff]
        %v1187 = vld [vmem:[#allocation2 + $0x52] sm:$0xff]
        %v1188 = vld [vmem:[#allocation2 + $0x62] sm:$0xff]
        %v1189 = vld [vmem:[#allocation2 + $0x6a] sm:$0xff]
        %v1190 = vld [vmem:[#allocation2 + $0x7a] sm:$0xff]
        %v1191 = vld [vmem:[#allocation2 + $0x82] sm:$0xff]
        %v1192 = vld [vmem:[#allocation2 + $0x92] sm:$0xff]
        %v1193 = vld [vmem:[#allocation2 + $0x9a] sm:$0xff]
        %v1194 = vld [vmem:[#allocation2 + $0xaa] sm:$0xff]
        %v1195 = vld [vmem:[#allocation2 + $0xb2] sm:$0xff]
        %v1196 = vld [vmem:[#allocation2 + $0xc2] sm:$0xff]
        %v1197 = vld [vmem:[#allocation2 + $0xca] sm:$0xff]
        %v1198 = vld [vmem:[#allocation2 + $0xda] sm:$0xff]
        %v1199 = vld [vmem:[#allocation2 + $0xe2] sm:$0xff]
        %v1200 = vld [vmem:[#allocation2 + $0xf2] sm:$0xff]
        %v1201 = vld [vmem:[#allocation2 + $0xfa] sm:$0xff]
        %v1202 = vld [vmem:[#allocation2 + $0x10a] sm:$0xff]
        %v1203 = vld [vmem:[#allocation2 + $0x112] sm:$0xff]
        %v1204 = vld [vmem:[#allocation2 + $0x122] sm:$0xff]
        %v1205 = vld [vmem:[#allocation2 + $0x12a] sm:$0xff]
        %v1206 = vld [vmem:[#allocation2 + $0x13a] sm:$0xff]
        %v1207 = vld [vmem:[#allocation2 + $0x142] sm:$0xff]
        %v1208 = vld [vmem:[#allocation2 + $0x152] sm:$0xff]
        %v1209 = vld [vmem:[#allocation2 + $0x15a] sm:$0xff]
        %v1210 = vld [vmem:[#allocation2 + $0x16a] sm:$0xff]
        %v1211 = vld [vmem:[#allocation2 + $0x172] sm:$0xff]
        %v1212 = vpack.c.bf16 %v1181, %v1180
        %v1213 = vpack.c.bf16 %v1183, %v1182
        %v1214 = vpack.c.bf16 %v1185, %v1184
        %v1215 = vpack.c.bf16 %v1187, %v1186
        %v1216 = vpack.c.bf16 %v1189, %v1188
        %v1217 = vpack.c.bf16 %v1191, %v1190
        %v1218 = vpack.c.bf16 %v1193, %v1192
        %v1219 = vpack.c.bf16 %v1195, %v1194
        %v1220 = vpack.c.bf16 %v1197, %v1196
        %v1221 = vpack.c.bf16 %v1199, %v1198
        %v1222 = vpack.c.bf16 %v1201, %v1200
        %v1223 = vpack.c.bf16 %v1203, %v1202
        %v1224 = vpack.c.bf16 %v1205, %v1204
        %v1225 = vpack.c.bf16 %v1207, %v1206
        %v1226 = vpack.c.bf16 %v1209, %v1208
        %v1227 = vpack.c.bf16 %v1211, %v1210
        %v1244 = vunpack.c.l.b16 %v1212
        %v1245 = vunpack.c.h.b16 %v1212
        %v1246 = vunpack.c.l.b16 %v1213
        %v1247 = vunpack.c.h.b16 %v1213
        %v1248 = vunpack.c.l.b16 %v1214
        %v1249 = vunpack.c.h.b16 %v1214
        %v1250 = vunpack.c.l.b16 %v1215
        %v1251 = vunpack.c.h.b16 %v1215
        %v1252 = vunpack.c.l.b16 %v1216
        %v1253 = vunpack.c.h.b16 %v1216
        %v1254 = vunpack.c.l.b16 %v1217
        %v1255 = vunpack.c.h.b16 %v1217
        %v1256 = vunpack.c.l.b16 %v1218
        %v1257 = vunpack.c.h.b16 %v1218
        %v1258 = vunpack.c.l.b16 %v1219
        %v1259 = vunpack.c.h.b16 %v1219
        %v1260 = vunpack.c.l.b16 %v1220
        %v1261 = vunpack.c.h.b16 %v1220
        %v1262 = vunpack.c.l.b16 %v1221
        %v1263 = vunpack.c.h.b16 %v1221
        %v1264 = vunpack.c.l.b16 %v1222
        %v1265 = vunpack.c.h.b16 %v1222
        %v1266 = vunpack.c.l.b16 %v1223
        %v1267 = vunpack.c.h.b16 %v1223
        %v1268 = vunpack.c.l.b16 %v1224
        %v1269 = vunpack.c.h.b16 %v1224
        %v1270 = vunpack.c.l.b16 %v1225
        %v1271 = vunpack.c.h.b16 %v1225
        %v1272 = vunpack.c.l.b16 %v1226
        %v1273 = vunpack.c.h.b16 %v1226
        %v1274 = vunpack.c.l.b16 %v1227
        %v1275 = vunpack.c.h.b16 %v1227
        %v1276 = vpack.c.b16 %v1244, %v1244
        %v1277 = vpack.c.b16 %v1245, %v1245
        %v1278 = vpack.c.b16 %v1246, %v1246
        %v1279 = vpack.c.b16 %v1247, %v1247
        %v1280 = vpack.c.b16 %v1248, %v1248
        %v1281 = vpack.c.b16 %v1249, %v1249
        %v1282 = vpack.c.b16 %v1250, %v1250
        %v1283 = vpack.c.b16 %v1251, %v1251
        %v1284 = vpack.c.b16 %v1252, %v1252
        %v1285 = vpack.c.b16 %v1253, %v1253
        %v1286 = vpack.c.b16 %v1254, %v1254
        %v1287 = vpack.c.b16 %v1255, %v1255
        %v1288 = vpack.c.b16 %v1256, %v1256
        %v1289 = vpack.c.b16 %v1257, %v1257
        %v1290 = vpack.c.b16 %v1258, %v1258
        %v1291 = vpack.c.b16 %v1259, %v1259
        %v1292 = vpack.c.b16 %v1260, %v1260
        %v1293 = vpack.c.b16 %v1261, %v1261
        %v1294 = vpack.c.b16 %v1262, %v1262
        %v1295 = vpack.c.b16 %v1263, %v1263
        %v1296 = vpack.c.b16 %v1264, %v1264
        %v1297 = vpack.c.b16 %v1265, %v1265
        %v1298 = vpack.c.b16 %v1266, %v1266
        %v1299 = vpack.c.b16 %v1267, %v1267
        %v1300 = vpack.c.b16 %v1268, %v1268
        %v1301 = vpack.c.b16 %v1269, %v1269
        %v1302 = vpack.c.b16 %v1270, %v1270
        %v1303 = vpack.c.b16 %v1271, %v1271
        %v1304 = vpack.c.b16 %v1272, %v1272
        %v1305 = vpack.c.b16 %v1273, %v1273
        %v1306 = vpack.c.b16 %v1274, %v1274
        %v1307 = vpack.c.b16 %v1275, %v1275
        %1308 = vrot.lane.b32.xlu0 %v1276, 64
        %v1309 = vpop.permute.xlu0 %1308
        %1310 = vrot.lane.b32.xlu0 %v1277, 64
        %v1311 = vpop.permute.xlu0 %1310
        %1312 = vrot.lane.b32.xlu0 %v1278, 64
        %v1313 = vpop.permute.xlu0 %1312
        %1314 = vrot.lane.b32.xlu0 %v1279, 64
        %v1315 = vpop.permute.xlu0 %1314
        %1316 = vrot.lane.b32.xlu0 %v1280, 64
        %v1317 = vpop.permute.xlu0 %1316
        %1318 = vrot.lane.b32.xlu0 %v1281, 64
        %v1319 = vpop.permute.xlu0 %1318
        %1320 = vrot.lane.b32.xlu0 %v1282, 64
        %v1321 = vpop.permute.xlu0 %1320
        %1322 = vrot.lane.b32.xlu0 %v1283, 64
        %v1323 = vpop.permute.xlu0 %1322
        %1324 = vrot.lane.b32.xlu0 %v1284, 64
        %v1325 = vpop.permute.xlu0 %1324
        %1326 = vrot.lane.b32.xlu0 %v1285, 64
        %v1327 = vpop.permute.xlu0 %1326
        %1328 = vrot.lane.b32.xlu0 %v1286, 64
        %v1329 = vpop.permute.xlu0 %1328
        %1330 = vrot.lane.b32.xlu0 %v1287, 64
        %v1331 = vpop.permute.xlu0 %1330
        %1332 = vrot.lane.b32.xlu0 %v1288, 64
        %v1333 = vpop.permute.xlu0 %1332
        %1334 = vrot.lane.b32.xlu0 %v1289, 64
        %v1335 = vpop.permute.xlu0 %1334
        %1336 = vrot.lane.b32.xlu0 %v1290, 64
        %v1337 = vpop.permute.xlu0 %1336
        %1338 = vrot.lane.b32.xlu0 %v1291, 64
        %v1339 = vpop.permute.xlu0 %1338
        %1340 = vrot.lane.b32.xlu0 %v1292, 64
        %v1341 = vpop.permute.xlu0 %1340
        %1342 = vrot.lane.b32.xlu0 %v1293, 64
        %v1343 = vpop.permute.xlu0 %1342
        %1344 = vrot.lane.b32.xlu0 %v1294, 64
        %v1345 = vpop.permute.xlu0 %1344
        %1346 = vrot.lane.b32.xlu0 %v1295, 64
        %v1347 = vpop.permute.xlu0 %1346
        %1348 = vrot.lane.b32.xlu0 %v1296, 64
        %v1349 = vpop.permute.xlu0 %1348
        %1350 = vrot.lane.b32.xlu0 %v1297, 64
        %v1351 = vpop.permute.xlu0 %1350
        %1352 = vrot.lane.b32.xlu0 %v1298, 64
        %v1353 = vpop.permute.xlu0 %1352
        %1354 = vrot.lane.b32.xlu0 %v1299, 64
        %v1355 = vpop.permute.xlu0 %1354
        %1356 = vrot.lane.b32.xlu0 %v1300, 64
        %v1357 = vpop.permute.xlu0 %1356
        %1358 = vrot.lane.b32.xlu0 %v1301, 64
        %v1359 = vpop.permute.xlu0 %1358
        %1360 = vrot.lane.b32.xlu0 %v1302, 64
        %v1361 = vpop.permute.xlu0 %1360
        %1362 = vrot.lane.b32.xlu0 %v1303, 64
        %v1363 = vpop.permute.xlu0 %1362
        %1364 = vrot.lane.b32.xlu0 %v1304, 64
        %v1365 = vpop.permute.xlu0 %1364
        %1366 = vrot.lane.b32.xlu0 %v1305, 64
        %v1367 = vpop.permute.xlu0 %1366
        %1368 = vrot.lane.b32.xlu0 %v1306, 64
        %v1369 = vpop.permute.xlu0 %1368
        %1370 = vrot.lane.b32.xlu0 %v1307, 64
        %v1371 = vpop.permute.xlu0 %1370
        %vm1404 = vcmask 781824
        %1405 = vst.msk [vmem:[#allocation3] sm:$0xf] %vm1404, %v1309
        %1406 = vst.msk [vmem:[#allocation3 + $0xc] sm:$0xf] %vm1404, %v1311
        %1407 = vst.msk [vmem:[#allocation3 + $0x18] sm:$0xf] %vm1404, %v1313
        %1408 = vst.msk [vmem:[#allocation3 + $0x24] sm:$0xf] %vm1404, %v1315
        %1409 = vst.msk [vmem:[#allocation3 + $0x30] sm:$0xf] %vm1404, %v1317
        %1410 = vst.msk [vmem:[#allocation3 + $0x3c] sm:$0xf] %vm1404, %v1319
        %1411 = vst.msk [vmem:[#allocation3 + $0x48] sm:$0xf] %vm1404, %v1321
        %1412 = vst.msk [vmem:[#allocation3 + $0x54] sm:$0xf] %vm1404, %v1323
        %1413 = vst.msk [vmem:[#allocation3 + $0x60] sm:$0xf] %vm1404, %v1325
        %1414 = vst.msk [vmem:[#allocation3 + $0x6c] sm:$0xf] %vm1404, %v1327
        %1415 = vst.msk [vmem:[#allocation3 + $0x78] sm:$0xf] %vm1404, %v1329
        %1416 = vst.msk [vmem:[#allocation3 + $0x84] sm:$0xf] %vm1404, %v1331
        %1417 = vst.msk [vmem:[#allocation3 + $0x90] sm:$0xf] %vm1404, %v1333
        %1418 = vst.msk [vmem:[#allocation3 + $0x9c] sm:$0xf] %vm1404, %v1335
        %1419 = vst.msk [vmem:[#allocation3 + $0xa8] sm:$0xf] %vm1404, %v1337
        %1420 = vst.msk [vmem:[#allocation3 + $0xb4] sm:$0xf] %vm1404, %v1339
        %1421 = vst.msk [vmem:[#allocation3 + $0xc0] sm:$0xf] %vm1404, %v1341
        %1422 = vst.msk [vmem:[#allocation3 + $0xcc] sm:$0xf] %vm1404, %v1343
        %1423 = vst.msk [vmem:[#allocation3 + $0xd8] sm:$0xf] %vm1404, %v1345
        %1424 = vst.msk [vmem:[#allocation3 + $0xe4] sm:$0xf] %vm1404, %v1347
        %1425 = vst.msk [vmem:[#allocation3 + $0xf0] sm:$0xf] %vm1404, %v1349
        %1426 = vst.msk [vmem:[#allocation3 + $0xfc] sm:$0xf] %vm1404, %v1351
        %1427 = vst.msk [vmem:[#allocation3 + $0x108] sm:$0xf] %vm1404, %v1353
        %1428 = vst.msk [vmem:[#allocation3 + $0x114] sm:$0xf] %vm1404, %v1355
        %1429 = vst.msk [vmem:[#allocation3 + $0x120] sm:$0xf] %vm1404, %v1357
        %1430 = vst.msk [vmem:[#allocation3 + $0x12c] sm:$0xf] %vm1404, %v1359
        %1431 = vst.msk [vmem:[#allocation3 + $0x138] sm:$0xf] %vm1404, %v1361
        %1432 = vst.msk [vmem:[#allocation3 + $0x144] sm:$0xf] %vm1404, %v1363
        %1433 = vst.msk [vmem:[#allocation3 + $0x150] sm:$0xf] %vm1404, %v1365
        %1434 = vst.msk [vmem:[#allocation3 + $0x15c] sm:$0xf] %vm1404, %v1367
        %1435 = vst.msk [vmem:[#allocation3 + $0x168] sm:$0xf] %vm1404, %v1369
        %1436 = vst.msk [vmem:[#allocation3 + $0x174] sm:$0xf] %vm1404, %v1371
        %v1437 = vld [vmem:[%s697] sm:$0xff]
        %v1438 = vld [vmem:[%s697 + $0x8] sm:$0xff]
        %v1439 = vld [vmem:[%s697 + $0x18] sm:$0xff]
        %v1440 = vld [vmem:[%s697 + $0x20] sm:$0xff]
        %v1441 = vld [vmem:[%s697 + $0x30] sm:$0xff]
        %v1442 = vld [vmem:[%s697 + $0x38] sm:$0xff]
        %v1443 = vld [vmem:[%s697 + $0x48] sm:$0xff]
        %v1444 = vld [vmem:[%s697 + $0x50] sm:$0xff]
        %v1445 = vld [vmem:[%s697 + $0x60] sm:$0xff]
        %v1446 = vld [vmem:[%s697 + $0x68] sm:$0xff]
        %v1447 = vld [vmem:[%s697 + $0x78] sm:$0xff]
        %v1448 = vld [vmem:[%s697 + $0x80] sm:$0xff]
        %v1449 = vld [vmem:[%s697 + $0x90] sm:$0xff]
        %v1450 = vld [vmem:[%s697 + $0x98] sm:$0xff]
        %v1451 = vld [vmem:[%s697 + $0xa8] sm:$0xff]
        %v1452 = vld [vmem:[%s697 + $0xb0] sm:$0xff]
        %v1453 = vld [vmem:[%s697 + $0xc0] sm:$0xff]
        %v1454 = vld [vmem:[%s697 + $0xc8] sm:$0xff]
        %v1455 = vld [vmem:[%s697 + $0xd8] sm:$0xff]
        %v1456 = vld [vmem:[%s697 + $0xe0] sm:$0xff]
        %v1457 = vld [vmem:[%s697 + $0xf0] sm:$0xff]
        %v1458 = vld [vmem:[%s697 + $0xf8] sm:$0xff]
        %v1459 = vld [vmem:[%s697 + $0x108] sm:$0xff]
        %v1460 = vld [vmem:[%s697 + $0x110] sm:$0xff]
        %v1461 = vld [vmem:[%s697 + $0x120] sm:$0xff]
        %v1462 = vld [vmem:[%s697 + $0x128] sm:$0xff]
        %v1463 = vld [vmem:[%s697 + $0x138] sm:$0xff]
        %v1464 = vld [vmem:[%s697 + $0x140] sm:$0xff]
        %v1465 = vld [vmem:[%s697 + $0x150] sm:$0xff]
        %v1466 = vld [vmem:[%s697 + $0x158] sm:$0xff]
        %v1467 = vld [vmem:[%s697 + $0x168] sm:$0xff]
        %v1468 = vld [vmem:[%s697 + $0x170] sm:$0xff]
        %v1469 = vpack.c.bf16 %v1438, %v1437
        %v1470 = vpack.c.bf16 %v1440, %v1439
        %v1471 = vpack.c.bf16 %v1442, %v1441
        %v1472 = vpack.c.bf16 %v1444, %v1443
        %v1473 = vpack.c.bf16 %v1446, %v1445
        %v1474 = vpack.c.bf16 %v1448, %v1447
        %v1475 = vpack.c.bf16 %v1450, %v1449
        %v1476 = vpack.c.bf16 %v1452, %v1451
        %v1477 = vpack.c.bf16 %v1454, %v1453
        %v1478 = vpack.c.bf16 %v1456, %v1455
        %v1479 = vpack.c.bf16 %v1458, %v1457
        %v1480 = vpack.c.bf16 %v1460, %v1459
        %v1481 = vpack.c.bf16 %v1462, %v1461
        %v1482 = vpack.c.bf16 %v1464, %v1463
        %v1483 = vpack.c.bf16 %v1466, %v1465
        %v1484 = vpack.c.bf16 %v1468, %v1467
        %v1501 = vunpack.c.l.b16 %v1469
        %v1502 = vunpack.c.h.b16 %v1469
        %v1503 = vunpack.c.l.b16 %v1470
        %v1504 = vunpack.c.h.b16 %v1470
        %v1505 = vunpack.c.l.b16 %v1471
        %v1506 = vunpack.c.h.b16 %v1471
        %v1507 = vunpack.c.l.b16 %v1472
        %v1508 = vunpack.c.h.b16 %v1472
        %v1509 = vunpack.c.l.b16 %v1473
        %v1510 = vunpack.c.h.b16 %v1473
        %v1511 = vunpack.c.l.b16 %v1474
        %v1512 = vunpack.c.h.b16 %v1474
        %v1513 = vunpack.c.l.b16 %v1475
        %v1514 = vunpack.c.h.b16 %v1475
        %v1515 = vunpack.c.l.b16 %v1476
        %v1516 = vunpack.c.h.b16 %v1476
        %v1517 = vunpack.c.l.b16 %v1477
        %v1518 = vunpack.c.h.b16 %v1477
        %v1519 = vunpack.c.l.b16 %v1478
        %v1520 = vunpack.c.h.b16 %v1478
        %v1521 = vunpack.c.l.b16 %v1479
        %v1522 = vunpack.c.h.b16 %v1479
        %v1523 = vunpack.c.l.b16 %v1480
        %v1524 = vunpack.c.h.b16 %v1480
        %v1525 = vunpack.c.l.b16 %v1481
        %v1526 = vunpack.c.h.b16 %v1481
        %v1527 = vunpack.c.l.b16 %v1482
        %v1528 = vunpack.c.h.b16 %v1482
        %v1529 = vunpack.c.l.b16 %v1483
        %v1530 = vunpack.c.h.b16 %v1483
        %v1531 = vunpack.c.l.b16 %v1484
        %v1532 = vunpack.c.h.b16 %v1484
        %v1533 = vpack.c.b16 %v1501, %v1501
        %v1534 = vpack.c.b16 %v1502, %v1502
        %v1535 = vpack.c.b16 %v1503, %v1503
        %v1536 = vpack.c.b16 %v1504, %v1504
        %v1537 = vpack.c.b16 %v1505, %v1505
        %v1538 = vpack.c.b16 %v1506, %v1506
        %v1539 = vpack.c.b16 %v1507, %v1507
        %v1540 = vpack.c.b16 %v1508, %v1508
        %v1541 = vpack.c.b16 %v1509, %v1509
        %v1542 = vpack.c.b16 %v1510, %v1510
        %v1543 = vpack.c.b16 %v1511, %v1511
        %v1544 = vpack.c.b16 %v1512, %v1512
        %v1545 = vpack.c.b16 %v1513, %v1513
        %v1546 = vpack.c.b16 %v1514, %v1514
        %v1547 = vpack.c.b16 %v1515, %v1515
        %v1548 = vpack.c.b16 %v1516, %v1516
        %v1549 = vpack.c.b16 %v1517, %v1517
        %v1550 = vpack.c.b16 %v1518, %v1518
        %v1551 = vpack.c.b16 %v1519, %v1519
        %v1552 = vpack.c.b16 %v1520, %v1520
        %v1553 = vpack.c.b16 %v1521, %v1521
        %v1554 = vpack.c.b16 %v1522, %v1522
        %v1555 = vpack.c.b16 %v1523, %v1523
        %v1556 = vpack.c.b16 %v1524, %v1524
        %v1557 = vpack.c.b16 %v1525, %v1525
        %v1558 = vpack.c.b16 %v1526, %v1526
        %v1559 = vpack.c.b16 %v1527, %v1527
        %v1560 = vpack.c.b16 %v1528, %v1528
        %v1561 = vpack.c.b16 %v1529, %v1529
        %v1562 = vpack.c.b16 %v1530, %v1530
        %v1563 = vpack.c.b16 %v1531, %v1531
        %v1564 = vpack.c.b16 %v1532, %v1532
        %1565 = vrot.lane.b32.xlu0 %v1533, 96
        %v1566 = vpop.permute.xlu0 %1565
        %1567 = vrot.lane.b32.xlu0 %v1534, 96
        %v1568 = vpop.permute.xlu0 %1567
        %1569 = vrot.lane.b32.xlu0 %v1535, 96
        %v1570 = vpop.permute.xlu0 %1569
        %1571 = vrot.lane.b32.xlu0 %v1536, 96
        %v1572 = vpop.permute.xlu0 %1571
        %1573 = vrot.lane.b32.xlu0 %v1537, 96
        %v1574 = vpop.permute.xlu0 %1573
        %1575 = vrot.lane.b32.xlu0 %v1538, 96
        %v1576 = vpop.permute.xlu0 %1575
        %1577 = vrot.lane.b32.xlu0 %v1539, 96
        %v1578 = vpop.permute.xlu0 %1577
        %1579 = vrot.lane.b32.xlu0 %v1540, 96
        %v1580 = vpop.permute.xlu0 %1579
        %1581 = vrot.lane.b32.xlu0 %v1541, 96
        %v1582 = vpop.permute.xlu0 %1581
        %1583 = vrot.lane.b32.xlu0 %v1542, 96
        %v1584 = vpop.permute.xlu0 %1583
        %1585 = vrot.lane.b32.xlu0 %v1543, 96
        %v1586 = vpop.permute.xlu0 %1585
        %1587 = vrot.lane.b32.xlu0 %v1544, 96
        %v1588 = vpop.permute.xlu0 %1587
        %1589 = vrot.lane.b32.xlu0 %v1545, 96
        %v1590 = vpop.permute.xlu0 %1589
        %1591 = vrot.lane.b32.xlu0 %v1546, 96
        %v1592 = vpop.permute.xlu0 %1591
        %1593 = vrot.lane.b32.xlu0 %v1547, 96
        %v1594 = vpop.permute.xlu0 %1593
        %1595 = vrot.lane.b32.xlu0 %v1548, 96
        %v1596 = vpop.permute.xlu0 %1595
        %1597 = vrot.lane.b32.xlu0 %v1549, 96
        %v1598 = vpop.permute.xlu0 %1597
        %1599 = vrot.lane.b32.xlu0 %v1550, 96
        %v1600 = vpop.permute.xlu0 %1599
        %1601 = vrot.lane.b32.xlu0 %v1551, 96
        %v1602 = vpop.permute.xlu0 %1601
        %1603 = vrot.lane.b32.xlu0 %v1552, 96
        %v1604 = vpop.permute.xlu0 %1603
        %1605 = vrot.lane.b32.xlu0 %v1553, 96
        %v1606 = vpop.permute.xlu0 %1605
        %1607 = vrot.lane.b32.xlu0 %v1554, 96
        %v1608 = vpop.permute.xlu0 %1607
        %1609 = vrot.lane.b32.xlu0 %v1555, 96
        %v1610 = vpop.permute.xlu0 %1609
        %1611 = vrot.lane.b32.xlu0 %v1556, 96
        %v1612 = vpop.permute.xlu0 %1611
        %1613 = vrot.lane.b32.xlu0 %v1557, 96
        %v1614 = vpop.permute.xlu0 %1613
        %1615 = vrot.lane.b32.xlu0 %v1558, 96
        %v1616 = vpop.permute.xlu0 %1615
        %1617 = vrot.lane.b32.xlu0 %v1559, 96
        %v1618 = vpop.permute.xlu0 %1617
        %1619 = vrot.lane.b32.xlu0 %v1560, 96
        %v1620 = vpop.permute.xlu0 %1619
        %1621 = vrot.lane.b32.xlu0 %v1561, 96
        %v1622 = vpop.permute.xlu0 %1621
        %1623 = vrot.lane.b32.xlu0 %v1562, 96
        %v1624 = vpop.permute.xlu0 %1623
        %1625 = vrot.lane.b32.xlu0 %v1563, 96
        %v1626 = vpop.permute.xlu0 %1625
        %1627 = vrot.lane.b32.xlu0 %v1564, 96
        %v1628 = vpop.permute.xlu0 %1627
        %vm1661 = vcmask 1044224
        %1662 = vst.msk [vmem:[#allocation3] sm:$0xf] %vm1661, %v1566
        %1663 = vst.msk [vmem:[#allocation3 + $0xc] sm:$0xf] %vm1661, %v1568
        %1664 = vst.msk [vmem:[#allocation3 + $0x18] sm:$0xf] %vm1661, %v1570
        %1665 = vst.msk [vmem:[#allocation3 + $0x24] sm:$0xf] %vm1661, %v1572
        %1666 = vst.msk [vmem:[#allocation3 + $0x30] sm:$0xf] %vm1661, %v1574
        %1667 = vst.msk [vmem:[#allocation3 + $0x3c] sm:$0xf] %vm1661, %v1576
        %1668 = vst.msk [vmem:[#allocation3 + $0x48] sm:$0xf] %vm1661, %v1578
        %1669 = vst.msk [vmem:[#allocation3 + $0x54] sm:$0xf] %vm1661, %v1580
        %1670 = vst.msk [vmem:[#allocation3 + $0x60] sm:$0xf] %vm1661, %v1582
        %1671 = vst.msk [vmem:[#allocation3 + $0x6c] sm:$0xf] %vm1661, %v1584
        %1672 = vst.msk [vmem:[#allocation3 + $0x78] sm:$0xf] %vm1661, %v1586
        %1673 = vst.msk [vmem:[#allocation3 + $0x84] sm:$0xf] %vm1661, %v1588
        %1674 = vst.msk [vmem:[#allocation3 + $0x90] sm:$0xf] %vm1661, %v1590
        %1675 = vst.msk [vmem:[#allocation3 + $0x9c] sm:$0xf] %vm1661, %v1592
        %1676 = vst.msk [vmem:[#allocation3 + $0xa8] sm:$0xf] %vm1661, %v1594
        %1677 = vst.msk [vmem:[#allocation3 + $0xb4] sm:$0xf] %vm1661, %v1596
        %1678 = vst.msk [vmem:[#allocation3 + $0xc0] sm:$0xf] %vm1661, %v1598
        %1679 = vst.msk [vmem:[#allocation3 + $0xcc] sm:$0xf] %vm1661, %v1600
        %1680 = vst.msk [vmem:[#allocation3 + $0xd8] sm:$0xf] %vm1661, %v1602
        %1681 = vst.msk [vmem:[#allocation3 + $0xe4] sm:$0xf] %vm1661, %v1604
        %1682 = vst.msk [vmem:[#allocation3 + $0xf0] sm:$0xf] %vm1661, %v1606
        %1683 = vst.msk [vmem:[#allocation3 + $0xfc] sm:$0xf] %vm1661, %v1608
        %1684 = vst.msk [vmem:[#allocation3 + $0x108] sm:$0xf] %vm1661, %v1610
        %1685 = vst.msk [vmem:[#allocation3 + $0x114] sm:$0xf] %vm1661, %v1612
        %1686 = vst.msk [vmem:[#allocation3 + $0x120] sm:$0xf] %vm1661, %v1614
        %1687 = vst.msk [vmem:[#allocation3 + $0x12c] sm:$0xf] %vm1661, %v1616
        %1688 = vst.msk [vmem:[#allocation3 + $0x138] sm:$0xf] %vm1661, %v1618
        %1689 = vst.msk [vmem:[#allocation3 + $0x144] sm:$0xf] %vm1661, %v1620
        %1690 = vst.msk [vmem:[#allocation3 + $0x150] sm:$0xf] %vm1661, %v1622
        %1691 = vst.msk [vmem:[#allocation3 + $0x15c] sm:$0xf] %vm1661, %v1624
        %1692 = vst.msk [vmem:[#allocation3 + $0x168] sm:$0xf] %vm1661, %v1626
        %1693 = vst.msk [vmem:[#allocation3 + $0x174] sm:$0xf] %vm1661, %v1628
        %v1694 = vld [vmem:[%s697 + $0x1] sm:$0xff]
        %v1695 = vld [vmem:[%s697 + $0x9] sm:$0xff]
        %v1696 = vld [vmem:[%s697 + $0x19] sm:$0xff]
        %v1697 = vld [vmem:[%s697 + $0x21] sm:$0xff]
        %v1698 = vld [vmem:[%s697 + $0x31] sm:$0xff]
        %v1699 = vld [vmem:[%s697 + $0x39] sm:$0xff]
        %v1700 = vld [vmem:[%s697 + $0x49] sm:$0xff]
        %v1701 = vld [vmem:[%s697 + $0x51] sm:$0xff]
        %v1702 = vld [vmem:[%s697 + $0x61] sm:$0xff]
        %v1703 = vld [vmem:[%s697 + $0x69] sm:$0xff]
        %v1704 = vld [vmem:[%s697 + $0x79] sm:$0xff]
        %v1705 = vld [vmem:[%s697 + $0x81] sm:$0xff]
        %v1706 = vld [vmem:[%s697 + $0x91] sm:$0xff]
        %v1707 = vld [vmem:[%s697 + $0x99] sm:$0xff]
        %v1708 = vld [vmem:[%s697 + $0xa9] sm:$0xff]
        %v1709 = vld [vmem:[%s697 + $0xb1] sm:$0xff]
        %v1710 = vld [vmem:[%s697 + $0xc1] sm:$0xff]
        %v1711 = vld [vmem:[%s697 + $0xc9] sm:$0xff]
        %v1712 = vld [vmem:[%s697 + $0xd9] sm:$0xff]
        %v1713 = vld [vmem:[%s697 + $0xe1] sm:$0xff]
        %v1714 = vld [vmem:[%s697 + $0xf1] sm:$0xff]
        %v1715 = vld [vmem:[%s697 + $0xf9] sm:$0xff]
        %v1716 = vld [vmem:[%s697 + $0x109] sm:$0xff]
        %v1717 = vld [vmem:[%s697 + $0x111] sm:$0xff]
        %v1718 = vld [vmem:[%s697 + $0x121] sm:$0xff]
        %v1719 = vld [vmem:[%s697 + $0x129] sm:$0xff]
        %v1720 = vld [vmem:[%s697 + $0x139] sm:$0xff]
        %v1721 = vld [vmem:[%s697 + $0x141] sm:$0xff]
        %v1722 = vld [vmem:[%s697 + $0x151] sm:$0xff]
        %v1723 = vld [vmem:[%s697 + $0x159] sm:$0xff]
        %v1724 = vld [vmem:[%s697 + $0x169] sm:$0xff]
        %v1725 = vld [vmem:[%s697 + $0x171] sm:$0xff]
        %v1726 = vpack.c.bf16 %v1695, %v1694
        %v1727 = vpack.c.bf16 %v1697, %v1696
        %v1728 = vpack.c.bf16 %v1699, %v1698
        %v1729 = vpack.c.bf16 %v1701, %v1700
        %v1730 = vpack.c.bf16 %v1703, %v1702
        %v1731 = vpack.c.bf16 %v1705, %v1704
        %v1732 = vpack.c.bf16 %v1707, %v1706
        %v1733 = vpack.c.bf16 %v1709, %v1708
        %v1734 = vpack.c.bf16 %v1711, %v1710
        %v1735 = vpack.c.bf16 %v1713, %v1712
        %v1736 = vpack.c.bf16 %v1715, %v1714
        %v1737 = vpack.c.bf16 %v1717, %v1716
        %v1738 = vpack.c.bf16 %v1719, %v1718
        %v1739 = vpack.c.bf16 %v1721, %v1720
        %v1740 = vpack.c.bf16 %v1723, %v1722
        %v1741 = vpack.c.bf16 %v1725, %v1724
        %v1758 = vunpack.c.l.b16 %v1726
        %v1759 = vunpack.c.h.b16 %v1726
        %v1760 = vunpack.c.l.b16 %v1727
        %v1761 = vunpack.c.h.b16 %v1727
        %v1762 = vunpack.c.l.b16 %v1728
        %v1763 = vunpack.c.h.b16 %v1728
        %v1764 = vunpack.c.l.b16 %v1729
        %v1765 = vunpack.c.h.b16 %v1729
        %v1766 = vunpack.c.l.b16 %v1730
        %v1767 = vunpack.c.h.b16 %v1730
        %v1768 = vunpack.c.l.b16 %v1731
        %v1769 = vunpack.c.h.b16 %v1731
        %v1770 = vunpack.c.l.b16 %v1732
        %v1771 = vunpack.c.h.b16 %v1732
        %v1772 = vunpack.c.l.b16 %v1733
        %v1773 = vunpack.c.h.b16 %v1733
        %v1774 = vunpack.c.l.b16 %v1734
        %v1775 = vunpack.c.h.b16 %v1734
        %v1776 = vunpack.c.l.b16 %v1735
        %v1777 = vunpack.c.h.b16 %v1735
        %v1778 = vunpack.c.l.b16 %v1736
        %v1779 = vunpack.c.h.b16 %v1736
        %v1780 = vunpack.c.l.b16 %v1737
        %v1781 = vunpack.c.h.b16 %v1737
        %v1782 = vunpack.c.l.b16 %v1738
        %v1783 = vunpack.c.h.b16 %v1738
        %v1784 = vunpack.c.l.b16 %v1739
        %v1785 = vunpack.c.h.b16 %v1739
        %v1786 = vunpack.c.l.b16 %v1740
        %v1787 = vunpack.c.h.b16 %v1740
        %v1788 = vunpack.c.l.b16 %v1741
        %v1789 = vunpack.c.h.b16 %v1741
        %v1790 = vpack.c.b16 %v1758, %v1758
        %v1791 = vpack.c.b16 %v1759, %v1759
        %v1792 = vpack.c.b16 %v1760, %v1760
        %v1793 = vpack.c.b16 %v1761, %v1761
        %v1794 = vpack.c.b16 %v1762, %v1762
        %v1795 = vpack.c.b16 %v1763, %v1763
        %v1796 = vpack.c.b16 %v1764, %v1764
        %v1797 = vpack.c.b16 %v1765, %v1765
        %v1798 = vpack.c.b16 %v1766, %v1766
        %v1799 = vpack.c.b16 %v1767, %v1767
        %v1800 = vpack.c.b16 %v1768, %v1768
        %v1801 = vpack.c.b16 %v1769, %v1769
        %v1802 = vpack.c.b16 %v1770, %v1770
        %v1803 = vpack.c.b16 %v1771, %v1771
        %v1804 = vpack.c.b16 %v1772, %v1772
        %v1805 = vpack.c.b16 %v1773, %v1773
        %v1806 = vpack.c.b16 %v1774, %v1774
        %v1807 = vpack.c.b16 %v1775, %v1775
        %v1808 = vpack.c.b16 %v1776, %v1776
        %v1809 = vpack.c.b16 %v1777, %v1777
        %v1810 = vpack.c.b16 %v1778, %v1778
        %v1811 = vpack.c.b16 %v1779, %v1779
        %v1812 = vpack.c.b16 %v1780, %v1780
        %v1813 = vpack.c.b16 %v1781, %v1781
        %v1814 = vpack.c.b16 %v1782, %v1782
        %v1815 = vpack.c.b16 %v1783, %v1783
        %v1816 = vpack.c.b16 %v1784, %v1784
        %v1817 = vpack.c.b16 %v1785, %v1785
        %v1818 = vpack.c.b16 %v1786, %v1786
        %v1819 = vpack.c.b16 %v1787, %v1787
        %v1820 = vpack.c.b16 %v1788, %v1788
        %v1821 = vpack.c.b16 %v1789, %v1789
        %1854 = vst.msk [vmem:[#allocation3 + $0x4] sm:$0xf] %vm890, %v1790
        %1855 = vst.msk [vmem:[#allocation3 + $0x10] sm:$0xf] %vm890, %v1791
        %1856 = vst.msk [vmem:[#allocation3 + $0x1c] sm:$0xf] %vm890, %v1792
        %1857 = vst.msk [vmem:[#allocation3 + $0x28] sm:$0xf] %vm890, %v1793
        %1858 = vst.msk [vmem:[#allocation3 + $0x34] sm:$0xf] %vm890, %v1794
        %1859 = vst.msk [vmem:[#allocation3 + $0x40] sm:$0xf] %vm890, %v1795
        %1860 = vst.msk [vmem:[#allocation3 + $0x4c] sm:$0xf] %vm890, %v1796
        %1861 = vst.msk [vmem:[#allocation3 + $0x58] sm:$0xf] %vm890, %v1797
        %1862 = vst.msk [vmem:[#allocation3 + $0x64] sm:$0xf] %vm890, %v1798
        %1863 = vst.msk [vmem:[#allocation3 + $0x70] sm:$0xf] %vm890, %v1799
        %1864 = vst.msk [vmem:[#allocation3 + $0x7c] sm:$0xf] %vm890, %v1800
        %1865 = vst.msk [vmem:[#allocation3 + $0x88] sm:$0xf] %vm890, %v1801
        %1866 = vst.msk [vmem:[#allocation3 + $0x94] sm:$0xf] %vm890, %v1802
        %1867 = vst.msk [vmem:[#allocation3 + $0xa0] sm:$0xf] %vm890, %v1803
        %1868 = vst.msk [vmem:[#allocation3 + $0xac] sm:$0xf] %vm890, %v1804
        %1869 = vst.msk [vmem:[#allocation3 + $0xb8] sm:$0xf] %vm890, %v1805
        %1870 = vst.msk [vmem:[#allocation3 + $0xc4] sm:$0xf] %vm890, %v1806
        %1871 = vst.msk [vmem:[#allocation3 + $0xd0] sm:$0xf] %vm890, %v1807
        %1872 = vst.msk [vmem:[#allocation3 + $0xdc] sm:$0xf] %vm890, %v1808
        %1873 = vst.msk [vmem:[#allocation3 + $0xe8] sm:$0xf] %vm890, %v1809
        %1874 = vst.msk [vmem:[#allocation3 + $0xf4] sm:$0xf] %vm890, %v1810
        %1875 = vst.msk [vmem:[#allocation3 + $0x100] sm:$0xf] %vm890, %v1811
        %1876 = vst.msk [vmem:[#allocation3 + $0x10c] sm:$0xf] %vm890, %v1812
        %1877 = vst.msk [vmem:[#allocation3 + $0x118] sm:$0xf] %vm890, %v1813
        %1878 = vst.msk [vmem:[#allocation3 + $0x124] sm:$0xf] %vm890, %v1814
        %1879 = vst.msk [vmem:[#allocation3 + $0x130] sm:$0xf] %vm890, %v1815
        %1880 = vst.msk [vmem:[#allocation3 + $0x13c] sm:$0xf] %vm890, %v1816
        %1881 = vst.msk [vmem:[#allocation3 + $0x148] sm:$0xf] %vm890, %v1817
        %1882 = vst.msk [vmem:[#allocation3 + $0x154] sm:$0xf] %vm890, %v1818
        %1883 = vst.msk [vmem:[#allocation3 + $0x160] sm:$0xf] %vm890, %v1819
        %1884 = vst.msk [vmem:[#allocation3 + $0x16c] sm:$0xf] %vm890, %v1820
        %1885 = vst.msk [vmem:[#allocation3 + $0x178] sm:$0xf] %vm890, %v1821
        %v1886 = vld [vmem:[%s697 + $0x2] sm:$0xff]
        %v1887 = vld [vmem:[%s697 + $0xa] sm:$0xff]
        %v1888 = vld [vmem:[%s697 + $0x1a] sm:$0xff]
        %v1889 = vld [vmem:[%s697 + $0x22] sm:$0xff]
        %v1890 = vld [vmem:[%s697 + $0x32] sm:$0xff]
        %v1891 = vld [vmem:[%s697 + $0x3a] sm:$0xff]
        %v1892 = vld [vmem:[%s697 + $0x4a] sm:$0xff]
        %v1893 = vld [vmem:[%s697 + $0x52] sm:$0xff]
        %v1894 = vld [vmem:[%s697 + $0x62] sm:$0xff]
        %v1895 = vld [vmem:[%s697 + $0x6a] sm:$0xff]
        %v1896 = vld [vmem:[%s697 + $0x7a] sm:$0xff]
        %v1897 = vld [vmem:[%s697 + $0x82] sm:$0xff]
        %v1898 = vld [vmem:[%s697 + $0x92] sm:$0xff]
        %v1899 = vld [vmem:[%s697 + $0x9a] sm:$0xff]
        %v1900 = vld [vmem:[%s697 + $0xaa] sm:$0xff]
        %v1901 = vld [vmem:[%s697 + $0xb2] sm:$0xff]
        %v1902 = vld [vmem:[%s697 + $0xc2] sm:$0xff]
        %v1903 = vld [vmem:[%s697 + $0xca] sm:$0xff]
        %v1904 = vld [vmem:[%s697 + $0xda] sm:$0xff]
        %v1905 = vld [vmem:[%s697 + $0xe2] sm:$0xff]
        %v1906 = vld [vmem:[%s697 + $0xf2] sm:$0xff]
        %v1907 = vld [vmem:[%s697 + $0xfa] sm:$0xff]
        %v1908 = vld [vmem:[%s697 + $0x10a] sm:$0xff]
        %v1909 = vld [vmem:[%s697 + $0x112] sm:$0xff]
        %v1910 = vld [vmem:[%s697 + $0x122] sm:$0xff]
        %v1911 = vld [vmem:[%s697 + $0x12a] sm:$0xff]
        %v1912 = vld [vmem:[%s697 + $0x13a] sm:$0xff]
        %v1913 = vld [vmem:[%s697 + $0x142] sm:$0xff]
        %v1914 = vld [vmem:[%s697 + $0x152] sm:$0xff]
        %v1915 = vld [vmem:[%s697 + $0x15a] sm:$0xff]
        %v1916 = vld [vmem:[%s697 + $0x16a] sm:$0xff]
        %v1917 = vld [vmem:[%s697 + $0x172] sm:$0xff]
        %v1918 = vpack.c.bf16 %v1887, %v1886
        %v1919 = vpack.c.bf16 %v1889, %v1888
        %v1920 = vpack.c.bf16 %v1891, %v1890
        %v1921 = vpack.c.bf16 %v1893, %v1892
        %v1922 = vpack.c.bf16 %v1895, %v1894
        %v1923 = vpack.c.bf16 %v1897, %v1896
        %v1924 = vpack.c.bf16 %v1899, %v1898
        %v1925 = vpack.c.bf16 %v1901, %v1900
        %v1926 = vpack.c.bf16 %v1903, %v1902
        %v1927 = vpack.c.bf16 %v1905, %v1904
        %v1928 = vpack.c.bf16 %v1907, %v1906
        %v1929 = vpack.c.bf16 %v1909, %v1908
        %v1930 = vpack.c.bf16 %v1911, %v1910
        %v1931 = vpack.c.bf16 %v1913, %v1912
        %v1932 = vpack.c.bf16 %v1915, %v1914
        %v1933 = vpack.c.bf16 %v1917, %v1916
        %v1950 = vunpack.c.l.b16 %v1918
        %v1951 = vunpack.c.h.b16 %v1918
        %v1952 = vunpack.c.l.b16 %v1919
        %v1953 = vunpack.c.h.b16 %v1919
        %v1954 = vunpack.c.l.b16 %v1920
        %v1955 = vunpack.c.h.b16 %v1920
        %v1956 = vunpack.c.l.b16 %v1921
        %v1957 = vunpack.c.h.b16 %v1921
        %v1958 = vunpack.c.l.b16 %v1922
        %v1959 = vunpack.c.h.b16 %v1922
        %v1960 = vunpack.c.l.b16 %v1923
        %v1961 = vunpack.c.h.b16 %v1923
        %v1962 = vunpack.c.l.b16 %v1924
        %v1963 = vunpack.c.h.b16 %v1924
        %v1964 = vunpack.c.l.b16 %v1925
        %v1965 = vunpack.c.h.b16 %v1925
        %v1966 = vunpack.c.l.b16 %v1926
        %v1967 = vunpack.c.h.b16 %v1926
        %v1968 = vunpack.c.l.b16 %v1927
        %v1969 = vunpack.c.h.b16 %v1927
        %v1970 = vunpack.c.l.b16 %v1928
        %v1971 = vunpack.c.h.b16 %v1928
        %v1972 = vunpack.c.l.b16 %v1929
        %v1973 = vunpack.c.h.b16 %v1929
        %v1974 = vunpack.c.l.b16 %v1930
        %v1975 = vunpack.c.h.b16 %v1930
        %v1976 = vunpack.c.l.b16 %v1931
        %v1977 = vunpack.c.h.b16 %v1931
        %v1978 = vunpack.c.l.b16 %v1932
        %v1979 = vunpack.c.h.b16 %v1932
        %v1980 = vunpack.c.l.b16 %v1933
        %v1981 = vunpack.c.h.b16 %v1933
        %v1982 = vpack.c.b16 %v1950, %v1950
        %v1983 = vpack.c.b16 %v1951, %v1951
        %v1984 = vpack.c.b16 %v1952, %v1952
        %v1985 = vpack.c.b16 %v1953, %v1953
        %v1986 = vpack.c.b16 %v1954, %v1954
        %v1987 = vpack.c.b16 %v1955, %v1955
        %v1988 = vpack.c.b16 %v1956, %v1956
        %v1989 = vpack.c.b16 %v1957, %v1957
        %v1990 = vpack.c.b16 %v1958, %v1958
        %v1991 = vpack.c.b16 %v1959, %v1959
        %v1992 = vpack.c.b16 %v1960, %v1960
        %v1993 = vpack.c.b16 %v1961, %v1961
        %v1994 = vpack.c.b16 %v1962, %v1962
        %v1995 = vpack.c.b16 %v1963, %v1963
        %v1996 = vpack.c.b16 %v1964, %v1964
        %v1997 = vpack.c.b16 %v1965, %v1965
        %v1998 = vpack.c.b16 %v1966, %v1966
        %v1999 = vpack.c.b16 %v1967, %v1967
        %v2000 = vpack.c.b16 %v1968, %v1968
        %v2001 = vpack.c.b16 %v1969, %v1969
        %v2002 = vpack.c.b16 %v1970, %v1970
        %v2003 = vpack.c.b16 %v1971, %v1971
        %v2004 = vpack.c.b16 %v1972, %v1972
        %v2005 = vpack.c.b16 %v1973, %v1973
        %v2006 = vpack.c.b16 %v1974, %v1974
        %v2007 = vpack.c.b16 %v1975, %v1975
        %v2008 = vpack.c.b16 %v1976, %v1976
        %v2009 = vpack.c.b16 %v1977, %v1977
        %v2010 = vpack.c.b16 %v1978, %v1978
        %v2011 = vpack.c.b16 %v1979, %v1979
        %v2012 = vpack.c.b16 %v1980, %v1980
        %v2013 = vpack.c.b16 %v1981, %v1981
        %2014 = vrot.lane.b32.xlu0 %v1982, 32
        %v2015 = vpop.permute.xlu0 %2014
        %2016 = vrot.lane.b32.xlu0 %v1983, 32
        %v2017 = vpop.permute.xlu0 %2016
        %2018 = vrot.lane.b32.xlu0 %v1984, 32
        %v2019 = vpop.permute.xlu0 %2018
        %2020 = vrot.lane.b32.xlu0 %v1985, 32
        %v2021 = vpop.permute.xlu0 %2020
        %2022 = vrot.lane.b32.xlu0 %v1986, 32
        %v2023 = vpop.permute.xlu0 %2022
        %2024 = vrot.lane.b32.xlu0 %v1987, 32
        %v2025 = vpop.permute.xlu0 %2024
        %2026 = vrot.lane.b32.xlu0 %v1988, 32
        %v2027 = vpop.permute.xlu0 %2026
        %2028 = vrot.lane.b32.xlu0 %v1989, 32
        %v2029 = vpop.permute.xlu0 %2028
        %2030 = vrot.lane.b32.xlu0 %v1990, 32
        %v2031 = vpop.permute.xlu0 %2030
        %2032 = vrot.lane.b32.xlu0 %v1991, 32
        %v2033 = vpop.permute.xlu0 %2032
        %2034 = vrot.lane.b32.xlu0 %v1992, 32
        %v2035 = vpop.permute.xlu0 %2034
        %2036 = vrot.lane.b32.xlu0 %v1993, 32
        %v2037 = vpop.permute.xlu0 %2036
        %2038 = vrot.lane.b32.xlu0 %v1994, 32
        %v2039 = vpop.permute.xlu0 %2038
        %2040 = vrot.lane.b32.xlu0 %v1995, 32
        %v2041 = vpop.permute.xlu0 %2040
        %2042 = vrot.lane.b32.xlu0 %v1996, 32
        %v2043 = vpop.permute.xlu0 %2042
        %2044 = vrot.lane.b32.xlu0 %v1997, 32
        %v2045 = vpop.permute.xlu0 %2044
        %2046 = vrot.lane.b32.xlu0 %v1998, 32
        %v2047 = vpop.permute.xlu0 %2046
        %2048 = vrot.lane.b32.xlu0 %v1999, 32
        %v2049 = vpop.permute.xlu0 %2048
        %2050 = vrot.lane.b32.xlu0 %v2000, 32
        %v2051 = vpop.permute.xlu0 %2050
        %2052 = vrot.lane.b32.xlu0 %v2001, 32
        %v2053 = vpop.permute.xlu0 %2052
        %2054 = vrot.lane.b32.xlu0 %v2002, 32
        %v2055 = vpop.permute.xlu0 %2054
        %2056 = vrot.lane.b32.xlu0 %v2003, 32
        %v2057 = vpop.permute.xlu0 %2056
        %2058 = vrot.lane.b32.xlu0 %v2004, 32
        %v2059 = vpop.permute.xlu0 %2058
        %2060 = vrot.lane.b32.xlu0 %v2005, 32
        %v2061 = vpop.permute.xlu0 %2060
        %2062 = vrot.lane.b32.xlu0 %v2006, 32
        %v2063 = vpop.permute.xlu0 %2062
        %2064 = vrot.lane.b32.xlu0 %v2007, 32
        %v2065 = vpop.permute.xlu0 %2064
        %2066 = vrot.lane.b32.xlu0 %v2008, 32
        %v2067 = vpop.permute.xlu0 %2066
        %2068 = vrot.lane.b32.xlu0 %v2009, 32
        %v2069 = vpop.permute.xlu0 %2068
        %2070 = vrot.lane.b32.xlu0 %v2010, 32
        %v2071 = vpop.permute.xlu0 %2070
        %2072 = vrot.lane.b32.xlu0 %v2011, 32
        %v2073 = vpop.permute.xlu0 %2072
        %2074 = vrot.lane.b32.xlu0 %v2012, 32
        %v2075 = vpop.permute.xlu0 %2074
        %2076 = vrot.lane.b32.xlu0 %v2013, 32
        %v2077 = vpop.permute.xlu0 %2076
        %2110 = vst.msk [vmem:[#allocation3 + $0x4] sm:$0xf] %vm1147, %v2015
        %2111 = vst.msk [vmem:[#allocation3 + $0x10] sm:$0xf] %vm1147, %v2017
        %2112 = vst.msk [vmem:[#allocation3 + $0x1c] sm:$0xf] %vm1147, %v2019
        %2113 = vst.msk [vmem:[#allocation3 + $0x28] sm:$0xf] %vm1147, %v2021
        %2114 = vst.msk [vmem:[#allocation3 + $0x34] sm:$0xf] %vm1147, %v2023
        %2115 = vst.msk [vmem:[#allocation3 + $0x40] sm:$0xf] %vm1147, %v2025
        %2116 = vst.msk [vmem:[#allocation3 + $0x4c] sm:$0xf] %vm1147, %v2027
        %2117 = vst.msk [vmem:[#allocation3 + $0x58] sm:$0xf] %vm1147, %v2029
        %2118 = vst.msk [vmem:[#allocation3 + $0x64] sm:$0xf] %vm1147, %v2031
        %2119 = vst.msk [vmem:[#allocation3 + $0x70] sm:$0xf] %vm1147, %v2033
        %2120 = vst.msk [vmem:[#allocation3 + $0x7c] sm:$0xf] %vm1147, %v2035
        %2121 = vst.msk [vmem:[#allocation3 + $0x88] sm:$0xf] %vm1147, %v2037
        %2122 = vst.msk [vmem:[#allocation3 + $0x94] sm:$0xf] %vm1147, %v2039
        %2123 = vst.msk [vmem:[#allocation3 + $0xa0] sm:$0xf] %vm1147, %v2041
        %2124 = vst.msk [vmem:[#allocation3 + $0xac] sm:$0xf] %vm1147, %v2043
        %2125 = vst.msk [vmem:[#allocation3 + $0xb8] sm:$0xf] %vm1147, %v2045
        %2126 = vst.msk [vmem:[#allocation3 + $0xc4] sm:$0xf] %vm1147, %v2047
        %2127 = vst.msk [vmem:[#allocation3 + $0xd0] sm:$0xf] %vm1147, %v2049
        %2128 = vst.msk [vmem:[#allocation3 + $0xdc] sm:$0xf] %vm1147, %v2051
        %2129 = vst.msk [vmem:[#allocation3 + $0xe8] sm:$0xf] %vm1147, %v2053
        %2130 = vst.msk [vmem:[#allocation3 + $0xf4] sm:$0xf] %vm1147, %v2055
        %2131 = vst.msk [vmem:[#allocation3 + $0x100] sm:$0xf] %vm1147, %v2057
        %2132 = vst.msk [vmem:[#allocation3 + $0x10c] sm:$0xf] %vm1147, %v2059
        %2133 = vst.msk [vmem:[#allocation3 + $0x118] sm:$0xf] %vm1147, %v2061
        %2134 = vst.msk [vmem:[#allocation3 + $0x124] sm:$0xf] %vm1147, %v2063
        %2135 = vst.msk [vmem:[#allocation3 + $0x130] sm:$0xf] %vm1147, %v2065
        %2136 = vst.msk [vmem:[#allocation3 + $0x13c] sm:$0xf] %vm1147, %v2067
        %2137 = vst.msk [vmem:[#allocation3 + $0x148] sm:$0xf] %vm1147, %v2069
        %2138 = vst.msk [vmem:[#allocation3 + $0x154] sm:$0xf] %vm1147, %v2071
        %2139 = vst.msk [vmem:[#allocation3 + $0x160] sm:$0xf] %vm1147, %v2073
        %2140 = vst.msk [vmem:[#allocation3 + $0x16c] sm:$0xf] %vm1147, %v2075
        %2141 = vst.msk [vmem:[#allocation3 + $0x178] sm:$0xf] %vm1147, %v2077
        %s2142 = scalar_lea.vmem [#allocation2], 48
        %v2143 = vld [vmem:[%s2142] sm:$0xff]
        %v2144 = vld [vmem:[%s2142 + $0x8] sm:$0xff]
        %v2145 = vld [vmem:[%s2142 + $0x18] sm:$0xff]
        %v2146 = vld [vmem:[%s2142 + $0x20] sm:$0xff]
        %v2147 = vld [vmem:[%s2142 + $0x30] sm:$0xff]
        %v2148 = vld [vmem:[%s2142 + $0x38] sm:$0xff]
        %v2149 = vld [vmem:[%s2142 + $0x48] sm:$0xff]
        %v2150 = vld [vmem:[%s2142 + $0x50] sm:$0xff]
        %v2151 = vld [vmem:[%s2142 + $0x60] sm:$0xff]
        %v2152 = vld [vmem:[%s2142 + $0x68] sm:$0xff]
        %v2153 = vld [vmem:[%s2142 + $0x78] sm:$0xff]
        %v2154 = vld [vmem:[%s2142 + $0x80] sm:$0xff]
        %v2155 = vld [vmem:[%s2142 + $0x90] sm:$0xff]
        %v2156 = vld [vmem:[%s2142 + $0x98] sm:$0xff]
        %v2157 = vld [vmem:[%s2142 + $0xa8] sm:$0xff]
        %v2158 = vld [vmem:[%s2142 + $0xb0] sm:$0xff]
        %v2159 = vld [vmem:[%s2142 + $0xc0] sm:$0xff]
        %v2160 = vld [vmem:[%s2142 + $0xc8] sm:$0xff]
        %v2161 = vld [vmem:[%s2142 + $0xd8] sm:$0xff]
        %v2162 = vld [vmem:[%s2142 + $0xe0] sm:$0xff]
        %v2163 = vld [vmem:[%s2142 + $0xf0] sm:$0xff]
        %v2164 = vld [vmem:[%s2142 + $0xf8] sm:$0xff]
        %v2165 = vld [vmem:[%s2142 + $0x108] sm:$0xff]
        %v2166 = vld [vmem:[%s2142 + $0x110] sm:$0xff]
        %v2167 = vld [vmem:[%s2142 + $0x120] sm:$0xff]
        %v2168 = vld [vmem:[%s2142 + $0x128] sm:$0xff]
        %v2169 = vld [vmem:[%s2142 + $0x138] sm:$0xff]
        %v2170 = vld [vmem:[%s2142 + $0x140] sm:$0xff]
        %v2171 = vld [vmem:[%s2142 + $0x150] sm:$0xff]
        %v2172 = vld [vmem:[%s2142 + $0x158] sm:$0xff]
        %v2173 = vld [vmem:[%s2142 + $0x168] sm:$0xff]
        %v2174 = vld [vmem:[%s2142 + $0x170] sm:$0xff]
        %v2175 = vpack.c.bf16 %v2144, %v2143
        %v2176 = vpack.c.bf16 %v2146, %v2145
        %v2177 = vpack.c.bf16 %v2148, %v2147
        %v2178 = vpack.c.bf16 %v2150, %v2149
        %v2179 = vpack.c.bf16 %v2152, %v2151
        %v2180 = vpack.c.bf16 %v2154, %v2153
        %v2181 = vpack.c.bf16 %v2156, %v2155
        %v2182 = vpack.c.bf16 %v2158, %v2157
        %v2183 = vpack.c.bf16 %v2160, %v2159
        %v2184 = vpack.c.bf16 %v2162, %v2161
        %v2185 = vpack.c.bf16 %v2164, %v2163
        %v2186 = vpack.c.bf16 %v2166, %v2165
        %v2187 = vpack.c.bf16 %v2168, %v2167
        %v2188 = vpack.c.bf16 %v2170, %v2169
        %v2189 = vpack.c.bf16 %v2172, %v2171
        %v2190 = vpack.c.bf16 %v2174, %v2173
        %v2207 = vunpack.c.l.b16 %v2175
        %v2208 = vunpack.c.h.b16 %v2175
        %v2209 = vunpack.c.l.b16 %v2176
        %v2210 = vunpack.c.h.b16 %v2176
        %v2211 = vunpack.c.l.b16 %v2177
        %v2212 = vunpack.c.h.b16 %v2177
        %v2213 = vunpack.c.l.b16 %v2178
        %v2214 = vunpack.c.h.b16 %v2178
        %v2215 = vunpack.c.l.b16 %v2179
        %v2216 = vunpack.c.h.b16 %v2179
        %v2217 = vunpack.c.l.b16 %v2180
        %v2218 = vunpack.c.h.b16 %v2180
        %v2219 = vunpack.c.l.b16 %v2181
        %v2220 = vunpack.c.h.b16 %v2181
        %v2221 = vunpack.c.l.b16 %v2182
        %v2222 = vunpack.c.h.b16 %v2182
        %v2223 = vunpack.c.l.b16 %v2183
        %v2224 = vunpack.c.h.b16 %v2183
        %v2225 = vunpack.c.l.b16 %v2184
        %v2226 = vunpack.c.h.b16 %v2184
        %v2227 = vunpack.c.l.b16 %v2185
        %v2228 = vunpack.c.h.b16 %v2185
        %v2229 = vunpack.c.l.b16 %v2186
        %v2230 = vunpack.c.h.b16 %v2186
        %v2231 = vunpack.c.l.b16 %v2187
        %v2232 = vunpack.c.h.b16 %v2187
        %v2233 = vunpack.c.l.b16 %v2188
        %v2234 = vunpack.c.h.b16 %v2188
        %v2235 = vunpack.c.l.b16 %v2189
        %v2236 = vunpack.c.h.b16 %v2189
        %v2237 = vunpack.c.l.b16 %v2190
        %v2238 = vunpack.c.h.b16 %v2190
        %v2239 = vpack.c.b16 %v2207, %v2207
        %v2240 = vpack.c.b16 %v2208, %v2208
        %v2241 = vpack.c.b16 %v2209, %v2209
        %v2242 = vpack.c.b16 %v2210, %v2210
        %v2243 = vpack.c.b16 %v2211, %v2211
        %v2244 = vpack.c.b16 %v2212, %v2212
        %v2245 = vpack.c.b16 %v2213, %v2213
        %v2246 = vpack.c.b16 %v2214, %v2214
        %v2247 = vpack.c.b16 %v2215, %v2215
        %v2248 = vpack.c.b16 %v2216, %v2216
        %v2249 = vpack.c.b16 %v2217, %v2217
        %v2250 = vpack.c.b16 %v2218, %v2218
        %v2251 = vpack.c.b16 %v2219, %v2219
        %v2252 = vpack.c.b16 %v2220, %v2220
        %v2253 = vpack.c.b16 %v2221, %v2221
        %v2254 = vpack.c.b16 %v2222, %v2222
        %v2255 = vpack.c.b16 %v2223, %v2223
        %v2256 = vpack.c.b16 %v2224, %v2224
        %v2257 = vpack.c.b16 %v2225, %v2225
        %v2258 = vpack.c.b16 %v2226, %v2226
        %v2259 = vpack.c.b16 %v2227, %v2227
        %v2260 = vpack.c.b16 %v2228, %v2228
        %v2261 = vpack.c.b16 %v2229, %v2229
        %v2262 = vpack.c.b16 %v2230, %v2230
        %v2263 = vpack.c.b16 %v2231, %v2231
        %v2264 = vpack.c.b16 %v2232, %v2232
        %v2265 = vpack.c.b16 %v2233, %v2233
        %v2266 = vpack.c.b16 %v2234, %v2234
        %v2267 = vpack.c.b16 %v2235, %v2235
        %v2268 = vpack.c.b16 %v2236, %v2236
        %v2269 = vpack.c.b16 %v2237, %v2237
        %v2270 = vpack.c.b16 %v2238, %v2238
        %2271 = vrot.lane.b32.xlu0 %v2239, 64
        %v2272 = vpop.permute.xlu0 %2271
        %2273 = vrot.lane.b32.xlu0 %v2240, 64
        %v2274 = vpop.permute.xlu0 %2273
        %2275 = vrot.lane.b32.xlu0 %v2241, 64
        %v2276 = vpop.permute.xlu0 %2275
        %2277 = vrot.lane.b32.xlu0 %v2242, 64
        %v2278 = vpop.permute.xlu0 %2277
        %2279 = vrot.lane.b32.xlu0 %v2243, 64
        %v2280 = vpop.permute.xlu0 %2279
        %2281 = vrot.lane.b32.xlu0 %v2244, 64
        %v2282 = vpop.permute.xlu0 %2281
        %2283 = vrot.lane.b32.xlu0 %v2245, 64
        %v2284 = vpop.permute.xlu0 %2283
        %2285 = vrot.lane.b32.xlu0 %v2246, 64
        %v2286 = vpop.permute.xlu0 %2285
        %2287 = vrot.lane.b32.xlu0 %v2247, 64
        %v2288 = vpop.permute.xlu0 %2287
        %2289 = vrot.lane.b32.xlu0 %v2248, 64
        %v2290 = vpop.permute.xlu0 %2289
        %2291 = vrot.lane.b32.xlu0 %v2249, 64
        %v2292 = vpop.permute.xlu0 %2291
        %2293 = vrot.lane.b32.xlu0 %v2250, 64
        %v2294 = vpop.permute.xlu0 %2293
        %2295 = vrot.lane.b32.xlu0 %v2251, 64
        %v2296 = vpop.permute.xlu0 %2295
        %2297 = vrot.lane.b32.xlu0 %v2252, 64
        %v2298 = vpop.permute.xlu0 %2297
        %2299 = vrot.lane.b32.xlu0 %v2253, 64
        %v2300 = vpop.permute.xlu0 %2299
        %2301 = vrot.lane.b32.xlu0 %v2254, 64
        %v2302 = vpop.permute.xlu0 %2301
        %2303 = vrot.lane.b32.xlu0 %v2255, 64
        %v2304 = vpop.permute.xlu0 %2303
        %2305 = vrot.lane.b32.xlu0 %v2256, 64
        %v2306 = vpop.permute.xlu0 %2305
        %2307 = vrot.lane.b32.xlu0 %v2257, 64
        %v2308 = vpop.permute.xlu0 %2307
        %2309 = vrot.lane.b32.xlu0 %v2258, 64
        %v2310 = vpop.permute.xlu0 %2309
        %2311 = vrot.lane.b32.xlu0 %v2259, 64
        %v2312 = vpop.permute.xlu0 %2311
        %2313 = vrot.lane.b32.xlu0 %v2260, 64
        %v2314 = vpop.permute.xlu0 %2313
        %2315 = vrot.lane.b32.xlu0 %v2261, 64
        %v2316 = vpop.permute.xlu0 %2315
        %2317 = vrot.lane.b32.xlu0 %v2262, 64
        %v2318 = vpop.permute.xlu0 %2317
        %2319 = vrot.lane.b32.xlu0 %v2263, 64
        %v2320 = vpop.permute.xlu0 %2319
        %2321 = vrot.lane.b32.xlu0 %v2264, 64
        %v2322 = vpop.permute.xlu0 %2321
        %2323 = vrot.lane.b32.xlu0 %v2265, 64
        %v2324 = vpop.permute.xlu0 %2323
        %2325 = vrot.lane.b32.xlu0 %v2266, 64
        %v2326 = vpop.permute.xlu0 %2325
        %2327 = vrot.lane.b32.xlu0 %v2267, 64
        %v2328 = vpop.permute.xlu0 %2327
        %2329 = vrot.lane.b32.xlu0 %v2268, 64
        %v2330 = vpop.permute.xlu0 %2329
        %2331 = vrot.lane.b32.xlu0 %v2269, 64
        %v2332 = vpop.permute.xlu0 %2331
        %2333 = vrot.lane.b32.xlu0 %v2270, 64
        %v2334 = vpop.permute.xlu0 %2333
        %2367 = vst.msk [vmem:[#allocation3 + $0x4] sm:$0xf] %vm1404, %v2272
        %2368 = vst.msk [vmem:[#allocation3 + $0x10] sm:$0xf] %vm1404, %v2274
        %2369 = vst.msk [vmem:[#allocation3 + $0x1c] sm:$0xf] %vm1404, %v2276
        %2370 = vst.msk [vmem:[#allocation3 + $0x28] sm:$0xf] %vm1404, %v2278
        %2371 = vst.msk [vmem:[#allocation3 + $0x34] sm:$0xf] %vm1404, %v2280
        %2372 = vst.msk [vmem:[#allocation3 + $0x40] sm:$0xf] %vm1404, %v2282
        %2373 = vst.msk [vmem:[#allocation3 + $0x4c] sm:$0xf] %vm1404, %v2284
        %2374 = vst.msk [vmem:[#allocation3 + $0x58] sm:$0xf] %vm1404, %v2286
        %2375 = vst.msk [vmem:[#allocation3 + $0x64] sm:$0xf] %vm1404, %v2288
        %2376 = vst.msk [vmem:[#allocation3 + $0x70] sm:$0xf] %vm1404, %v2290
        %2377 = vst.msk [vmem:[#allocation3 + $0x7c] sm:$0xf] %vm1404, %v2292
        %2378 = vst.msk [vmem:[#allocation3 + $0x88] sm:$0xf] %vm1404, %v2294
        %2379 = vst.msk [vmem:[#allocation3 + $0x94] sm:$0xf] %vm1404, %v2296
        %2380 = vst.msk [vmem:[#allocation3 + $0xa0] sm:$0xf] %vm1404, %v2298
        %2381 = vst.msk [vmem:[#allocation3 + $0xac] sm:$0xf] %vm1404, %v2300
        %2382 = vst.msk [vmem:[#allocation3 + $0xb8] sm:$0xf] %vm1404, %v2302
        %2383 = vst.msk [vmem:[#allocation3 + $0xc4] sm:$0xf] %vm1404, %v2304
        %2384 = vst.msk [vmem:[#allocation3 + $0xd0] sm:$0xf] %vm1404, %v2306
        %2385 = vst.msk [vmem:[#allocation3 + $0xdc] sm:$0xf] %vm1404, %v2308
        %2386 = vst.msk [vmem:[#allocation3 + $0xe8] sm:$0xf] %vm1404, %v2310
        %2387 = vst.msk [vmem:[#allocation3 + $0xf4] sm:$0xf] %vm1404, %v2312
        %2388 = vst.msk [vmem:[#allocation3 + $0x100] sm:$0xf] %vm1404, %v2314
        %2389 = vst.msk [vmem:[#allocation3 + $0x10c] sm:$0xf] %vm1404, %v2316
        %2390 = vst.msk [vmem:[#allocation3 + $0x118] sm:$0xf] %vm1404, %v2318
        %2391 = vst.msk [vmem:[#allocation3 + $0x124] sm:$0xf] %vm1404, %v2320
        %2392 = vst.msk [vmem:[#allocation3 + $0x130] sm:$0xf] %vm1404, %v2322
        %2393 = vst.msk [vmem:[#allocation3 + $0x13c] sm:$0xf] %vm1404, %v2324
        %2394 = vst.msk [vmem:[#allocation3 + $0x148] sm:$0xf] %vm1404, %v2326
        %2395 = vst.msk [vmem:[#allocation3 + $0x154] sm:$0xf] %vm1404, %v2328
        %2396 = vst.msk [vmem:[#allocation3 + $0x160] sm:$0xf] %vm1404, %v2330
        %2397 = vst.msk [vmem:[#allocation3 + $0x16c] sm:$0xf] %vm1404, %v2332
        %2398 = vst.msk [vmem:[#allocation3 + $0x178] sm:$0xf] %vm1404, %v2334
        %v2399 = vld [vmem:[%s2142 + $0x1] sm:$0xff]
        %v2400 = vld [vmem:[%s2142 + $0x9] sm:$0xff]
        %v2401 = vld [vmem:[%s2142 + $0x19] sm:$0xff]
        %v2402 = vld [vmem:[%s2142 + $0x21] sm:$0xff]
        %v2403 = vld [vmem:[%s2142 + $0x31] sm:$0xff]
        %v2404 = vld [vmem:[%s2142 + $0x39] sm:$0xff]
        %v2405 = vld [vmem:[%s2142 + $0x49] sm:$0xff]
        %v2406 = vld [vmem:[%s2142 + $0x51] sm:$0xff]
        %v2407 = vld [vmem:[%s2142 + $0x61] sm:$0xff]
        %v2408 = vld [vmem:[%s2142 + $0x69] sm:$0xff]
        %v2409 = vld [vmem:[%s2142 + $0x79] sm:$0xff]
        %v2410 = vld [vmem:[%s2142 + $0x81] sm:$0xff]
        %v2411 = vld [vmem:[%s2142 + $0x91] sm:$0xff]
        %v2412 = vld [vmem:[%s2142 + $0x99] sm:$0xff]
        %v2413 = vld [vmem:[%s2142 + $0xa9] sm:$0xff]
        %v2414 = vld [vmem:[%s2142 + $0xb1] sm:$0xff]
        %v2415 = vld [vmem:[%s2142 + $0xc1] sm:$0xff]
        %v2416 = vld [vmem:[%s2142 + $0xc9] sm:$0xff]
        %v2417 = vld [vmem:[%s2142 + $0xd9] sm:$0xff]
        %v2418 = vld [vmem:[%s2142 + $0xe1] sm:$0xff]
        %v2419 = vld [vmem:[%s2142 + $0xf1] sm:$0xff]
        %v2420 = vld [vmem:[%s2142 + $0xf9] sm:$0xff]
        %v2421 = vld [vmem:[%s2142 + $0x109] sm:$0xff]
        %v2422 = vld [vmem:[%s2142 + $0x111] sm:$0xff]
        %v2423 = vld [vmem:[%s2142 + $0x121] sm:$0xff]
        %v2424 = vld [vmem:[%s2142 + $0x129] sm:$0xff]
        %v2425 = vld [vmem:[%s2142 + $0x139] sm:$0xff]
        %v2426 = vld [vmem:[%s2142 + $0x141] sm:$0xff]
        %v2427 = vld [vmem:[%s2142 + $0x151] sm:$0xff]
        %v2428 = vld [vmem:[%s2142 + $0x159] sm:$0xff]
        %v2429 = vld [vmem:[%s2142 + $0x169] sm:$0xff]
        %v2430 = vld [vmem:[%s2142 + $0x171] sm:$0xff]
        %v2431 = vpack.c.bf16 %v2400, %v2399
        %v2432 = vpack.c.bf16 %v2402, %v2401
        %v2433 = vpack.c.bf16 %v2404, %v2403
        %v2434 = vpack.c.bf16 %v2406, %v2405
        %v2435 = vpack.c.bf16 %v2408, %v2407
        %v2436 = vpack.c.bf16 %v2410, %v2409
        %v2437 = vpack.c.bf16 %v2412, %v2411
        %v2438 = vpack.c.bf16 %v2414, %v2413
        %v2439 = vpack.c.bf16 %v2416, %v2415
        %v2440 = vpack.c.bf16 %v2418, %v2417
        %v2441 = vpack.c.bf16 %v2420, %v2419
        %v2442 = vpack.c.bf16 %v2422, %v2421
        %v2443 = vpack.c.bf16 %v2424, %v2423
        %v2444 = vpack.c.bf16 %v2426, %v2425
        %v2445 = vpack.c.bf16 %v2428, %v2427
        %v2446 = vpack.c.bf16 %v2430, %v2429
        %v2463 = vunpack.c.l.b16 %v2431
        %v2464 = vunpack.c.h.b16 %v2431
        %v2465 = vunpack.c.l.b16 %v2432
        %v2466 = vunpack.c.h.b16 %v2432
        %v2467 = vunpack.c.l.b16 %v2433
        %v2468 = vunpack.c.h.b16 %v2433
        %v2469 = vunpack.c.l.b16 %v2434
        %v2470 = vunpack.c.h.b16 %v2434
        %v2471 = vunpack.c.l.b16 %v2435
        %v2472 = vunpack.c.h.b16 %v2435
        %v2473 = vunpack.c.l.b16 %v2436
        %v2474 = vunpack.c.h.b16 %v2436
        %v2475 = vunpack.c.l.b16 %v2437
        %v2476 = vunpack.c.h.b16 %v2437
        %v2477 = vunpack.c.l.b16 %v2438
        %v2478 = vunpack.c.h.b16 %v2438
        %v2479 = vunpack.c.l.b16 %v2439
        %v2480 = vunpack.c.h.b16 %v2439
        %v2481 = vunpack.c.l.b16 %v2440
        %v2482 = vunpack.c.h.b16 %v2440
        %v2483 = vunpack.c.l.b16 %v2441
        %v2484 = vunpack.c.h.b16 %v2441
        %v2485 = vunpack.c.l.b16 %v2442
        %v2486 = vunpack.c.h.b16 %v2442
        %v2487 = vunpack.c.l.b16 %v2443
        %v2488 = vunpack.c.h.b16 %v2443
        %v2489 = vunpack.c.l.b16 %v2444
        %v2490 = vunpack.c.h.b16 %v2444
        %v2491 = vunpack.c.l.b16 %v2445
        %v2492 = vunpack.c.h.b16 %v2445
        %v2493 = vunpack.c.l.b16 %v2446
        %v2494 = vunpack.c.h.b16 %v2446
        %v2495 = vpack.c.b16 %v2463, %v2463
        %v2496 = vpack.c.b16 %v2464, %v2464
        %v2497 = vpack.c.b16 %v2465, %v2465
        %v2498 = vpack.c.b16 %v2466, %v2466
        %v2499 = vpack.c.b16 %v2467, %v2467
        %v2500 = vpack.c.b16 %v2468, %v2468
        %v2501 = vpack.c.b16 %v2469, %v2469
        %v2502 = vpack.c.b16 %v2470, %v2470
        %v2503 = vpack.c.b16 %v2471, %v2471
        %v2504 = vpack.c.b16 %v2472, %v2472
        %v2505 = vpack.c.b16 %v2473, %v2473
        %v2506 = vpack.c.b16 %v2474, %v2474
        %v2507 = vpack.c.b16 %v2475, %v2475
        %v2508 = vpack.c.b16 %v2476, %v2476
        %v2509 = vpack.c.b16 %v2477, %v2477
        %v2510 = vpack.c.b16 %v2478, %v2478
        %v2511 = vpack.c.b16 %v2479, %v2479
        %v2512 = vpack.c.b16 %v2480, %v2480
        %v2513 = vpack.c.b16 %v2481, %v2481
        %v2514 = vpack.c.b16 %v2482, %v2482
        %v2515 = vpack.c.b16 %v2483, %v2483
        %v2516 = vpack.c.b16 %v2484, %v2484
        %v2517 = vpack.c.b16 %v2485, %v2485
        %v2518 = vpack.c.b16 %v2486, %v2486
        %v2519 = vpack.c.b16 %v2487, %v2487
        %v2520 = vpack.c.b16 %v2488, %v2488
        %v2521 = vpack.c.b16 %v2489, %v2489
        %v2522 = vpack.c.b16 %v2490, %v2490
        %v2523 = vpack.c.b16 %v2491, %v2491
        %v2524 = vpack.c.b16 %v2492, %v2492
        %v2525 = vpack.c.b16 %v2493, %v2493
        %v2526 = vpack.c.b16 %v2494, %v2494
        %2527 = vrot.lane.b32.xlu0 %v2495, 96
        %v2528 = vpop.permute.xlu0 %2527
        %2529 = vrot.lane.b32.xlu0 %v2496, 96
        %v2530 = vpop.permute.xlu0 %2529
        %2531 = vrot.lane.b32.xlu0 %v2497, 96
        %v2532 = vpop.permute.xlu0 %2531
        %2533 = vrot.lane.b32.xlu0 %v2498, 96
        %v2534 = vpop.permute.xlu0 %2533
        %2535 = vrot.lane.b32.xlu0 %v2499, 96
        %v2536 = vpop.permute.xlu0 %2535
        %2537 = vrot.lane.b32.xlu0 %v2500, 96
        %v2538 = vpop.permute.xlu0 %2537
        %2539 = vrot.lane.b32.xlu0 %v2501, 96
        %v2540 = vpop.permute.xlu0 %2539
        %2541 = vrot.lane.b32.xlu0 %v2502, 96
        %v2542 = vpop.permute.xlu0 %2541
        %2543 = vrot.lane.b32.xlu0 %v2503, 96
        %v2544 = vpop.permute.xlu0 %2543
        %2545 = vrot.lane.b32.xlu0 %v2504, 96
        %v2546 = vpop.permute.xlu0 %2545
        %2547 = vrot.lane.b32.xlu0 %v2505, 96
        %v2548 = vpop.permute.xlu0 %2547
        %2549 = vrot.lane.b32.xlu0 %v2506, 96
        %v2550 = vpop.permute.xlu0 %2549
        %2551 = vrot.lane.b32.xlu0 %v2507, 96
        %v2552 = vpop.permute.xlu0 %2551
        %2553 = vrot.lane.b32.xlu0 %v2508, 96
        %v2554 = vpop.permute.xlu0 %2553
        %2555 = vrot.lane.b32.xlu0 %v2509, 96
        %v2556 = vpop.permute.xlu0 %2555
        %2557 = vrot.lane.b32.xlu0 %v2510, 96
        %v2558 = vpop.permute.xlu0 %2557
        %2559 = vrot.lane.b32.xlu0 %v2511, 96
        %v2560 = vpop.permute.xlu0 %2559
        %2561 = vrot.lane.b32.xlu0 %v2512, 96
        %v2562 = vpop.permute.xlu0 %2561
        %2563 = vrot.lane.b32.xlu0 %v2513, 96
        %v2564 = vpop.permute.xlu0 %2563
        %2565 = vrot.lane.b32.xlu0 %v2514, 96
        %v2566 = vpop.permute.xlu0 %2565
        %2567 = vrot.lane.b32.xlu0 %v2515, 96
        %v2568 = vpop.permute.xlu0 %2567
        %2569 = vrot.lane.b32.xlu0 %v2516, 96
        %v2570 = vpop.permute.xlu0 %2569
        %2571 = vrot.lane.b32.xlu0 %v2517, 96
        %v2572 = vpop.permute.xlu0 %2571
        %2573 = vrot.lane.b32.xlu0 %v2518, 96
        %v2574 = vpop.permute.xlu0 %2573
        %2575 = vrot.lane.b32.xlu0 %v2519, 96
        %v2576 = vpop.permute.xlu0 %2575
        %2577 = vrot.lane.b32.xlu0 %v2520, 96
        %v2578 = vpop.permute.xlu0 %2577
        %2579 = vrot.lane.b32.xlu0 %v2521, 96
        %v2580 = vpop.permute.xlu0 %2579
        %2581 = vrot.lane.b32.xlu0 %v2522, 96
        %v2582 = vpop.permute.xlu0 %2581
        %2583 = vrot.lane.b32.xlu0 %v2523, 96
        %v2584 = vpop.permute.xlu0 %2583
        %2585 = vrot.lane.b32.xlu0 %v2524, 96
        %v2586 = vpop.permute.xlu0 %2585
        %2587 = vrot.lane.b32.xlu0 %v2525, 96
        %v2588 = vpop.permute.xlu0 %2587
        %2589 = vrot.lane.b32.xlu0 %v2526, 96
        %v2590 = vpop.permute.xlu0 %2589
        %2623 = vst.msk [vmem:[#allocation3 + $0x4] sm:$0xf] %vm1661, %v2528
        %2624 = vst.msk [vmem:[#allocation3 + $0x10] sm:$0xf] %vm1661, %v2530
        %2625 = vst.msk [vmem:[#allocation3 + $0x1c] sm:$0xf] %vm1661, %v2532
        %2626 = vst.msk [vmem:[#allocation3 + $0x28] sm:$0xf] %vm1661, %v2534
        %2627 = vst.msk [vmem:[#allocation3 + $0x34] sm:$0xf] %vm1661, %v2536
        %2628 = vst.msk [vmem:[#allocation3 + $0x40] sm:$0xf] %vm1661, %v2538
        %2629 = vst.msk [vmem:[#allocation3 + $0x4c] sm:$0xf] %vm1661, %v2540
        %2630 = vst.msk [vmem:[#allocation3 + $0x58] sm:$0xf] %vm1661, %v2542
        %2631 = vst.msk [vmem:[#allocation3 + $0x64] sm:$0xf] %vm1661, %v2544
        %2632 = vst.msk [vmem:[#allocation3 + $0x70] sm:$0xf] %vm1661, %v2546
        %2633 = vst.msk [vmem:[#allocation3 + $0x7c] sm:$0xf] %vm1661, %v2548
        %2634 = vst.msk [vmem:[#allocation3 + $0x88] sm:$0xf] %vm1661, %v2550
        %2635 = vst.msk [vmem:[#allocation3 + $0x94] sm:$0xf] %vm1661, %v2552
        %2636 = vst.msk [vmem:[#allocation3 + $0xa0] sm:$0xf] %vm1661, %v2554
        %2637 = vst.msk [vmem:[#allocation3 + $0xac] sm:$0xf] %vm1661, %v2556
        %2638 = vst.msk [vmem:[#allocation3 + $0xb8] sm:$0xf] %vm1661, %v2558
        %2639 = vst.msk [vmem:[#allocation3 + $0xc4] sm:$0xf] %vm1661, %v2560
        %2640 = vst.msk [vmem:[#allocation3 + $0xd0] sm:$0xf] %vm1661, %v2562
        %2641 = vst.msk [vmem:[#allocation3 + $0xdc] sm:$0xf] %vm1661, %v2564
        %2642 = vst.msk [vmem:[#allocation3 + $0xe8] sm:$0xf] %vm1661, %v2566
        %2643 = vst.msk [vmem:[#allocation3 + $0xf4] sm:$0xf] %vm1661, %v2568
        %2644 = vst.msk [vmem:[#allocation3 + $0x100] sm:$0xf] %vm1661, %v2570
        %2645 = vst.msk [vmem:[#allocation3 + $0x10c] sm:$0xf] %vm1661, %v2572
        %2646 = vst.msk [vmem:[#allocation3 + $0x118] sm:$0xf] %vm1661, %v2574
        %2647 = vst.msk [vmem:[#allocation3 + $0x124] sm:$0xf] %vm1661, %v2576
        %2648 = vst.msk [vmem:[#allocation3 + $0x130] sm:$0xf] %vm1661, %v2578
        %2649 = vst.msk [vmem:[#allocation3 + $0x13c] sm:$0xf] %vm1661, %v2580
        %2650 = vst.msk [vmem:[#allocation3 + $0x148] sm:$0xf] %vm1661, %v2582
        %2651 = vst.msk [vmem:[#allocation3 + $0x154] sm:$0xf] %vm1661, %v2584
        %2652 = vst.msk [vmem:[#allocation3 + $0x160] sm:$0xf] %vm1661, %v2586
        %2653 = vst.msk [vmem:[#allocation3 + $0x16c] sm:$0xf] %vm1661, %v2588
        %2654 = vst.msk [vmem:[#allocation3 + $0x178] sm:$0xf] %vm1661, %v2590
        %v2655 = vld [vmem:[%s2142 + $0x2] sm:$0xff]
        %v2656 = vld [vmem:[%s2142 + $0xa] sm:$0xff]
        %v2657 = vld [vmem:[%s2142 + $0x1a] sm:$0xff]
        %v2658 = vld [vmem:[%s2142 + $0x22] sm:$0xff]
        %v2659 = vld [vmem:[%s2142 + $0x32] sm:$0xff]
        %v2660 = vld [vmem:[%s2142 + $0x3a] sm:$0xff]
        %v2661 = vld [vmem:[%s2142 + $0x4a] sm:$0xff]
        %v2662 = vld [vmem:[%s2142 + $0x52] sm:$0xff]
        %v2663 = vld [vmem:[%s2142 + $0x62] sm:$0xff]
        %v2664 = vld [vmem:[%s2142 + $0x6a] sm:$0xff]
        %v2665 = vld [vmem:[%s2142 + $0x7a] sm:$0xff]
        %v2666 = vld [vmem:[%s2142 + $0x82] sm:$0xff]
        %v2667 = vld [vmem:[%s2142 + $0x92] sm:$0xff]
        %v2668 = vld [vmem:[%s2142 + $0x9a] sm:$0xff]
        %v2669 = vld [vmem:[%s2142 + $0xaa] sm:$0xff]
        %v2670 = vld [vmem:[%s2142 + $0xb2] sm:$0xff]
        %v2671 = vld [vmem:[%s2142 + $0xc2] sm:$0xff]
        %v2672 = vld [vmem:[%s2142 + $0xca] sm:$0xff]
        %v2673 = vld [vmem:[%s2142 + $0xda] sm:$0xff]
        %v2674 = vld [vmem:[%s2142 + $0xe2] sm:$0xff]
        %v2675 = vld [vmem:[%s2142 + $0xf2] sm:$0xff]
        %v2676 = vld [vmem:[%s2142 + $0xfa] sm:$0xff]
        %v2677 = vld [vmem:[%s2142 + $0x10a] sm:$0xff]
        %v2678 = vld [vmem:[%s2142 + $0x112] sm:$0xff]
        %v2679 = vld [vmem:[%s2142 + $0x122] sm:$0xff]
        %v2680 = vld [vmem:[%s2142 + $0x12a] sm:$0xff]
        %v2681 = vld [vmem:[%s2142 + $0x13a] sm:$0xff]
        %v2682 = vld [vmem:[%s2142 + $0x142] sm:$0xff]
        %v2683 = vld [vmem:[%s2142 + $0x152] sm:$0xff]
        %v2684 = vld [vmem:[%s2142 + $0x15a] sm:$0xff]
        %v2685 = vld [vmem:[%s2142 + $0x16a] sm:$0xff]
        %v2686 = vld [vmem:[%s2142 + $0x172] sm:$0xff]
        %v2687 = vpack.c.bf16 %v2656, %v2655
        %v2688 = vpack.c.bf16 %v2658, %v2657
        %v2689 = vpack.c.bf16 %v2660, %v2659
        %v2690 = vpack.c.bf16 %v2662, %v2661
        %v2691 = vpack.c.bf16 %v2664, %v2663
        %v2692 = vpack.c.bf16 %v2666, %v2665
        %v2693 = vpack.c.bf16 %v2668, %v2667
        %v2694 = vpack.c.bf16 %v2670, %v2669
        %v2695 = vpack.c.bf16 %v2672, %v2671
        %v2696 = vpack.c.bf16 %v2674, %v2673
        %v2697 = vpack.c.bf16 %v2676, %v2675
        %v2698 = vpack.c.bf16 %v2678, %v2677
        %v2699 = vpack.c.bf16 %v2680, %v2679
        %v2700 = vpack.c.bf16 %v2682, %v2681
        %v2701 = vpack.c.bf16 %v2684, %v2683
        %v2702 = vpack.c.bf16 %v2686, %v2685
        %v2719 = vunpack.c.l.b16 %v2687
        %v2720 = vunpack.c.h.b16 %v2687
        %v2721 = vunpack.c.l.b16 %v2688
        %v2722 = vunpack.c.h.b16 %v2688
        %v2723 = vunpack.c.l.b16 %v2689
        %v2724 = vunpack.c.h.b16 %v2689
        %v2725 = vunpack.c.l.b16 %v2690
        %v2726 = vunpack.c.h.b16 %v2690
        %v2727 = vunpack.c.l.b16 %v2691
        %v2728 = vunpack.c.h.b16 %v2691
        %v2729 = vunpack.c.l.b16 %v2692
        %v2730 = vunpack.c.h.b16 %v2692
        %v2731 = vunpack.c.l.b16 %v2693
        %v2732 = vunpack.c.h.b16 %v2693
        %v2733 = vunpack.c.l.b16 %v2694
        %v2734 = vunpack.c.h.b16 %v2694
        %v2735 = vunpack.c.l.b16 %v2695
        %v2736 = vunpack.c.h.b16 %v2695
        %v2737 = vunpack.c.l.b16 %v2696
        %v2738 = vunpack.c.h.b16 %v2696
        %v2739 = vunpack.c.l.b16 %v2697
        %v2740 = vunpack.c.h.b16 %v2697
        %v2741 = vunpack.c.l.b16 %v2698
        %v2742 = vunpack.c.h.b16 %v2698
        %v2743 = vunpack.c.l.b16 %v2699
        %v2744 = vunpack.c.h.b16 %v2699
        %v2745 = vunpack.c.l.b16 %v2700
        %v2746 = vunpack.c.h.b16 %v2700
        %v2747 = vunpack.c.l.b16 %v2701
        %v2748 = vunpack.c.h.b16 %v2701
        %v2749 = vunpack.c.l.b16 %v2702
        %v2750 = vunpack.c.h.b16 %v2702
        %v2751 = vpack.c.b16 %v2719, %v2719
        %v2752 = vpack.c.b16 %v2720, %v2720
        %v2753 = vpack.c.b16 %v2721, %v2721
        %v2754 = vpack.c.b16 %v2722, %v2722
        %v2755 = vpack.c.b16 %v2723, %v2723
        %v2756 = vpack.c.b16 %v2724, %v2724
        %v2757 = vpack.c.b16 %v2725, %v2725
        %v2758 = vpack.c.b16 %v2726, %v2726
        %v2759 = vpack.c.b16 %v2727, %v2727
        %v2760 = vpack.c.b16 %v2728, %v2728
        %v2761 = vpack.c.b16 %v2729, %v2729
        %v2762 = vpack.c.b16 %v2730, %v2730
        %v2763 = vpack.c.b16 %v2731, %v2731
        %v2764 = vpack.c.b16 %v2732, %v2732
        %v2765 = vpack.c.b16 %v2733, %v2733
        %v2766 = vpack.c.b16 %v2734, %v2734
        %v2767 = vpack.c.b16 %v2735, %v2735
        %v2768 = vpack.c.b16 %v2736, %v2736
        %v2769 = vpack.c.b16 %v2737, %v2737
        %v2770 = vpack.c.b16 %v2738, %v2738
        %v2771 = vpack.c.b16 %v2739, %v2739
        %v2772 = vpack.c.b16 %v2740, %v2740
        %v2773 = vpack.c.b16 %v2741, %v2741
        %v2774 = vpack.c.b16 %v2742, %v2742
        %v2775 = vpack.c.b16 %v2743, %v2743
        %v2776 = vpack.c.b16 %v2744, %v2744
        %v2777 = vpack.c.b16 %v2745, %v2745
        %v2778 = vpack.c.b16 %v2746, %v2746
        %v2779 = vpack.c.b16 %v2747, %v2747
        %v2780 = vpack.c.b16 %v2748, %v2748
        %v2781 = vpack.c.b16 %v2749, %v2749
        %v2782 = vpack.c.b16 %v2750, %v2750
        %2815 = vst.msk [vmem:[#allocation3 + $0x8] sm:$0xf] %vm890, %v2751
        %2816 = vst.msk [vmem:[#allocation3 + $0x14] sm:$0xf] %vm890, %v2752
        %2817 = vst.msk [vmem:[#allocation3 + $0x20] sm:$0xf] %vm890, %v2753
        %2818 = vst.msk [vmem:[#allocation3 + $0x2c] sm:$0xf] %vm890, %v2754
        %2819 = vst.msk [vmem:[#allocation3 + $0x38] sm:$0xf] %vm890, %v2755
        %2820 = vst.msk [vmem:[#allocation3 + $0x44] sm:$0xf] %vm890, %v2756
        %2821 = vst.msk [vmem:[#allocation3 + $0x50] sm:$0xf] %vm890, %v2757
        %2822 = vst.msk [vmem:[#allocation3 + $0x5c] sm:$0xf] %vm890, %v2758
        %2823 = vst.msk [vmem:[#allocation3 + $0x68] sm:$0xf] %vm890, %v2759
        %2824 = vst.msk [vmem:[#allocation3 + $0x74] sm:$0xf] %vm890, %v2760
        %2825 = vst.msk [vmem:[#allocation3 + $0x80] sm:$0xf] %vm890, %v2761
        %2826 = vst.msk [vmem:[#allocation3 + $0x8c] sm:$0xf] %vm890, %v2762
        %2827 = vst.msk [vmem:[#allocation3 + $0x98] sm:$0xf] %vm890, %v2763
        %2828 = vst.msk [vmem:[#allocation3 + $0xa4] sm:$0xf] %vm890, %v2764
        %2829 = vst.msk [vmem:[#allocation3 + $0xb0] sm:$0xf] %vm890, %v2765
        %2830 = vst.msk [vmem:[#allocation3 + $0xbc] sm:$0xf] %vm890, %v2766
        %2831 = vst.msk [vmem:[#allocation3 + $0xc8] sm:$0xf] %vm890, %v2767
        %2832 = vst.msk [vmem:[#allocation3 + $0xd4] sm:$0xf] %vm890, %v2768
        %2833 = vst.msk [vmem:[#allocation3 + $0xe0] sm:$0xf] %vm890, %v2769
        %2834 = vst.msk [vmem:[#allocation3 + $0xec] sm:$0xf] %vm890, %v2770
        %2835 = vst.msk [vmem:[#allocation3 + $0xf8] sm:$0xf] %vm890, %v2771
        %2836 = vst.msk [vmem:[#allocation3 + $0x104] sm:$0xf] %vm890, %v2772
        %2837 = vst.msk [vmem:[#allocation3 + $0x110] sm:$0xf] %vm890, %v2773
        %2838 = vst.msk [vmem:[#allocation3 + $0x11c] sm:$0xf] %vm890, %v2774
        %2839 = vst.msk [vmem:[#allocation3 + $0x128] sm:$0xf] %vm890, %v2775
        %2840 = vst.msk [vmem:[#allocation3 + $0x134] sm:$0xf] %vm890, %v2776
        %2841 = vst.msk [vmem:[#allocation3 + $0x140] sm:$0xf] %vm890, %v2777
        %2842 = vst.msk [vmem:[#allocation3 + $0x14c] sm:$0xf] %vm890, %v2778
        %2843 = vst.msk [vmem:[#allocation3 + $0x158] sm:$0xf] %vm890, %v2779
        %2844 = vst.msk [vmem:[#allocation3 + $0x164] sm:$0xf] %vm890, %v2780
        %2845 = vst.msk [vmem:[#allocation3 + $0x170] sm:$0xf] %vm890, %v2781
        %2846 = vst.msk [vmem:[#allocation3 + $0x17c] sm:$0xf] %vm890, %v2782
        %v2847 = vld [vmem:[#allocation3] sm:$0xff]
        %v2848 = vld [vmem:[#allocation3 + $0x8] sm:$0xf]
        %v2849 = vld [vmem:[#allocation3 + $0xc] sm:$0xff]
        %v2850 = vld [vmem:[#allocation3 + $0x14] sm:$0xf]
        %v2851 = vld [vmem:[#allocation3 + $0x18] sm:$0xff]
        %v2852 = vld [vmem:[#allocation3 + $0x20] sm:$0xf]
        %v2853 = vld [vmem:[#allocation3 + $0x24] sm:$0xff]
        %v2854 = vld [vmem:[#allocation3 + $0x2c] sm:$0xf]
        %v2855 = vld [vmem:[#allocation3 + $0x30] sm:$0xff]
        %v2856 = vld [vmem:[#allocation3 + $0x38] sm:$0xf]
        %v2857 = vld [vmem:[#allocation3 + $0x3c] sm:$0xff]
        %v2858 = vld [vmem:[#allocation3 + $0x44] sm:$0xf]
        %v2859 = vld [vmem:[#allocation3 + $0x48] sm:$0xff]
        %v2860 = vld [vmem:[#allocation3 + $0x50] sm:$0xf]
        %v2861 = vld [vmem:[#allocation3 + $0x54] sm:$0xff]
        %v2862 = vld [vmem:[#allocation3 + $0x5c] sm:$0xf]
        %v2863 = vld [vmem:[#allocation3 + $0x60] sm:$0xff]
        %v2864 = vld [vmem:[#allocation3 + $0x68] sm:$0xf]
        %v2865 = vld [vmem:[#allocation3 + $0x6c] sm:$0xff]
        %v2866 = vld [vmem:[#allocation3 + $0x74] sm:$0xf]
        %v2867 = vld [vmem:[#allocation3 + $0x78] sm:$0xff]
        %v2868 = vld [vmem:[#allocation3 + $0x80] sm:$0xf]
        %v2869 = vld [vmem:[#allocation3 + $0x84] sm:$0xff]
        %v2870 = vld [vmem:[#allocation3 + $0x8c] sm:$0xf]
        %v2871 = vld [vmem:[#allocation3 + $0x90] sm:$0xff]
        %v2872 = vld [vmem:[#allocation3 + $0x98] sm:$0xf]
        %v2873 = vld [vmem:[#allocation3 + $0x9c] sm:$0xff]
        %v2874 = vld [vmem:[#allocation3 + $0xa4] sm:$0xf]
        %v2875 = vld [vmem:[#allocation3 + $0xa8] sm:$0xff]
        %v2876 = vld [vmem:[#allocation3 + $0xb0] sm:$0xf]
        %v2877 = vld [vmem:[#allocation3 + $0xb4] sm:$0xff]
        %v2878 = vld [vmem:[#allocation3 + $0xbc] sm:$0xf]
        %v2879 = vld [vmem:[#allocation3 + $0xc0] sm:$0xff]
        %v2880 = vld [vmem:[#allocation3 + $0xc8] sm:$0xf]
        %v2881 = vld [vmem:[#allocation3 + $0xcc] sm:$0xff]
        %v2882 = vld [vmem:[#allocation3 + $0xd4] sm:$0xf]
        %v2883 = vld [vmem:[#allocation3 + $0xd8] sm:$0xff]
        %v2884 = vld [vmem:[#allocation3 + $0xe0] sm:$0xf]
        %v2885 = vld [vmem:[#allocation3 + $0xe4] sm:$0xff]
        %v2886 = vld [vmem:[#allocation3 + $0xec] sm:$0xf]
        %v2887 = vld [vmem:[#allocation3 + $0xf0] sm:$0xff]
        %v2888 = vld [vmem:[#allocation3 + $0xf8] sm:$0xf]
        %v2889 = vld [vmem:[#allocation3 + $0xfc] sm:$0xff]
        %v2890 = vld [vmem:[#allocation3 + $0x104] sm:$0xf]
        %v2891 = vld [vmem:[#allocation3 + $0x108] sm:$0xff]
        %v2892 = vld [vmem:[#allocation3 + $0x110] sm:$0xf]
        %v2893 = vld [vmem:[#allocation3 + $0x114] sm:$0xff]
        %v2894 = vld [vmem:[#allocation3 + $0x11c] sm:$0xf]
        %v2895 = vld [vmem:[#allocation3 + $0x120] sm:$0xff]
        %v2896 = vld [vmem:[#allocation3 + $0x128] sm:$0xf]
        %v2897 = vld [vmem:[#allocation3 + $0x12c] sm:$0xff]
        %v2898 = vld [vmem:[#allocation3 + $0x134] sm:$0xf]
        %v2899 = vld [vmem:[#allocation3 + $0x138] sm:$0xff]
        %v2900 = vld [vmem:[#allocation3 + $0x140] sm:$0xf]
        %v2901 = vld [vmem:[#allocation3 + $0x144] sm:$0xff]
        %v2902 = vld [vmem:[#allocation3 + $0x14c] sm:$0xf]
        %v2903 = vld [vmem:[#allocation3 + $0x150] sm:$0xff]
        %v2904 = vld [vmem:[#allocation3 + $0x158] sm:$0xf]
        %v2905 = vld [vmem:[#allocation3 + $0x15c] sm:$0xff]
        %v2906 = vld [vmem:[#allocation3 + $0x164] sm:$0xf]
        %v2907 = vld [vmem:[#allocation3 + $0x168] sm:$0xff]
        %v2908 = vld [vmem:[#allocation3 + $0x170] sm:$0xf]
        %v2909 = vld [vmem:[#allocation3 + $0x174] sm:$0xff]
        %v2910 = vld [vmem:[#allocation3 + $0x17c] sm:$0xf]
        %v2911 = vld [vmem:[%s3] sm:$0xf]
        %v2912 = vld [vmem:[%s3 + $0x4] sm:$0xf]
        %v2913 = vld [vmem:[%s3 + $0x8] sm:$0xf]
        %v2914 = vld [vmem:[%s3 + $0xc] sm:$0xf]
        %v2915 = vld [vmem:[%s3 + $0x10] sm:$0xf]
        %v2916 = vld [vmem:[%s3 + $0x14] sm:$0xf]
        %v2917 = vld [vmem:[%s3 + $0x18] sm:$0xf]
        %v2918 = vld [vmem:[%s3 + $0x1c] sm:$0xf]
        %v2919 = vld [vmem:[%s3 + $0x20] sm:$0xf]
        %v2920 = vld [vmem:[%s3 + $0x24] sm:$0xf]
        %v2921 = vld [vmem:[%s3 + $0x28] sm:$0xf]
        %v2922 = vld [vmem:[%s3 + $0x2c] sm:$0xf]
        %v2923 = vld [vmem:[%s3 + $0x30] sm:$0xf]
        %v2924 = vld [vmem:[%s3 + $0x34] sm:$0xf]
        %v2925 = vld [vmem:[%s3 + $0x38] sm:$0xf]
        %v2926 = vld [vmem:[%s3 + $0x3c] sm:$0xf]
        %v2927 = vld [vmem:[%s3 + $0x40] sm:$0xf]
        %v2928 = vld [vmem:[%s3 + $0x44] sm:$0xf]
        %v2929 = vld [vmem:[%s3 + $0x48] sm:$0xf]
        %v2930 = vld [vmem:[%s3 + $0x4c] sm:$0xf]
        %v2931 = vld [vmem:[%s3 + $0x50] sm:$0xf]
        %v2932 = vld [vmem:[%s3 + $0x54] sm:$0xf]
        %v2933 = vld [vmem:[%s3 + $0x58] sm:$0xf]
        %v2934 = vld [vmem:[%s3 + $0x5c] sm:$0xf]
        %v2935 = vld [vmem:[%s3 + $0x60] sm:$0xf]
        %v2936 = vld [vmem:[%s3 + $0x64] sm:$0xf]
        %v2937 = vld [vmem:[%s3 + $0x68] sm:$0xf]
        %v2938 = vld [vmem:[%s3 + $0x6c] sm:$0xf]
        %v2939 = vld [vmem:[%s3 + $0x70] sm:$0xf]
        %v2940 = vld [vmem:[%s3 + $0x74] sm:$0xf]
        %v2941 = vld [vmem:[%s3 + $0x78] sm:$0xf]
        %v2942 = vld [vmem:[%s3 + $0x7c] sm:$0xf]
        %v2943 = vld [vmem:[%s3 + $0x80] sm:$0xf]
        %v2944 = vld [vmem:[%s3 + $0x84] sm:$0xf]
        %v2945 = vld [vmem:[%s3 + $0x88] sm:$0xf]
        %v2946 = vld [vmem:[%s3 + $0x8c] sm:$0xf]
        %v2947 = vld [vmem:[%s4] sm:$0x1]
        %v2949 = vlaneseq
        %v2950 = vshrl.u32 %v2949, 7
        %v2951 = vsub.s32 0, %v2950
        %v2952 = vrot.slane %v2947, %v2951
        %v3018 = vunpack.c.l.b16 %v2847
        %v3019 = vunpack.c.h.b16 %v2847
        %v3020 = vunpack.c.l.b16 %v2848
        %v3021 = vunpack.c.l.b16 %v2849
        %v3022 = vunpack.c.h.b16 %v2849
        %v3023 = vunpack.c.l.b16 %v2850
        %v3024 = vunpack.c.l.b16 %v2851
        %v3025 = vunpack.c.h.b16 %v2851
        %v3026 = vunpack.c.l.b16 %v2852
        %v3027 = vunpack.c.l.b16 %v2853
        %v3028 = vunpack.c.h.b16 %v2853
        %v3029 = vunpack.c.l.b16 %v2854
        %v3030 = vunpack.c.l.b16 %v2855
        %v3031 = vunpack.c.h.b16 %v2855
        %v3032 = vunpack.c.l.b16 %v2856
        %v3033 = vunpack.c.l.b16 %v2857
        %v3034 = vunpack.c.h.b16 %v2857
        %v3035 = vunpack.c.l.b16 %v2858
        %v3036 = vunpack.c.l.b16 %v2859
        %v3037 = vunpack.c.h.b16 %v2859
        %v3038 = vunpack.c.l.b16 %v2860
        %v3039 = vunpack.c.l.b16 %v2861
        %v3040 = vunpack.c.h.b16 %v2861
        %v3041 = vunpack.c.l.b16 %v2862
        %v3042 = vunpack.c.l.b16 %v2863
        %v3043 = vunpack.c.h.b16 %v2863
        %v3044 = vunpack.c.l.b16 %v2864
        %v3045 = vunpack.c.l.b16 %v2865
        %v3046 = vunpack.c.h.b16 %v2865
        %v3047 = vunpack.c.l.b16 %v2866
        %v3048 = vunpack.c.l.b16 %v2867
        %v3049 = vunpack.c.h.b16 %v2867
        %v3050 = vunpack.c.l.b16 %v2868
        %v3051 = vunpack.c.l.b16 %v2869
        %v3052 = vunpack.c.h.b16 %v2869
        %v3053 = vunpack.c.l.b16 %v2870
        %v3054 = vunpack.c.l.b16 %v2871
        %v3055 = vunpack.c.h.b16 %v2871
        %v3056 = vunpack.c.l.b16 %v2872
        %v3057 = vunpack.c.l.b16 %v2873
        %v3058 = vunpack.c.h.b16 %v2873
        %v3059 = vunpack.c.l.b16 %v2874
        %v3060 = vunpack.c.l.b16 %v2875
        %v3061 = vunpack.c.h.b16 %v2875
        %v3062 = vunpack.c.l.b16 %v2876
        %v3063 = vunpack.c.l.b16 %v2877
        %v3064 = vunpack.c.h.b16 %v2877
        %v3065 = vunpack.c.l.b16 %v2878
        %v3066 = vunpack.c.l.b16 %v2879
        %v3067 = vunpack.c.h.b16 %v2879
        %v3068 = vunpack.c.l.b16 %v2880
        %v3069 = vunpack.c.l.b16 %v2881
        %v3070 = vunpack.c.h.b16 %v2881
        %v3071 = vunpack.c.l.b16 %v2882
        %v3072 = vunpack.c.l.b16 %v2883
        %v3073 = vunpack.c.h.b16 %v2883
        %v3074 = vunpack.c.l.b16 %v2884
        %v3075 = vunpack.c.l.b16 %v2885
        %v3076 = vunpack.c.h.b16 %v2885
        %v3077 = vunpack.c.l.b16 %v2886
        %v3078 = vunpack.c.l.b16 %v2887
        %v3079 = vunpack.c.h.b16 %v2887
        %v3080 = vunpack.c.l.b16 %v2888
        %v3081 = vunpack.c.l.b16 %v2889
        %v3082 = vunpack.c.h.b16 %v2889
        %v3083 = vunpack.c.l.b16 %v2890
        %v3084 = vunpack.c.l.b16 %v2891
        %v3085 = vunpack.c.h.b16 %v2891
        %v3086 = vunpack.c.l.b16 %v2892
        %v3087 = vunpack.c.l.b16 %v2893
        %v3088 = vunpack.c.h.b16 %v2893
        %v3089 = vunpack.c.l.b16 %v2894
        %v3090 = vunpack.c.l.b16 %v2895
        %v3091 = vunpack.c.h.b16 %v2895
        %v3092 = vunpack.c.l.b16 %v2896
        %v3093 = vunpack.c.l.b16 %v2897
        %v3094 = vunpack.c.h.b16 %v2897
        %v3095 = vunpack.c.l.b16 %v2898
        %v3096 = vunpack.c.l.b16 %v2899
        %v3097 = vunpack.c.h.b16 %v2899
        %v3098 = vunpack.c.l.b16 %v2900
        %v3099 = vunpack.c.l.b16 %v2901
        %v3100 = vunpack.c.h.b16 %v2901
        %v3101 = vunpack.c.l.b16 %v2902
        %v3102 = vunpack.c.l.b16 %v2903
        %v3103 = vunpack.c.h.b16 %v2903
        %v3104 = vunpack.c.l.b16 %v2904
        %v3105 = vunpack.c.l.b16 %v2905
        %v3106 = vunpack.c.h.b16 %v2905
        %v3107 = vunpack.c.l.b16 %v2906
        %v3108 = vunpack.c.l.b16 %v2907
        %v3109 = vunpack.c.h.b16 %v2907
        %v3110 = vunpack.c.l.b16 %v2908
        %v3111 = vunpack.c.l.b16 %v2909
        %v3112 = vunpack.c.h.b16 %v2909
        %v3113 = vunpack.c.l.b16 %v2910
        %v3114 = vpack.c.b16 %v3021, %v3018
        %v3115 = vpack.c.b16 %v3022, %v3019
        %v3116 = vpack.c.b16 %v3023, %v3020
        %v3117 = vpack.c.b16 %v3027, %v3024
        %v3118 = vpack.c.b16 %v3028, %v3025
        %v3119 = vpack.c.b16 %v3029, %v3026
        %v3120 = vpack.c.b16 %v3033, %v3030
        %v3121 = vpack.c.b16 %v3034, %v3031
        %v3122 = vpack.c.b16 %v3035, %v3032
        %v3123 = vpack.c.b16 %v3039, %v3036
        %v3124 = vpack.c.b16 %v3040, %v3037
        %v3125 = vpack.c.b16 %v3041, %v3038
        %v3126 = vpack.c.b16 %v3045, %v3042
        %v3127 = vpack.c.b16 %v3046, %v3043
        %v3128 = vpack.c.b16 %v3047, %v3044
        %v3129 = vpack.c.b16 %v3051, %v3048
        %v3130 = vpack.c.b16 %v3052, %v3049
        %v3131 = vpack.c.b16 %v3053, %v3050
        %v3132 = vpack.c.b16 %v3057, %v3054
        %v3133 = vpack.c.b16 %v3058, %v3055
        %v3134 = vpack.c.b16 %v3059, %v3056
        %v3135 = vpack.c.b16 %v3063, %v3060
        %v3136 = vpack.c.b16 %v3064, %v3061
        %v3137 = vpack.c.b16 %v3065, %v3062
        %v3138 = vpack.c.b16 %v3069, %v3066
        %v3139 = vpack.c.b16 %v3070, %v3067
        %v3140 = vpack.c.b16 %v3071, %v3068
        %v3141 = vpack.c.b16 %v3075, %v3072
        %v3142 = vpack.c.b16 %v3076, %v3073
        %v3143 = vpack.c.b16 %v3077, %v3074
        %v3144 = vpack.c.b16 %v3081, %v3078
        %v3145 = vpack.c.b16 %v3082, %v3079
        %v3146 = vpack.c.b16 %v3083, %v3080
        %v3147 = vpack.c.b16 %v3087, %v3084
        %v3148 = vpack.c.b16 %v3088, %v3085
        %v3149 = vpack.c.b16 %v3089, %v3086
        %v3150 = vpack.c.b16 %v3093, %v3090
        %v3151 = vpack.c.b16 %v3094, %v3091
        %v3152 = vpack.c.b16 %v3095, %v3092
        %v3153 = vpack.c.b16 %v3099, %v3096
        %v3154 = vpack.c.b16 %v3100, %v3097
        %v3155 = vpack.c.b16 %v3101, %v3098
        %v3156 = vpack.c.b16 %v3105, %v3102
        %v3157 = vpack.c.b16 %v3106, %v3103
        %v3158 = vpack.c.b16 %v3107, %v3104
        %v3159 = vpack.c.b16 %v3111, %v3108
        %v3160 = vpack.c.b16 %v3112, %v3109
        %v3161 = vpack.c.b16 %v3113, %v3110
        %v3230 = vunpack.c.l.b16 %v2911
        %v3231 = vunpack.c.l.b16 %v2912
        %v3232 = vunpack.c.l.b16 %v2913
        %v3233 = vunpack.c.l.b16 %v2914
        %v3234 = vunpack.c.l.b16 %v2915
        %v3235 = vunpack.c.l.b16 %v2916
        %v3236 = vunpack.c.l.b16 %v2917
        %v3237 = vunpack.c.l.b16 %v2918
        %v3238 = vunpack.c.l.b16 %v2919
        %v3239 = vunpack.c.l.b16 %v2920
        %v3240 = vunpack.c.l.b16 %v2921
        %v3241 = vunpack.c.l.b16 %v2922
        %v3242 = vunpack.c.l.b16 %v2923
        %v3243 = vunpack.c.l.b16 %v2924
        %v3244 = vunpack.c.l.b16 %v2925
        %v3245 = vunpack.c.l.b16 %v2926
        %v3246 = vunpack.c.l.b16 %v2927
        %v3247 = vunpack.c.l.b16 %v2928
        %v3248 = vunpack.c.l.b16 %v2929
        %v3249 = vunpack.c.l.b16 %v2930
        %v3250 = vunpack.c.l.b16 %v2931
        %v3251 = vunpack.c.l.b16 %v2932
        %v3252 = vunpack.c.l.b16 %v2933
        %v3253 = vunpack.c.l.b16 %v2934
        %v3254 = vunpack.c.l.b16 %v2935
        %v3255 = vunpack.c.l.b16 %v2936
        %v3256 = vunpack.c.l.b16 %v2937
        %v3257 = vunpack.c.l.b16 %v2938
        %v3258 = vunpack.c.l.b16 %v2939
        %v3259 = vunpack.c.l.b16 %v2940
        %v3260 = vunpack.c.l.b16 %v2941
        %v3261 = vunpack.c.l.b16 %v2942
        %v3262 = vunpack.c.l.b16 %v2943
        %v3263 = vunpack.c.l.b16 %v2944
        %v3264 = vunpack.c.l.b16 %v2945
        %v3265 = vunpack.c.l.b16 %v2946
        %v3266 = vpack.c.b16 %v3231, %v3230
        %v3267 = vpack.c.b16 %v3233, %v3232
        %v3268 = vpack.c.b16 %v3235, %v3234
        %v3269 = vpack.c.b16 %v3237, %v3236
        %v3270 = vpack.c.b16 %v3239, %v3238
        %v3271 = vpack.c.b16 %v3241, %v3240
        %v3272 = vpack.c.b16 %v3243, %v3242
        %v3273 = vpack.c.b16 %v3245, %v3244
        %v3274 = vpack.c.b16 %v3247, %v3246
        %v3275 = vpack.c.b16 %v3249, %v3248
        %v3276 = vpack.c.b16 %v3251, %v3250
        %v3277 = vpack.c.b16 %v3253, %v3252
        %v3278 = vpack.c.b16 %v3255, %v3254
        %v3279 = vpack.c.b16 %v3257, %v3256
        %v3280 = vpack.c.b16 %v3259, %v3258
        %v3281 = vpack.c.b16 %v3261, %v3260
        %v3282 = vpack.c.b16 %v3263, %v3262
        %v3283 = vpack.c.b16 %v3265, %v3264
        %v3303 = vsel %vm641, %v3116, 0
        %v3306 = vsel %vm641, %v3119, 0
        %v3309 = vsel %vm641, %v3122, 0
        %v3312 = vsel %vm641, %v3125, 0
        %v3315 = vsel %vm641, %v3128, 0
        %v3318 = vsel %vm641, %v3131, 0
        %v3321 = vsel %vm641, %v3134, 0
        %v3324 = vsel %vm641, %v3137, 0
        %v3327 = vsel %vm641, %v3140, 0
        %v3330 = vsel %vm641, %v3143, 0
        %v3333 = vsel %vm641, %v3146, 0
        %v3336 = vsel %vm641, %v3149, 0
        %v3339 = vsel %vm641, %v3152, 0
        %v3342 = vsel %vm641, %v3155, 0
        %v3345 = vsel %vm641, %v3158, 0
        %v3348 = vsel %vm641, %v3161, 0
        %3350 = vmatprep.subr.bf16.mxu0 0
        %3351 = vmatpush1.bf16.msra.mxu0 %v3273
        %3352 = vmatprep.subr.bf16.mxu0 0
        %3353 = vmatpush1.bf16.msra.mxu0 %v3272
        %3354 = vmatprep.subr.bf16.mxu0 0
        %3355 = vmatpush1.bf16.msra.mxu0 %v3271
        %3356 = vmatprep.subr.bf16.mxu0 0
        %3357 = vmatpush1.bf16.msra.mxu0 %v3270
        %3358 = vmatprep.subr.bf16.mxu0 0
        %3359 = vmatpush1.bf16.msra.mxu0 %v3269
        %3360 = vmatprep.subr.bf16.mxu0 0
        %3361 = vmatpush1.bf16.msra.mxu0 %v3268
        %3362 = vmatprep.subr.bf16.mxu0 0
        %3363 = vmatpush1.bf16.msra.mxu0 %v3267
        %3364 = vmatprep.subr.bf16.mxu0 0
        %3365 = vmatpush1.bf16.msra.mxu0 %v3266
        %3366 = vmatprep.subr.bf16.mxu0 0
        %3367 = vmatpush2.bf16.msra.mxu0 %v3281
        %3368 = vmatprep.subr.bf16.mxu0 0
        %3369 = vmatpush2.bf16.msra.mxu0 %v3280
        %3370 = vmatprep.subr.bf16.mxu0 0
        %3371 = vmatpush2.bf16.msra.mxu0 %v3279
        %3372 = vmatprep.subr.bf16.mxu0 0
        %3373 = vmatpush2.bf16.msra.mxu0 %v3278
        %3374 = vmatprep.subr.bf16.mxu0 0
        %3375 = vmatpush2.bf16.msra.mxu0 %v3277
        %3376 = vmatprep.subr.bf16.mxu0 0
        %3377 = vmatpush2.bf16.msra.mxu0 %v3276
        %3378 = vmatprep.subr.bf16.mxu0 0
        %3379 = vmatpush2.bf16.msra.mxu0 %v3275
        %3380 = vmatprep.subr.bf16.mxu0 0
        %3381 = vmatpush2.bf16.msra.mxu0 %v3274
        %3382 = vmatprep.mubr.bf16.mxu0 %v3115
        %3383 = vmatmul.mubr.bf16.gmra.mxu0 %v3114
        %v3384 = vpop.f32.mrf.mxu0
        %v3385 = vadd.f32 %v2952, %v3384
        %v3386 = vpop.f32.mrf.mxu0
        %v3387 = vpop.f32.mrf.mxu0
        %v3388 = vadd.f32 %v2952, %v3387
        %v3389 = vpop.f32.mrf.mxu0
        %3390 = vmatprep.mubr.bf16.mxu0 %v3118
        %3391 = vmatmul.mubr.bf16.gmra.mxu0 %v3117
        %v3392 = vpop.f32.mrf.mxu0
        %v3393 = vadd.f32 %v2952, %v3392
        %v3394 = vpop.f32.mrf.mxu0
        %v3395 = vpop.f32.mrf.mxu0
        %v3396 = vadd.f32 %v2952, %v3395
        %v3397 = vpop.f32.mrf.mxu0
        %3398 = vmatprep.mubr.bf16.mxu0 %v3121
        %3399 = vmatmul.mubr.bf16.gmra.mxu0 %v3120
        %v3400 = vpop.f32.mrf.mxu0
        %v3401 = vadd.f32 %v2952, %v3400
        %v3402 = vpop.f32.mrf.mxu0
        %v3403 = vpop.f32.mrf.mxu0
        %v3404 = vadd.f32 %v2952, %v3403
        %v3405 = vpop.f32.mrf.mxu0
        %3406 = vmatprep.mubr.bf16.mxu0 %v3124
        %3407 = vmatmul.mubr.bf16.gmra.mxu0 %v3123
        %v3408 = vpop.f32.mrf.mxu0
        %v3409 = vadd.f32 %v2952, %v3408
        %v3410 = vpop.f32.mrf.mxu0
        %v3411 = vpop.f32.mrf.mxu0
        %v3412 = vadd.f32 %v2952, %v3411
        %v3413 = vpop.f32.mrf.mxu0
        %3414 = vmatprep.mubr.bf16.mxu0 %v3127
        %3415 = vmatmul.mubr.bf16.gmra.mxu0 %v3126
        %v3416 = vpop.f32.mrf.mxu0
        %v3417 = vadd.f32 %v2952, %v3416
        %v3418 = vpop.f32.mrf.mxu0
        %v3419 = vpop.f32.mrf.mxu0
        %v3420 = vadd.f32 %v2952, %v3419
        %v3421 = vpop.f32.mrf.mxu0
        %3422 = vmatprep.mubr.bf16.mxu0 %v3130
        %3423 = vmatmul.mubr.bf16.gmra.mxu0 %v3129
        %v3424 = vpop.f32.mrf.mxu0
        %v3425 = vadd.f32 %v2952, %v3424
        %v3426 = vpop.f32.mrf.mxu0
        %v3427 = vpop.f32.mrf.mxu0
        %v3428 = vadd.f32 %v2952, %v3427
        %v3429 = vpop.f32.mrf.mxu0
        %3430 = vmatprep.mubr.bf16.mxu0 %v3133
        %3431 = vmatmul.mubr.bf16.gmra.mxu0 %v3132
        %v3432 = vpop.f32.mrf.mxu0
        %v3433 = vadd.f32 %v2952, %v3432
        %v3434 = vpop.f32.mrf.mxu0
        %v3435 = vpop.f32.mrf.mxu0
        %v3436 = vadd.f32 %v2952, %v3435
        %v3437 = vpop.f32.mrf.mxu0
        %3438 = vmatprep.mubr.bf16.mxu0 %v3136
        %3439 = vmatmul.mubr.bf16.gmra.mxu0 %v3135
        %v3440 = vpop.f32.mrf.mxu0
        %v3441 = vadd.f32 %v2952, %v3440
        %v3442 = vpop.f32.mrf.mxu0
        %v3443 = vpop.f32.mrf.mxu0
        %v3444 = vadd.f32 %v2952, %v3443
        %v3445 = vpop.f32.mrf.mxu0
        %3446 = vmatprep.mubr.bf16.mxu0 %v3139
        %3447 = vmatmul.mubr.bf16.gmra.mxu0 %v3138
        %v3448 = vpop.f32.mrf.mxu0
        %v3449 = vadd.f32 %v2952, %v3448
        %v3450 = vpop.f32.mrf.mxu0
        %v3451 = vpop.f32.mrf.mxu0
        %v3452 = vadd.f32 %v2952, %v3451
        %v3453 = vpop.f32.mrf.mxu0
        %3454 = vmatprep.mubr.bf16.mxu0 %v3142
        %3455 = vmatmul.mubr.bf16.gmra.mxu0 %v3141
        %v3456 = vpop.f32.mrf.mxu0
        %v3457 = vadd.f32 %v2952, %v3456
        %v3458 = vpop.f32.mrf.mxu0
        %v3459 = vpop.f32.mrf.mxu0
        %v3460 = vadd.f32 %v2952, %v3459
        %v3461 = vpop.f32.mrf.mxu0
        %3462 = vmatprep.mubr.bf16.mxu0 %v3145
        %3463 = vmatmul.mubr.bf16.gmra.mxu0 %v3144
        %v3464 = vpop.f32.mrf.mxu0
        %v3465 = vadd.f32 %v2952, %v3464
        %v3466 = vpop.f32.mrf.mxu0
        %v3467 = vpop.f32.mrf.mxu0
        %v3468 = vadd.f32 %v2952, %v3467
        %v3469 = vpop.f32.mrf.mxu0
        %3470 = vmatprep.mubr.bf16.mxu0 %v3148
        %3471 = vmatmul.mubr.bf16.gmra.mxu0 %v3147
        %v3472 = vpop.f32.mrf.mxu0
        %v3473 = vadd.f32 %v2952, %v3472
        %v3474 = vpop.f32.mrf.mxu0
        %v3475 = vpop.f32.mrf.mxu0
        %v3476 = vadd.f32 %v2952, %v3475
        %v3477 = vpop.f32.mrf.mxu0
        %3478 = vmatprep.mubr.bf16.mxu0 %v3151
        %3479 = vmatmul.mubr.bf16.gmra.mxu0 %v3150
        %v3480 = vpop.f32.mrf.mxu0
        %v3481 = vadd.f32 %v2952, %v3480
        %v3482 = vpop.f32.mrf.mxu0
        %v3483 = vpop.f32.mrf.mxu0
        %v3484 = vadd.f32 %v2952, %v3483
        %v3485 = vpop.f32.mrf.mxu0
        %3486 = vmatprep.mubr.bf16.mxu0 %v3154
        %3487 = vmatmul.mubr.bf16.gmra.mxu0 %v3153
        %v3488 = vpop.f32.mrf.mxu0
        %v3489 = vadd.f32 %v2952, %v3488
        %v3490 = vpop.f32.mrf.mxu0
        %v3491 = vpop.f32.mrf.mxu0
        %v3492 = vadd.f32 %v2952, %v3491
        %v3493 = vpop.f32.mrf.mxu0
        %3494 = vmatprep.mubr.bf16.mxu0 %v3157
        %3495 = vmatmul.mubr.bf16.gmra.mxu0 %v3156
        %v3496 = vpop.f32.mrf.mxu0
        %v3497 = vadd.f32 %v2952, %v3496
        %v3498 = vpop.f32.mrf.mxu0
        %v3499 = vpop.f32.mrf.mxu0
        %v3500 = vadd.f32 %v2952, %v3499
        %v3501 = vpop.f32.mrf.mxu0
        %3502 = vmatprep.mubr.bf16.mxu0 %v3160
        %3503 = vmatmul.mubr.bf16.gmra.mxu0 %v3159
        %v3504 = vpop.f32.mrf.mxu0
        %v3505 = vadd.f32 %v2952, %v3504
        %v3506 = vpop.f32.mrf.mxu0
        %v3507 = vpop.f32.mrf.mxu0
        %v3508 = vadd.f32 %v2952, %v3507
        %v3509 = vpop.f32.mrf.mxu0
        %3510 = vdwg.mxu0
        %3511 = vmatprep.subr.bf16.mxu0 0
        %3512 = vmatpush1.bf16.msra.mxu0 0
        %3513 = vmatprep.subr.bf16.mxu0 0
        %3514 = vmatpush1.bf16.msra.mxu0 0
        %3515 = vmatprep.subr.bf16.mxu0 0
        %3516 = vmatpush1.bf16.msra.mxu0 0
        %3517 = vmatprep.subr.bf16.mxu0 0
        %3518 = vmatpush1.bf16.msra.mxu0 0
        %3519 = vmatprep.subr.bf16.mxu0 0
        %3520 = vmatpush1.bf16.msra.mxu0 0
        %3521 = vmatprep.subr.bf16.mxu0 0
        %3522 = vmatpush1.bf16.msra.mxu0 0
        %3523 = vmatprep.subr.bf16.mxu0 0
        %3524 = vmatpush1.bf16.msra.mxu0 %v3283
        %3525 = vmatprep.subr.bf16.mxu0 0
        %3526 = vmatpush1.bf16.msra.mxu0 %v3282
        %3527 = vmatprep.subr.bf16.mxu0 0
        %3528 = vmatpush2.bf16.msra.mxu0 0
        %3529 = vmatprep.subr.bf16.mxu0 0
        %3530 = vmatpush2.bf16.msra.mxu0 0
        %3531 = vmatprep.subr.bf16.mxu0 0
        %3532 = vmatpush2.bf16.msra.mxu0 0
        %3533 = vmatprep.subr.bf16.mxu0 0
        %3534 = vmatpush2.bf16.msra.mxu0 0
        %3535 = vmatprep.subr.bf16.mxu0 0
        %3536 = vmatpush2.bf16.msra.mxu0 0
        %3537 = vmatprep.subr.bf16.mxu0 0
        %3538 = vmatpush2.bf16.msra.mxu0 0
        %3539 = vmatprep.subr.bf16.mxu0 0
        %3540 = vmatpush2.bf16.msra.mxu0 0
        %3541 = vmatprep.subr.bf16.mxu0 0
        %3542 = vmatpush2.bf16.msra.mxu0 0
        %3543 = vmatprep.mubr.bf16.mxu0 0
        %3544 = vmatmul.mubr.bf16.gmra.mxu0 %v3303
        %v3545 = vpop.f32.mrf.mxu0
        %v3546 = vadd.f32 %v3385, %v3545
        %v3547 = vpop.f32.mrf.mxu0
        %v3548 = vpop.f32.mrf.mxu0
        %v3549 = vadd.f32 %v3388, %v3548
        %v3550 = vpop.f32.mrf.mxu0
        %3551 = vmatprep.mubr.bf16.mxu0 0
        %3552 = vmatmul.mubr.bf16.gmra.mxu0 %v3306
        %v3553 = vpop.f32.mrf.mxu0
        %v3554 = vadd.f32 %v3393, %v3553
        %v3555 = vpop.f32.mrf.mxu0
        %v3556 = vpop.f32.mrf.mxu0
        %v3557 = vadd.f32 %v3396, %v3556
        %v3558 = vpop.f32.mrf.mxu0
        %3559 = vmatprep.mubr.bf16.mxu0 0
        %3560 = vmatmul.mubr.bf16.gmra.mxu0 %v3309
        %v3561 = vpop.f32.mrf.mxu0
        %v3562 = vadd.f32 %v3401, %v3561
        %v3563 = vpop.f32.mrf.mxu0
        %v3564 = vpop.f32.mrf.mxu0
        %v3565 = vadd.f32 %v3404, %v3564
        %v3566 = vpop.f32.mrf.mxu0
        %3567 = vmatprep.mubr.bf16.mxu0 0
        %3568 = vmatmul.mubr.bf16.gmra.mxu0 %v3312
        %v3569 = vpop.f32.mrf.mxu0
        %v3570 = vadd.f32 %v3409, %v3569
        %v3571 = vpop.f32.mrf.mxu0
        %v3572 = vpop.f32.mrf.mxu0
        %v3573 = vadd.f32 %v3412, %v3572
        %v3574 = vpop.f32.mrf.mxu0
        %3575 = vmatprep.mubr.bf16.mxu0 0
        %3576 = vmatmul.mubr.bf16.gmra.mxu0 %v3315
        %v3577 = vpop.f32.mrf.mxu0
        %v3578 = vadd.f32 %v3417, %v3577
        %v3579 = vpop.f32.mrf.mxu0
        %v3580 = vpop.f32.mrf.mxu0
        %v3581 = vadd.f32 %v3420, %v3580
        %v3582 = vpop.f32.mrf.mxu0
        %3583 = vmatprep.mubr.bf16.mxu0 0
        %3584 = vmatmul.mubr.bf16.gmra.mxu0 %v3318
        %v3585 = vpop.f32.mrf.mxu0
        %v3586 = vadd.f32 %v3425, %v3585
        %v3587 = vpop.f32.mrf.mxu0
        %v3588 = vpop.f32.mrf.mxu0
        %v3589 = vadd.f32 %v3428, %v3588
        %v3590 = vpop.f32.mrf.mxu0
        %3591 = vmatprep.mubr.bf16.mxu0 0
        %3592 = vmatmul.mubr.bf16.gmra.mxu0 %v3321
        %v3593 = vpop.f32.mrf.mxu0
        %v3594 = vadd.f32 %v3433, %v3593
        %v3595 = vpop.f32.mrf.mxu0
        %v3596 = vpop.f32.mrf.mxu0
        %v3597 = vadd.f32 %v3436, %v3596
        %v3598 = vpop.f32.mrf.mxu0
        %3599 = vmatprep.mubr.bf16.mxu0 0
        %3600 = vmatmul.mubr.bf16.gmra.mxu0 %v3324
        %v3601 = vpop.f32.mrf.mxu0
        %v3602 = vadd.f32 %v3441, %v3601
        %v3603 = vpop.f32.mrf.mxu0
        %v3604 = vpop.f32.mrf.mxu0
        %v3605 = vadd.f32 %v3444, %v3604
        %v3606 = vpop.f32.mrf.mxu0
        %3607 = vmatprep.mubr.bf16.mxu0 0
        %3608 = vmatmul.mubr.bf16.gmra.mxu0 %v3327
        %v3609 = vpop.f32.mrf.mxu0
        %v3610 = vadd.f32 %v3449, %v3609
        %v3611 = vpop.f32.mrf.mxu0
        %v3612 = vpop.f32.mrf.mxu0
        %v3613 = vadd.f32 %v3452, %v3612
        %v3614 = vpop.f32.mrf.mxu0
        %3615 = vmatprep.mubr.bf16.mxu0 0
        %3616 = vmatmul.mubr.bf16.gmra.mxu0 %v3330
        %v3617 = vpop.f32.mrf.mxu0
        %v3618 = vadd.f32 %v3457, %v3617
        %v3619 = vpop.f32.mrf.mxu0
        %v3620 = vpop.f32.mrf.mxu0
        %v3621 = vadd.f32 %v3460, %v3620
        %v3622 = vpop.f32.mrf.mxu0
        %3623 = vmatprep.mubr.bf16.mxu0 0
        %3624 = vmatmul.mubr.bf16.gmra.mxu0 %v3333
        %v3625 = vpop.f32.mrf.mxu0
        %v3626 = vadd.f32 %v3465, %v3625
        %v3627 = vpop.f32.mrf.mxu0
        %v3628 = vpop.f32.mrf.mxu0
        %v3629 = vadd.f32 %v3468, %v3628
        %v3630 = vpop.f32.mrf.mxu0
        %3631 = vmatprep.mubr.bf16.mxu0 0
        %3632 = vmatmul.mubr.bf16.gmra.mxu0 %v3336
        %v3633 = vpop.f32.mrf.mxu0
        %v3634 = vadd.f32 %v3473, %v3633
        %v3635 = vpop.f32.mrf.mxu0
        %v3636 = vpop.f32.mrf.mxu0
        %v3637 = vadd.f32 %v3476, %v3636
        %v3638 = vpop.f32.mrf.mxu0
        %3639 = vmatprep.mubr.bf16.mxu0 0
        %3640 = vmatmul.mubr.bf16.gmra.mxu0 %v3339
        %v3641 = vpop.f32.mrf.mxu0
        %v3642 = vadd.f32 %v3481, %v3641
        %v3643 = vpop.f32.mrf.mxu0
        %v3644 = vpop.f32.mrf.mxu0
        %v3645 = vadd.f32 %v3484, %v3644
        %v3646 = vpop.f32.mrf.mxu0
        %3647 = vmatprep.mubr.bf16.mxu0 0
        %3648 = vmatmul.mubr.bf16.gmra.mxu0 %v3342
        %v3649 = vpop.f32.mrf.mxu0
        %v3650 = vadd.f32 %v3489, %v3649
        %v3651 = vpop.f32.mrf.mxu0
        %v3652 = vpop.f32.mrf.mxu0
        %v3653 = vadd.f32 %v3492, %v3652
        %v3654 = vpop.f32.mrf.mxu0
        %3655 = vmatprep.mubr.bf16.mxu0 0
        %3656 = vmatmul.mubr.bf16.gmra.mxu0 %v3345
        %v3657 = vpop.f32.mrf.mxu0
        %v3658 = vadd.f32 %v3497, %v3657
        %v3659 = vpop.f32.mrf.mxu0
        %v3660 = vpop.f32.mrf.mxu0
        %v3661 = vadd.f32 %v3500, %v3660
        %v3662 = vpop.f32.mrf.mxu0
        %3663 = vmatprep.mubr.bf16.mxu0 0
        %3664 = vmatmul.mubr.bf16.gmra.mxu0 %v3348
        %v3665 = vpop.f32.mrf.mxu0
        %v3666 = vadd.f32 %v3505, %v3665
        %v3667 = vpop.f32.mrf.mxu0
        %v3668 = vpop.f32.mrf.mxu0
        %v3669 = vadd.f32 %v3508, %v3668
        %v3670 = vpop.f32.mrf.mxu0
        %3671 = vdwg.mxu0
        %3704 = vrot.lane.b32.xlu0 %v444, 96
        %v3705 = vpop.permute.xlu0 %3704
        %3706 = vrot.lane.b32.xlu0 %v447, 96
        %v3707 = vpop.permute.xlu0 %3706
        %3708 = vrot.lane.b32.xlu0 %v452, 96
        %v3709 = vpop.permute.xlu0 %3708
        %3710 = vrot.lane.b32.xlu0 %v455, 96
        %v3711 = vpop.permute.xlu0 %3710
        %3712 = vrot.lane.b32.xlu0 %v460, 96
        %v3713 = vpop.permute.xlu0 %3712
        %3714 = vrot.lane.b32.xlu0 %v463, 96
        %v3715 = vpop.permute.xlu0 %3714
        %3716 = vrot.lane.b32.xlu0 %v468, 96
        %v3717 = vpop.permute.xlu0 %3716
        %3718 = vrot.lane.b32.xlu0 %v471, 96
        %v3719 = vpop.permute.xlu0 %3718
        %3720 = vrot.lane.b32.xlu0 %v476, 96
        %v3721 = vpop.permute.xlu0 %3720
        %3722 = vrot.lane.b32.xlu0 %v479, 96
        %v3723 = vpop.permute.xlu0 %3722
        %3724 = vrot.lane.b32.xlu0 %v484, 96
        %v3725 = vpop.permute.xlu0 %3724
        %3726 = vrot.lane.b32.xlu0 %v487, 96
        %v3727 = vpop.permute.xlu0 %3726
        %3728 = vrot.lane.b32.xlu0 %v492, 96
        %v3729 = vpop.permute.xlu0 %3728
        %3730 = vrot.lane.b32.xlu0 %v495, 96
        %v3731 = vpop.permute.xlu0 %3730
        %3732 = vrot.lane.b32.xlu0 %v500, 96
        %v3733 = vpop.permute.xlu0 %3732
        %3734 = vrot.lane.b32.xlu0 %v503, 96
        %v3735 = vpop.permute.xlu0 %3734
        %3736 = vrot.lane.b32.xlu0 %v508, 96
        %v3737 = vpop.permute.xlu0 %3736
        %3738 = vrot.lane.b32.xlu0 %v511, 96
        %v3739 = vpop.permute.xlu0 %3738
        %3740 = vrot.lane.b32.xlu0 %v516, 96
        %v3741 = vpop.permute.xlu0 %3740
        %3742 = vrot.lane.b32.xlu0 %v519, 96
        %v3743 = vpop.permute.xlu0 %3742
        %3744 = vrot.lane.b32.xlu0 %v524, 96
        %v3745 = vpop.permute.xlu0 %3744
        %3746 = vrot.lane.b32.xlu0 %v527, 96
        %v3747 = vpop.permute.xlu0 %3746
        %3748 = vrot.lane.b32.xlu0 %v532, 96
        %v3749 = vpop.permute.xlu0 %3748
        %3750 = vrot.lane.b32.xlu0 %v535, 96
        %v3751 = vpop.permute.xlu0 %3750
        %3752 = vrot.lane.b32.xlu0 %v540, 96
        %v3753 = vpop.permute.xlu0 %3752
        %3754 = vrot.lane.b32.xlu0 %v543, 96
        %v3755 = vpop.permute.xlu0 %3754
        %3756 = vrot.lane.b32.xlu0 %v548, 96
        %v3757 = vpop.permute.xlu0 %3756
        %3758 = vrot.lane.b32.xlu0 %v551, 96
        %v3759 = vpop.permute.xlu0 %3758
        %3760 = vrot.lane.b32.xlu0 %v556, 96
        %v3761 = vpop.permute.xlu0 %3760
        %3762 = vrot.lane.b32.xlu0 %v559, 96
        %v3763 = vpop.permute.xlu0 %3762
        %3764 = vrot.lane.b32.xlu0 %v564, 96
        %v3765 = vpop.permute.xlu0 %3764
        %3766 = vrot.lane.b32.xlu0 %v567, 96
        %v3767 = vpop.permute.xlu0 %3766
        %v3800 = vadd.f32 %v3546, %v3705
        %v3801 = vadd.f32 %v3549, %v3707
        %v3802 = vadd.f32 %v3554, %v3709
        %v3803 = vadd.f32 %v3557, %v3711
        %v3804 = vadd.f32 %v3562, %v3713
        %v3805 = vadd.f32 %v3565, %v3715
        %v3806 = vadd.f32 %v3570, %v3717
        %v3807 = vadd.f32 %v3573, %v3719
        %v3808 = vadd.f32 %v3578, %v3721
        %v3809 = vadd.f32 %v3581, %v3723
        %v3810 = vadd.f32 %v3586, %v3725
        %v3811 = vadd.f32 %v3589, %v3727
        %v3812 = vadd.f32 %v3594, %v3729
        %v3813 = vadd.f32 %v3597, %v3731
        %v3814 = vadd.f32 %v3602, %v3733
        %v3815 = vadd.f32 %v3605, %v3735
        %v3816 = vadd.f32 %v3610, %v3737
        %v3817 = vadd.f32 %v3613, %v3739
        %v3818 = vadd.f32 %v3618, %v3741
        %v3819 = vadd.f32 %v3621, %v3743
        %v3820 = vadd.f32 %v3626, %v3745
        %v3821 = vadd.f32 %v3629, %v3747
        %v3822 = vadd.f32 %v3634, %v3749
        %v3823 = vadd.f32 %v3637, %v3751
        %v3824 = vadd.f32 %v3642, %v3753
        %v3825 = vadd.f32 %v3645, %v3755
        %v3826 = vadd.f32 %v3650, %v3757
        %v3827 = vadd.f32 %v3653, %v3759
        %v3828 = vadd.f32 %v3658, %v3761
        %v3829 = vadd.f32 %v3661, %v3763
        %v3830 = vadd.f32 %v3666, %v3765
        %v3831 = vadd.f32 %v3669, %v3767
        %v3832 = vmax.f32 %v3800, 0.0
        %v3833 = vmax.f32 %v3801, 0.0
        %v3834 = vmax.f32 %v3802, 0.0
        %v3835 = vmax.f32 %v3803, 0.0
        %v3836 = vmax.f32 %v3804, 0.0
        %v3837 = vmax.f32 %v3805, 0.0
        %v3838 = vmax.f32 %v3806, 0.0
        %v3839 = vmax.f32 %v3807, 0.0
        %v3840 = vmax.f32 %v3808, 0.0
        %v3841 = vmax.f32 %v3809, 0.0
        %v3842 = vmax.f32 %v3810, 0.0
        %v3843 = vmax.f32 %v3811, 0.0
        %v3844 = vmax.f32 %v3812, 0.0
        %v3845 = vmax.f32 %v3813, 0.0
        %v3846 = vmax.f32 %v3814, 0.0
        %v3847 = vmax.f32 %v3815, 0.0
        %v3848 = vmax.f32 %v3816, 0.0
        %v3849 = vmax.f32 %v3817, 0.0
        %v3850 = vmax.f32 %v3818, 0.0
        %v3851 = vmax.f32 %v3819, 0.0
        %v3852 = vmax.f32 %v3820, 0.0
        %v3853 = vmax.f32 %v3821, 0.0
        %v3854 = vmax.f32 %v3822, 0.0
        %v3855 = vmax.f32 %v3823, 0.0
        %v3856 = vmax.f32 %v3824, 0.0
        %v3857 = vmax.f32 %v3825, 0.0
        %v3858 = vmax.f32 %v3826, 0.0
        %v3859 = vmax.f32 %v3827, 0.0
        %v3860 = vmax.f32 %v3828, 0.0
        %v3861 = vmax.f32 %v3829, 0.0
        %v3862 = vmax.f32 %v3830, 0.0
        %v3863 = vmax.f32 %v3831, 0.0
        %3864 = vst.msk [vmem:[%s217] sm:$0xff] %vm641, %v3832
        %3865 = vst.msk [vmem:[%s217 + $0x8] sm:$0xff] %vm641, %v3833
        %3866 = vst.msk [vmem:[%s217 + $0x10] sm:$0xff] %vm641, %v3834
        %3867 = vst.msk [vmem:[%s217 + $0x18] sm:$0xff] %vm641, %v3835
        %3868 = vst.msk [vmem:[%s217 + $0x20] sm:$0xff] %vm641, %v3836
        %3869 = vst.msk [vmem:[%s217 + $0x28] sm:$0xff] %vm641, %v3837
        %3870 = vst.msk [vmem:[%s217 + $0x30] sm:$0xff] %vm641, %v3838
        %3871 = vst.msk [vmem:[%s217 + $0x38] sm:$0xff] %vm641, %v3839
        %3872 = vst.msk [vmem:[%s217 + $0x40] sm:$0xff] %vm641, %v3840
        %3873 = vst.msk [vmem:[%s217 + $0x48] sm:$0xff] %vm641, %v3841
        %3874 = vst.msk [vmem:[%s217 + $0x50] sm:$0xff] %vm641, %v3842
        %3875 = vst.msk [vmem:[%s217 + $0x58] sm:$0xff] %vm641, %v3843
        %3876 = vst.msk [vmem:[%s217 + $0x60] sm:$0xff] %vm641, %v3844
        %3877 = vst.msk [vmem:[%s217 + $0x68] sm:$0xff] %vm641, %v3845
        %3878 = vst.msk [vmem:[%s217 + $0x70] sm:$0xff] %vm641, %v3846
        %3879 = vst.msk [vmem:[%s217 + $0x78] sm:$0xff] %vm641, %v3847
        %3880 = vst.msk [vmem:[%s217 + $0x80] sm:$0xff] %vm641, %v3848
        %3881 = vst.msk [vmem:[%s217 + $0x88] sm:$0xff] %vm641, %v3849
        %3882 = vst.msk [vmem:[%s217 + $0x90] sm:$0xff] %vm641, %v3850
        %3883 = vst.msk [vmem:[%s217 + $0x98] sm:$0xff] %vm641, %v3851
        %3884 = vst.msk [vmem:[%s217 + $0xa0] sm:$0xff] %vm641, %v3852
        %3885 = vst.msk [vmem:[%s217 + $0xa8] sm:$0xff] %vm641, %v3853
        %3886 = vst.msk [vmem:[%s217 + $0xb0] sm:$0xff] %vm641, %v3854
        %3887 = vst.msk [vmem:[%s217 + $0xb8] sm:$0xff] %vm641, %v3855
        %3888 = vst.msk [vmem:[%s217 + $0xc0] sm:$0xff] %vm641, %v3856
        %3889 = vst.msk [vmem:[%s217 + $0xc8] sm:$0xff] %vm641, %v3857
        %3890 = vst.msk [vmem:[%s217 + $0xd0] sm:$0xff] %vm641, %v3858
        %3891 = vst.msk [vmem:[%s217 + $0xd8] sm:$0xff] %vm641, %v3859
        %3892 = vst.msk [vmem:[%s217 + $0xe0] sm:$0xff] %vm641, %v3860
        %3893 = vst.msk [vmem:[%s217 + $0xe8] sm:$0xff] %vm641, %v3861
        %3894 = vst.msk [vmem:[%s217 + $0xf0] sm:$0xff] %vm641, %v3862
        %3895 = vst.msk [vmem:[%s217 + $0xf8] sm:$0xff] %vm641, %v3863
        %s3896 = sand.u32 %s137, 1
        %s3897 = scalar_lea.sflag [#allocation5], %s3896
        %s3898 = sand.u32 %s137, 1
        %s3899 = smul.addr %s3898, 256
        %s3900 = scalar_lea.vmem [#allocation4], %s3899
        // Predicated region
        $region41: #{residual_block_forward.1} parent=39 // pred_check
          %p3901 = pneg %p147
        $region42: #{residual_block_forward.1} parent=39 // pred_check_branch
          %3903 = sbr.rel (%p3901) target = $region44
        $region43: #{residual_block_forward.1} parent=39 // pred_region
          %s3905 = ssub.s32 4096, 4096
          %3906 = vsyncadd %s3897, %s3905
          %s3907 = smul.addr %s19, 32
          %s3908 = smul.addr %s3907, 128
          %s3909 = scalar_lea.hbm %s5, %s3908
          %s3910 = sshll.u32 %s3900, 4
          %s3911 = int_to_ptr.vmem [resolvable:$true] %s3910
          %3916 = dma.vmem_to_hbm [thread:$0]  %s3911, 4096, %s3909, %s3897, 128, 128, 8
        $region44: #{residual_block_forward.1} parent=39 // pred_fallthru
          _
      $region40: #{residual_block_forward.1} parent=5 // pred_fallthru
        _
      %p3917 = scmp.le.s32.totalorder 2, %s14
      // Predicated region
      $region45: #{residual_block_forward.1} parent=5 // pred_check
        %p3918 = pneg %p3917
      $region46: #{residual_block_forward.1} parent=5 // pred_check_branch
        %3920 = sbr.rel (%p3918) target = $region48
      $region47: #{residual_block_forward.1} parent=5 // pred_region
        %s3921 = ssub.s32 %s14, 2
        // Predicated region
        $region49: #{residual_block_forward.1} parent=47 // pred_check
          %p3922 = pneg %p153
        $region50: #{residual_block_forward.1} parent=47 // pred_check_branch
          %3924 = sbr.rel (%p3922) target = $region52
        $region51: #{residual_block_forward.1} parent=47 // pred_region
          %s3925 = sand.u32 %s138, 1
          %s3926 = scalar_lea.sflag [#allocation5], %s3925
          %s3927 = sand.u32 %s138, 1
          %s3928 = smul.addr %s3927, 256
          %s3929 = scalar_lea.vmem [#allocation4], %s3928
          %3930 = dma.done %s3926, 4096
        $region52: #{residual_block_forward.1} parent=47 // pred_fallthru
          _
      $region48: #{residual_block_forward.1} parent=5 // pred_fallthru
        _
    $region6: #{residual_block_forward.1} parent=1 // loop_footer
      %s18 = sadd.s32 1, %s14
    $region7: #{residual_block_forward.1} parent=1 // loop_footer_branch
      %13 = sbr.rel target = $region3
    $region8: #{residual_block_forward.1} parent=1 // loop_exit
      _
    %3931 = vsyncpa [#allocation5], 1
    %s3932 = scalar_lea.sflag [#allocation5], 1
    %3933 = vsyncpa %s3932, 1

</llo_original>
